<compile_context>
chip_gen: v5e
topology: v5e:2x2
jax: 0.10.0
libtpu: 0.0.40
codegen_flags: <defaults>
</compile_context>

<pallas_src>
import functools
import math

import jax
import jax.numpy as jnp
from jax.experimental import pallas as pl
from jax.experimental.pallas import tpu as pltpu  # noqa: F401

# ---------------- model config (small, consistent with the module) ----------------
SERIES_LEN = 64
PATCH_SIZE = 4
IN_CHANS = 4
EMBED_DIM = 32
N_HEAD = 4
E_LAYERS = 2
NUM_CLASSES = 4          # classification head: Linear(embed_dim, 4)
BATCH = 2
LN_EPS = 1e-5            # PyTorch LayerNorm default

N_PATCH = SERIES_LEN // PATCH_SIZE   # 16 patch tokens
SEQ = N_PATCH + 1                    # 17 tokens (patches + cls)
S_PAD = 24                           # per-batch block padded to a multiple of 8 sublanes


@functools.lru_cache(maxsize=1)
def _erf_supported():
    """Probe whether lax.erf lowers inside a Pallas TPU kernel on this backend."""
    def k(x_ref, o_ref):
        o_ref[...] = jax.lax.erf(x_ref[...])
    try:
        out = pl.pallas_call(
            k, out_shape=jax.ShapeDtypeStruct((8, 128), jnp.float32)
        )(jnp.zeros((8, 128), jnp.float32))
        jax.block_until_ready(out)
        return True
    except Exception:
        return False


def _gelu(x, exact):
    if exact:
        # exact erf-GELU, matching torch.nn.functional.gelu default
        return 0.5 * x * (1.0 + jax.lax.erf(x * (1.0 / math.sqrt(2.0))))
    # TODO(synk): erf not lowerable on this backend; tanh-approx GELU used instead of exact.
    c = math.sqrt(2.0 / math.pi)
    return 0.5 * x * (1.0 + jnp.tanh(c * (x + 0.044715 * x * x * x)))


def _layernorm(x, g, b):
    mu = jnp.mean(x, axis=-1, keepdims=True)
    var = jnp.mean(jnp.square(x - mu), axis=-1, keepdims=True)
    return (x - mu) * jax.lax.rsqrt(var + LN_EPS) * g + b


# ---------------- the single fused Pallas kernel ----------------
def fused_forward_kernel(xp_ref, pa_ref, wa_ref, w1_ref, w2_ref, vecs_ref, head_ref,
                         o_ref,
                         *, batch, n_patch, n_head, n_layers, s_pad, exact_gelu):
    f32 = jnp.float32
    B = batch
    P = n_patch
    S = P + 1
    SP = s_pad
    BS = B * SP
    H = n_head
    D = pa_ref.shape[1]
    dh = D // H
    CP = xp_ref.shape[1]                       # in_chans * patch_size

    # ---- patch-embed matmul + (conv-bias / pos-embed / cls-token) addend, in registers.
    # Layout per batch block of SP rows: rows 0..P-1 = patch tokens, row P = cls, rest pad.
    pa = pa_ref[...]                           # (CP + BS, D): [Wp ; addend]
    x2 = jnp.dot(xp_ref[...], pa[0:CP, :], preferred_element_type=f32) + pa[CP:, :]

    # ---- additive attention mask: key j visible from query i iff same batch block and j is
    # a real token (rows 0..S-1 of the block); pad rows / cross-batch keys get -1e30.
    row = jax.lax.broadcasted_iota(jnp.int32, (BS, BS), 0)
    col = jax.lax.broadcasted_iota(jnp.int32, (BS, BS), 1)
    mask = jnp.full((BS, BS), -1e30, dtype=f32)
    for b in range(B):
        ok = ((row >= b * SP) & (row < (b + 1) * SP)
              & (col >= b * SP) & (col < b * SP + S))
        mask = jnp.where(ok, 0.0, mask)

    # ---- transformer encoder (post-norm, GELU); all weights VMEM-resident
    for l in range(n_layers):
        vec = vecs_ref[l]                      # (8, 4D) packed per-layer vectors
        bq, ba = vec[0:1, 0:D], vec[1:2, 0:D]  # scaled q-bias; folded (bv@Wo^T + bo)
        b1, b2 = vec[2:3, :], vec[3:4, 0:D]
        g1, be1 = vec[4:5, 0:D], vec[5:6, 0:D]
        g2, be2 = vec[6:7, 0:D], vec[7:8, 0:D]

        base = l * (2 + H)
        # full-width Q / K projections (softmax scale folded into Wq/bq; bk dropped — exact)
        q = jnp.dot(x2, wa_ref[base + 0], preferred_element_type=f32) + bq
        k = jnp.dot(x2, wa_ref[base + 1], preferred_element_type=f32)
        kt = k.T                               # one transpose per layer, reused by all heads

        acc = None
        for h in range(H):
            qh = q[:, h * dh:(h + 1) * dh]                     # aligned 8-lane slices
            kth = kt[h * dh:(h + 1) * dh, :]
            vo = jnp.dot(x2, wa_ref[base + 2 + h],             # x @ (Wv_h @ Wo_h), pre-folded
                         preferred_element_type=f32)
            s = jnp.dot(qh, kth, preferred_element_type=f32) + mask
            m = jnp.max(s, axis=-1, keepdims=True)
            e = jnp.exp(s - m)
            p = e * pl.reciprocal(jnp.sum(e, axis=-1, keepdims=True), approx=True)
            c = jnp.dot(p, vo, preferred_element_type=f32)     # (BS, D) head contribution
            acc = c if acc is None else acc + c

        # residual + LN1, feed-forward, residual + LN2 (dropout = identity at inference)
        y = _layernorm(x2 + acc + ba, g1, be1)
        h1 = _gelu(jnp.dot(y, w1_ref[l], preferred_element_type=f32) + b1, exact_gelu)
        ff = jnp.dot(h1, w2_ref[l], preferred_element_type=f32) + b2
        x2 = _layernorm(y + ff, g2, be2)

    # ---- classification head: gather cls rows (row b*SP + P) with a one-hot matmul,
    # one (B,D)@(D,num_classes) matmul, one store.
    sel = (jax.lax.broadcasted_iota(jnp.int32, (B, BS), 1)
           == (jax.lax.broadcasted_iota(jnp.int32, (B, BS), 0) * SP + P)).astype(f32)
    cls = jnp.dot(sel, x2, preferred_element_type=f32)          # (B, D)
    hd = head_ref[...]
    o_ref[...] = jnp.dot(cls, hd[0:D, :], preferred_element_type=f32) + hd[D:D + 1, :]


# ---------------- positional embedding & parameters ----------------
def sinusoidal_pos_embed(seq_len, d_model):
    position = jnp.arange(seq_len, dtype=jnp.float32)[:, None]
    div_term = jnp.exp(jnp.arange(0, d_model, 2, dtype=jnp.float32)
                       * (-math.log(10000.0) / d_model))
    pe = jnp.zeros((seq_len, d_model), jnp.float32)
    pe = pe.at[:, 0::2].set(jnp.sin(position * div_term))
    pe = pe.at[:, 1::2].set(jnp.cos(position * div_term))
    return pe


def init_params(key):
    """Parameters in PyTorch convention (out_features, in_features); packed later."""
    def normal(k, shape, std=0.02):
        return std * jax.random.normal(k, shape, dtype=jnp.float32)

    ks = jax.random.split(key, 5 + E_LAYERS)
    D = EMBED_DIM
    params = {
        "patch_w": normal(ks[0], (D, IN_CHANS, PATCH_SIZE)),   # Conv1d weight
        "patch_b": normal(ks[1], (D,)),
        "cls_token": 0.1 * jax.random.normal(ks[2], (1, 1, D), dtype=jnp.float32),
        "proj_w": normal(ks[3], (NUM_CLASSES, D)),
        "proj_b": normal(ks[4], (NUM_CLASSES,)),
        "pos_embed": sinusoidal_pos_embed(SEQ, D),
        "layers": [],
    }
    for i in range(E_LAYERS):
        lk = jax.random.split(ks[5 + i], 12)
        params["layers"].append(dict(
            wqkv=normal(lk[0], (3 * D, D)), bqkv=normal(lk[1], (1, 3 * D)),
            wo=normal(lk[2], (D, D)),       bo=normal(lk[3], (1, D)),
            w1=normal(lk[4], (4 * D, D)),   b1=normal(lk[5], (1, 4 * D)),
            w2=normal(lk[6], (D, 4 * D)),   b2=normal(lk[7], (1, D)),
            g1=1.0 + normal(lk[8], (1, D)),  be1=normal(lk[9], (1, D)),
            g2=1.0 + normal(lk[10], (1, D)), be2=normal(lk[11], (1, D)),
        ))
    return params


def pack_params(params, batch=BATCH):
    """One-time host-side folds, transposes and packing into 6 kernel tensors."""
    D, H = EMBED_DIM, N_HEAD
    dh = D // H
    P, SP = N_PATCH, S_PAD
    scale = 1.0 / math.sqrt(dh)
    pe = params["pos_embed"]                   # (SEQ, D)
    layers = params["layers"]

    # pa: rows [0, C*ps) = patch-projection matrix (Conv1d lowered to matmul, pre-transposed);
    #     rows [C*ps, C*ps + B*SP) = per-row additive term (conv bias + pe / cls+pe0 / zeros).
    wp = params["patch_w"].reshape(D, IN_CHANS * PATCH_SIZE).T          # (C*ps, D)
    blk = jnp.zeros((SP, D), jnp.float32)
    blk = blk.at[:P, :].set(pe[1:P + 1, :] + params["patch_b"][None, :])
    blk = blk.at[P, :].set(params["cls_token"].reshape(D) + pe[0, :])
    pa = jnp.concatenate([wp, jnp.tile(blk, (batch, 1))], axis=0)

    # wa: per layer [Wq*scale, Wk, Wvo_head0..H-1], each (D, D), pre-transposed for x @ W.
    was = []
    for lp in layers:
        wqT = lp["wqkv"][:D].T
        wkT = lp["wqkv"][D:2 * D].T
        wvT = lp["wqkv"][2 * D:].T
        woT = lp["wo"].T
        was.append(wqT * scale)
        was.append(wkT)
        for h in range(H):
            was.append(wvT[:, h * dh:(h + 1) * dh] @ woT[h * dh:(h + 1) * dh, :])
    wa = jnp.stack(was, axis=0)                                         # (L*(2+H), D, D)

    # vecs: all per-layer small vectors packed into one (8, 4D) tile per layer.
    def row(v):
        return jnp.zeros((4 * D,), jnp.float32).at[:v.shape[0]].set(v)
    vl = []
    for lp in layers:
        bq = lp["bqkv"][0, :D] * scale                     # softmax scale folded
        bv = lp["bqkv"][0, 2 * D:]
        ba = bv @ lp["wo"].T + lp["bo"][0]                 # bv + bo folded (softmax rows sum to 1)
        vl.append(jnp.stack([row(bq), row(ba), row(lp["b1"][0]), row(lp["b2"][0]),
                             row(lp["g1"][0]), row(lp["be1"][0]),
                             row(lp["g2"][0]), row(lp["be2"][0])], axis=0))
    vecs = jnp.stack(vl, axis=0)                                        # (L, 8, 4D)

    w1 = jnp.stack([lp["w1"].T for lp in layers], axis=0)               # (L, D, 4D)
    w2 = jnp.stack([lp["w2"].T for lp in layers], axis=0)               # (L, 4D, D)

    head = jnp.zeros((D + 8, NUM_CLASSES), jnp.float32)                 # rows: Wcls^T ; bcls
    head = head.at[:D, :].set(params["proj_w"].T)
    head = head.at[D, :].set(params["proj_b"])

    return dict(pa=pa, wa=wa, w1=w1, w2=w2, vecs=vecs, head=head)


# ---------------- forward (Ti_MAE, task_name='classification') ----------------
@functools.partial(jax.jit, static_argnames=("exact_gelu",))
def ti_mae_forward(x, packed, exact_gelu=True):
    B, C, L = x.shape
    P = L // PATCH_SIZE
    # Patch_Embed: Conv1d(kernel=stride=patch) == matmul over flattened patches.
    # Pad each batch block to S_PAD rows (patches at rows 0..P-1; cls/pad rows stay zero so
    # the matmul leaves them untouched and the packed addend supplies cls+pe0).
    xp = (x.reshape(B, C, P, PATCH_SIZE)
            .transpose(0, 2, 1, 3)
            .reshape(B, P, C * PATCH_SIZE))
    xp_pad = jnp.zeros((B, S_PAD, C * PATCH_SIZE), jnp.float32).at[:, :P, :].set(xp)
    xp_pad = xp_pad.reshape(B * S_PAD, C * PATCH_SIZE)

    kernel = functools.partial(
        fused_forward_kernel, batch=B, n_patch=P, n_head=N_HEAD,
        n_layers=E_LAYERS, s_pad=S_PAD, exact_gelu=exact_gelu)

    # Single fused call, everything (weights + activations, ~150 KB) VMEM-resident.
    # No grid / no scratch: batch handled block-diagonally inside one invocation.
    return pl.pallas_call(
        kernel,
        out_shape=jax.ShapeDtypeStruct((B, NUM_CLASSES), jnp.float32),
    )(xp_pad, packed["pa"], packed["wa"], packed["w1"], packed["w2"],
      packed["vecs"], packed["head"])


# ---------------- pure-JAX reference (same math, PyTorch-convention weights) ----------------
def _softmax_ref(x):
    m = jnp.max(x, axis=-1, keepdims=True)
    e = jnp.exp(x - m)
    return e / jnp.sum(e, axis=-1, keepdims=True)


def ref_forward(x, params, exact_gelu=True):
    B, C, L = x.shape
    P = L // PATCH_SIZE
    D = EMBED_DIM
    dh = D // N_HEAD
    xp = (x.reshape(B, C, P, PATCH_SIZE)
            .transpose(0, 2, 1, 3)
            .reshape(B * P, C * PATCH_SIZE))
    w = params["patch_w"].reshape(D, C * PATCH_SIZE)
    tokens = (xp @ w.T + params["patch_b"]).reshape(B, P, D)
    cls = jnp.broadcast_to(params["cls_token"], (B, 1, D))
    xt = jnp.concatenate([cls, tokens], axis=1) + params["pos_embed"][None]
    for lp in params["layers"]:
        qkv = xt @ lp["wqkv"].T + lp["bqkv"]
        q, k, v = qkv[..., :D], qkv[..., D:2 * D], qkv[..., 2 * D:]
        split = lambda t: t.reshape(B, -1, N_HEAD, dh).transpose(0, 2, 1, 3)
        qh, kh, vh = split(q), split(k), split(v)
        s = jnp.einsum('bhqd,bhkd->bhqk', qh, kh) / math.sqrt(dh)
        p = _softmax_ref(s)
        a = jnp.einsum('bhqk,bhkd->bhqd', p, vh).transpose(0, 2, 1, 3).reshape(B, -1, D)
        a = a @ lp["wo"].T + lp["bo"]
        y = _layernorm(xt + a, lp["g1"], lp["be1"])
        h1 = _gelu(y @ lp["w1"].T + lp["b1"], exact_gelu)
        ff = h1 @ lp["w2"].T + lp["b2"]
        xt = _layernorm(y + ff, lp["g2"], lp["be2"])
    return xt[:, 0, :] @ params["proj_w"].T + params["proj_b"]


if __name__ == "__main__":
    exact = _erf_supported()

    key = jax.random.PRNGKey(0)
    kx, kp = jax.random.split(key)
    x = jax.random.normal(kx, (BATCH, IN_CHANS, SERIES_LEN), dtype=jnp.float32)
    params = init_params(kp)
    packed = pack_params(params, batch=BATCH)

    out = ti_mae_forward(x, packed, exact_gelu=exact)
    out = jax.block_until_ready(out)

    ref = ref_forward(x, params, exact_gelu=exact)
    assert out.shape == (BATCH, NUM_CLASSES), out.shape
    # tolerance accommodates pl.reciprocal(approx=True) in the softmax
    assert jnp.allclose(out, ref, atol=2e-3, rtol=2e-3), (out, ref)

    print("KERNEL_OK")
</pallas_src>

<mosaic_0001>
module attributes {stable_mosaic.version = 11 : i64} {
  func.func @k(%arg0: memref<8x128xf32, #tpu.memory_space<vmem>>, %arg1: memref<8x128xf32, #tpu.memory_space<vmem>>) attributes {dimension_semantics = [], scalar_prefetch = 0 : i64, scratch_operands = 0 : i64, tpu.core_type = #tpu.core_type<tc>} {
    %c0 = arith.constant 0 : index
    %c0_0 = arith.constant 0 : index
    %0 = vector.load %arg0[%c0, %c0_0] : memref<8x128xf32, #tpu.memory_space<vmem>>, vector<8x128xf32>
    %1 = math.erf %0 : vector<8x128xf32>
    %c0_1 = arith.constant 0 : index
    %c0_2 = arith.constant 0 : index
    %2 = vector.load %arg1[%c0_1, %c0_2] : memref<8x128xf32, #tpu.memory_space<vmem>>, vector<8x128xf32>
    tpu.vector_store %arg1[%c0_1, %c0_2], %1 {strides = array<i32>} : memref<8x128xf32, #tpu.memory_space<vmem>>, vector<8x128xf32>,
    return
  }
}

module attributes {stable_mosaic.version = 11 : i64} {
  func.func @fused_forward_kernel(%arg0: memref<48x16xf32, #tpu.memory_space<vmem>>, %arg1: memref<64x32xf32, #tpu.memory_space<vmem>>, %arg2: memref<12x32x32xf32, #tpu.memory_space<vmem>>, %arg3: memref<2x32x128xf32, #tpu.memory_space<vmem>>, %arg4: memref<2x128x32xf32, #tpu.memory_space<vmem>>, %arg5: memref<2x8x128xf32, #tpu.memory_space<vmem>>, %arg6: memref<40x4xf32, #tpu.memory_space<vmem>>, %arg7: memref<2x4xf32, #tpu.memory_space<vmem>>) attributes {dimension_semantics = [], scalar_prefetch = 0 : i64, scratch_operands = 0 : i64, tpu.core_type = #tpu.core_type<tc>} {
    %c0 = arith.constant 0 : index
    %c0_0 = arith.constant 0 : index
    %0 = vector.load %arg1[%c0, %c0_0] : memref<64x32xf32, #tpu.memory_space<vmem>>, vector<64x32xf32>
    %c0_1 = arith.constant 0 : index
    %c0_2 = arith.constant 0 : index
    %1 = vector.load %arg0[%c0_1, %c0_2] : memref<48x16xf32, #tpu.memory_space<vmem>>, vector<48x16xf32>
    %2 = vector.extract_strided_slice %0 {offsets = [0, 0], sizes = [16, 32], strides = [1, 1]} : vector<64x32xf32> to vector<16x32xf32>
    %cst = arith.constant dense<0.000000e+00> : vector<48x32xf32>
    %3 = tpu.matmul %1, %2, %cst {dimension_numbers = #tpu.dot_dimension_numbers<[1], [0], [0], [1], [0, 0, 1, 1], [], []>} : vector<48x16xf32>, vector<16x32xf32>, vector<48x32xf32> -> vector<48x32xf32>
    %4 = vector.extract_strided_slice %0 {offsets = [16, 0], sizes = [48, 32], strides = [1, 1]} : vector<64x32xf32> to vector<48x32xf32>
    %5 = arith.addf %3, %4 : vector<48x32xf32>
    %6 = tpu.iota {dimensions = array<i32: 0>} : vector<48x48xi32>
    %7 = tpu.iota {dimensions = array<i32: 1>} : vector<48x48xi32>
    %cst_3 = arith.constant -1.000000e+30 : f32
    %8 = vector.broadcast %cst_3 : f32 to vector<48x48xf32>
    %c0_i32 = arith.constant 0 : i32
    %9 = vector.broadcast %c0_i32 : i32 to vector<48x48xi32>
    %10 = arith.cmpi sge, %6, %9 : vector<48x48xi32>
    %c24_i32 = arith.constant 24 : i32
    %11 = vector.broadcast %c24_i32 : i32 to vector<48x48xi32>
    %12 = arith.cmpi slt, %6, %11 : vector<48x48xi32>
    %13 = arith.andi %10, %12 : vector<48x48xi1>
    %c0_i32_4 = arith.constant 0 : i32
    %14 = vector.broadcast %c0_i32_4 : i32 to vector<48x48xi32>
    %15 = arith.cmpi sge, %7, %14 : vector<48x48xi32>
    %16 = arith.andi %13, %15 : vector<48x48xi1>
    %c17_i32 = arith.constant 17 : i32
    %17 = vector.broadcast %c17_i32 : i32 to vector<48x48xi32>
    %18 = arith.cmpi slt, %7, %17 : vector<48x48xi32>
    %19 = arith.andi %16, %18 : vector<48x48xi1>
    %cst_5 = arith.constant 0.000000e+00 : f32
    %20 = vector.broadcast %cst_5 : f32 to vector<48x48xf32>
    %21 = arith.select %19, %20, %8 : vector<48x48xi1>, vector<48x48xf32>
    %c24_i32_6 = arith.constant 24 : i32
    %22 = vector.broadcast %c24_i32_6 : i32 to vector<48x48xi32>
    %23 = arith.cmpi sge, %6, %22 : vector<48x48xi32>
    %c48_i32 = arith.constant 48 : i32
    %24 = vector.broadcast %c48_i32 : i32 to vector<48x48xi32>
    %25 = arith.cmpi slt, %6, %24 : vector<48x48xi32>
    %26 = arith.andi %23, %25 : vector<48x48xi1>
    %c24_i32_7 = arith.constant 24 : i32
    %27 = vector.broadcast %c24_i32_7 : i32 to vector<48x48xi32>
    %28 = arith.cmpi sge, %7, %27 : vector<48x48xi32>
    %29 = arith.andi %26, %28 : vector<48x48xi1>
    %c41_i32 = arith.constant 41 : i32
    %30 = vector.broadcast %c41_i32 : i32 to vector<48x48xi32>
    %31 = arith.cmpi slt, %7, %30 : vector<48x48xi32>
    %32 = arith.andi %29, %31 : vector<48x48xi1>
    %cst_8 = arith.constant 0.000000e+00 : f32
    %33 = vector.broadcast %cst_8 : f32 to vector<48x48xf32>
    %34 = arith.select %32, %33, %21 : vector<48x48xi1>, vector<48x48xf32>
    %c0_9 = arith.constant 0 : index
    %c0_10 = arith.constant 0 : index
    %c0_11 = arith.constant 0 : index
    %35 = vector.load %arg5[%c0_9, %c0_10, %c0_11] : memref<2x8x128xf32, #tpu.memory_space<vmem>>, vector<1x8x128xf32>
    %36 = vector.shape_cast %35 : vector<1x8x128xf32> to vector<8x128xf32>
    %37 = vector.extract_strided_slice %36 {offsets = [0, 0], sizes = [1, 32], strides = [1, 1]} : vector<8x128xf32> to vector<1x32xf32>
    %38 = vector.extract_strided_slice %36 {offsets = [1, 0], sizes = [1, 32], strides = [1, 1]} : vector<8x128xf32> to vector<1x32xf32>
    %39 = vector.extract_strided_slice %36 {offsets = [2, 0], sizes = [1, 128], strides = [1, 1]} : vector<8x128xf32> to vector<1x128xf32>
    %40 = vector.extract_strided_slice %36 {offsets = [3, 0], sizes = [1, 32], strides = [1, 1]} : vector<8x128xf32> to vector<1x32xf32>
    %41 = vector.extract_strided_slice %36 {offsets = [4, 0], sizes = [1, 32], strides = [1, 1]} : vector<8x128xf32> to vector<1x32xf32>
    %42 = vector.extract_strided_slice %36 {offsets = [5, 0], sizes = [1, 32], strides = [1, 1]} : vector<8x128xf32> to vector<1x32xf32>
    %43 = vector.extract_strided_slice %36 {offsets = [6, 0], sizes = [1, 32], strides = [1, 1]} : vector<8x128xf32> to vector<1x32xf32>
    %44 = vector.extract_strided_slice %36 {offsets = [7, 0], sizes = [1, 32], strides = [1, 1]} : vector<8x128xf32> to vector<1x32xf32>
    %c0_12 = arith.constant 0 : index
    %c0_13 = arith.constant 0 : index
    %c0_14 = arith.constant 0 : index
    %45 = vector.load %arg2[%c0_12, %c0_13, %c0_14] : memref<12x32x32xf32, #tpu.memory_space<vmem>>, vector<1x32x32xf32>
    %46 = vector.shape_cast %45 : vector<1x32x32xf32> to vector<32x32xf32>
    %cst_15 = arith.constant dense<0.000000e+00> : vector<48x32xf32>
    %47 = tpu.matmul %5, %46, %cst_15 {dimension_numbers = #tpu.dot_dimension_numbers<[1], [0], [0], [1], [0, 0, 1, 1], [], []>} : vector<48x32xf32>, vector<32x32xf32>, vector<48x32xf32> -> vector<48x32xf32>
    %48 = vector.broadcast %37 : vector<1x32xf32> to vector<48x32xf32>
    %49 = arith.addf %47, %48 : vector<48x32xf32>
    %c1 = arith.constant 1 : index
    %c0_16 = arith.constant 0 : index
    %c0_17 = arith.constant 0 : index
    %50 = vector.load %arg2[%c1, %c0_16, %c0_17] : memref<12x32x32xf32, #tpu.memory_space<vmem>>, vector<1x32x32xf32>
    %51 = vector.shape_cast %50 : vector<1x32x32xf32> to vector<32x32xf32>
    %cst_18 = arith.constant dense<0.000000e+00> : vector<48x32xf32>
    %52 = tpu.matmul %5, %51, %cst_18 {dimension_numbers = #tpu.dot_dimension_numbers<[1], [0], [0], [1], [0, 0, 1, 1], [], []>} : vector<48x32xf32>, vector<32x32xf32>, vector<48x32xf32> -> vector<48x32xf32>
    %53 = tpu.transpose %52, [1, 0] : vector<48x32xf32> -> vector<32x48xf32>
    %54 = vector.extract_strided_slice %49 {offsets = [0, 0], sizes = [48, 8], strides = [1, 1]} : vector<48x32xf32> to vector<48x8xf32>
    %55 = vector.extract_strided_slice %53 {offsets = [0, 0], sizes = [8, 48], strides = [1, 1]} : vector<32x48xf32> to vector<8x48xf32>
    %c2 = arith.constant 2 : index
    %c0_19 = arith.constant 0 : index
    %c0_20 = arith.constant 0 : index
    %56 = vector.load %arg2[%c2, %c0_19, %c0_20] : memref<12x32x32xf32, #tpu.memory_space<vmem>>, vector<1x32x32xf32>
    %57 = vector.shape_cast %56 : vector<1x32x32xf32> to vector<32x32xf32>
    %cst_21 = arith.constant dense<0.000000e+00> : vector<48x32xf32>
    %58 = tpu.matmul %5, %57, %cst_21 {dimension_numbers = #tpu.dot_dimension_numbers<[1], [0], [0], [1], [0, 0, 1, 1], [], []>} : vector<48x32xf32>, vector<32x32xf32>, vector<48x32xf32> -> vector<48x32xf32>
    %cst_22 = arith.constant dense<0.000000e+00> : vector<48x48xf32>
    %59 = tpu.matmul %54, %55, %cst_22 {dimension_numbers = #tpu.dot_dimension_numbers<[1], [0], [0], [1], [0, 0, 1, 1], [], []>} : vector<48x8xf32>, vector<8x48xf32>, vector<48x48xf32> -> vector<48x48xf32>
    %60 = arith.addf %59, %34 : vector<48x48xf32>
    %cst_23 = arith.constant dense<0xFF800000> : vector<48xf32>
    %61 = vector.multi_reduction <maximumf>, %60, %cst_23 [1] : vector<48x48xf32> to vector<48xf32>
    %62 = vector.shape_cast %61 : vector<48xf32> to vector<48x1xf32>
    %63 = vector.broadcast %62 : vector<48x1xf32> to vector<48x48xf32>
    %64 = arith.subf %60, %63 : vector<48x48xf32>
    %65 = math.exp %64 : vector<48x48xf32>
    %cst_24 = arith.constant dense<0.000000e+00> : vector<48xf32>
    %66 = vector.multi_reduction <add>, %65, %cst_24 [1] : vector<48x48xf32> to vector<48xf32>
    %67 = vector.shape_cast %66 : vector<48xf32> to vector<48x1xf32>
    %68 = tpu.reciprocal %67 {approx = true} : vector<48x1xf32> -> vector<48x1xf32>
    %69 = vector.broadcast %68 : vector<48x1xf32> to vector<48x48xf32>
    %70 = arith.mulf %65, %69 : vector<48x48xf32>
    %cst_25 = arith.constant dense<0.000000e+00> : vector<48x32xf32>
    %71 = tpu.matmul %70, %58, %cst_25 {dimension_numbers = #tpu.dot_dimension_numbers<[1], [0], [0], [1], [0, 0, 1, 1], [], []>} : vector<48x48xf32>, vector<48x32xf32>, vector<48x32xf32> -> vector<48x32xf32>
    %72 = vector.extract_strided_slice %49 {offsets = [0, 8], sizes = [48, 8], strides = [1, 1]} : vector<48x32xf32> to vector<48x8xf32>
    %73 = vector.extract_strided_slice %53 {offsets = [8, 0], sizes = [8, 48], strides = [1, 1]} : vector<32x48xf32> to vector<8x48xf32>
    %c3 = arith.constant 3 : index
    %c0_26 = arith.constant 0 : index
    %c0_27 = arith.constant 0 : index
    %74 = vector.load %arg2[%c3, %c0_26, %c0_27] : memref<12x32x32xf32, #tpu.memory_space<vmem>>, vector<1x32x32xf32>
    %75 = vector.shape_cast %74 : vector<1x32x32xf32> to vector<32x32xf32>
    %cst_28 = arith.constant dense<0.000000e+00> : vector<48x32xf32>
    %76 = tpu.matmul %5, %75, %cst_28 {dimension_numbers = #tpu.dot_dimension_numbers<[1], [0], [0], [1], [0, 0, 1, 1], [], []>} : vector<48x32xf32>, vector<32x32xf32>, vector<48x32xf32> -> vector<48x32xf32>
    %cst_29 = arith.constant dense<0.000000e+00> : vector<48x48xf32>
    %77 = tpu.matmul %72, %73, %cst_29 {dimension_numbers = #tpu.dot_dimension_numbers<[1], [0], [0], [1], [0, 0, 1, 1], [], []>} : vector<48x8xf32>, vector<8x48xf32>, vector<48x48xf32> -> vector<48x48xf32>
    %78 = arith.addf %77, %34 : vector<48x48xf32>
    %cst_30 = arith.constant dense<0xFF800000> : vector<48xf32>
    %79 = vector.multi_reduction <maximumf>, %78, %cst_30 [1] : vector<48x48xf32> to vector<48xf32>
    %80 = vector.shape_cast %79 : vector<48xf32> to vector<48x1xf32>
    %81 = vector.broadcast %80 : vector<48x1xf32> to vector<48x48xf32>
    %82 = arith.subf %78, %81 : vector<48x48xf32>
    %83 = math.exp %82 : vector<48x48xf32>
    %cst_31 = arith.constant dense<0.000000e+00> : vector<48xf32>
    %84 = vector.multi_reduction <add>, %83, %cst_31 [1] : vector<48x48xf32> to vector<48xf32>
    %85 = vector.shape_cast %84 : vector<48xf32> to vector<48x1xf32>
    %86 = tpu.reciprocal %85 {approx = true} : vector<48x1xf32> -> vector<48x1xf32>
    %87 = vector.broadcast %86 : vector<48x1xf32> to vector<48x48xf32>
    %88 = arith.mulf %83, %87 : vector<48x48xf32>
    %cst_32 = arith.constant dense<0.000000e+00> : vector<48x32xf32>
    %89 = tpu.matmul %88, %76, %cst_32 {dimension_numbers = #tpu.dot_dimension_numbers<[1], [0], [0], [1], [0, 0, 1, 1], [], []>} : vector<48x48xf32>, vector<48x32xf32>, vector<48x32xf32> -> vector<48x32xf32>
    %90 = arith.addf %71, %89 : vector<48x32xf32>
    %91 = vector.extract_strided_slice %49 {offsets = [0, 16], sizes = [48, 8], strides = [1, 1]} : vector<48x32xf32> to vector<48x8xf32>
    %92 = vector.extract_strided_slice %53 {offsets = [16, 0], sizes = [8, 48], strides = [1, 1]} : vector<32x48xf32> to vector<8x48xf32>
    %c4 = arith.constant 4 : index
    %c0_33 = arith.constant 0 : index
    %c0_34 = arith.constant 0 : index
    %93 = vector.load %arg2[%c4, %c0_33, %c0_34] : memref<12x32x32xf32, #tpu.memory_space<vmem>>, vector<1x32x32xf32>
    %94 = vector.shape_cast %93 : vector<1x32x32xf32> to vector<32x32xf32>
    %cst_35 = arith.constant dense<0.000000e+00> : vector<48x32xf32>
    %95 = tpu.matmul %5, %94, %cst_35 {dimension_numbers = #tpu.dot_dimension_numbers<[1], [0], [0], [1], [0, 0, 1, 1], [], []>} : vector<48x32xf32>, vector<32x32xf32>, vector<48x32xf32> -> vector<48x32xf32>
    %cst_36 = arith.constant dense<0.000000e+00> : vector<48x48xf32>
    %96 = tpu.matmul %91, %92, %cst_36 {dimension_numbers = #tpu.dot_dimension_numbers<[1], [0], [0], [1], [0, 0, 1, 1], [], []>} : vector<48x8xf32>, vector<8x48xf32>, vector<48x48xf32> -> vector<48x48xf32>
    %97 = arith.addf %96, %34 : vector<48x48xf32>
    %cst_37 = arith.constant dense<0xFF800000> : vector<48xf32>
    %98 = vector.multi_reduction <maximumf>, %97, %cst_37 [1] : vector<48x48xf32> to vector<48xf32>
    %99 = vector.shape_cast %98 : vector<48xf32> to vector<48x1xf32>
    %100 = vector.broadcast %99 : vector<48x1xf32> to vector<48x48xf32>
    %101 = arith.subf %97, %100 : vector<48x48xf32>
    %102 = math.exp %101 : vector<48x48xf32>
    %cst_38 = arith.constant dense<0.000000e+00> : vector<48xf32>
    %103 = vector.multi_reduction <add>, %102, %cst_38 [1] : vector<48x48xf32> to vector<48xf32>
    %104 = vector.shape_cast %103 : vector<48xf32> to vector<48x1xf32>
    %105 = tpu.reciprocal %104 {approx = true} : vector<48x1xf32> -> vector<48x1xf32>
    %106 = vector.broadcast %105 : vector<48x1xf32> to vector<48x48xf32>
    %107 = arith.mulf %102, %106 : vector<48x48xf32>
    %cst_39 = arith.constant dense<0.000000e+00> : vector<48x32xf32>
    %108 = tpu.matmul %107, %95, %cst_39 {dimension_numbers = #tpu.dot_dimension_numbers<[1], [0], [0], [1], [0, 0, 1, 1], [], []>} : vector<48x48xf32>, vector<48x32xf32>, vector<48x32xf32> -> vector<48x32xf32>
    %109 = arith.addf %90, %108 : vector<48x32xf32>
    %110 = vector.extract_strided_slice %49 {offsets = [0, 24], sizes = [48, 8], strides = [1, 1]} : vector<48x32xf32> to vector<48x8xf32>
    %111 = vector.extract_strided_slice %53 {offsets = [24, 0], sizes = [8, 48], strides = [1, 1]} : vector<32x48xf32> to vector<8x48xf32>
    %c5 = arith.constant 5 : index
    %c0_40 = arith.constant 0 : index
    %c0_41 = arith.constant 0 : index
    %112 = vector.load %arg2[%c5, %c0_40, %c0_41] : memref<12x32x32xf32, #tpu.memory_space<vmem>>, vector<1x32x32xf32>
    %113 = vector.shape_cast %112 : vector<1x32x32xf32> to vector<32x32xf32>
    %cst_42 = arith.constant dense<0.000000e+00> : vector<48x32xf32>
    %114 = tpu.matmul %5, %113, %cst_42 {dimension_numbers = #tpu.dot_dimension_numbers<[1], [0], [0], [1], [0, 0, 1, 1], [], []>} : vector<48x32xf32>, vector<32x32xf32>, vector<48x32xf32> -> vector<48x32xf32>
    %cst_43 = arith.constant dense<0.000000e+00> : vector<48x48xf32>
    %115 = tpu.matmul %110, %111, %cst_43 {dimension_numbers = #tpu.dot_dimension_numbers<[1], [0], [0], [1], [0, 0, 1, 1], [], []>} : vector<48x8xf32>, vector<8x48xf32>, vector<48x48xf32> -> vector<48x48xf32>
    %116 = arith.addf %115, %34 : vector<48x48xf32>
    %cst_44 = arith.constant dense<0xFF800000> : vector<48xf32>
    %117 = vector.multi_reduction <maximumf>, %116, %cst_44 [1] : vector<48x48xf32> to vector<48xf32>
    %118 = vector.shape_cast %117 : vector<48xf32> to vector<48x1xf32>
    %119 = vector.broadcast %118 : vector<48x1xf32> to vector<48x48xf32>
    %120 = arith.subf %116, %119 : vector<48x48xf32>
    %121 = math.exp %120 : vector<48x48xf32>
    %cst_45 = arith.constant dense<0.000000e+00> : vector<48xf32>
    %122 = vector.multi_reduction <add>, %121, %cst_45 [1] : vector<48x48xf32> to vector<48xf32>
    %123 = vector.shape_cast %122 : vector<48xf32> to vector<48x1xf32>
    %124 = tpu.reciprocal %123 {approx = true} : vector<48x1xf32> -> vector<48x1xf32>
    %125 = vector.broadcast %124 : vector<48x1xf32> to vector<48x48xf32>
    %126 = arith.mulf %121, %125 : vector<48x48xf32>
    %cst_46 = arith.constant dense<0.000000e+00> : vector<48x32xf32>
    %127 = tpu.matmul %126, %114, %cst_46 {dimension_numbers = #tpu.dot_dimension_numbers<[1], [0], [0], [1], [0, 0, 1, 1], [], []>} : vector<48x48xf32>, vector<48x32xf32>, vector<48x32xf32> -> vector<48x32xf32>
    %128 = arith.addf %109, %127 : vector<48x32xf32>
    %129 = arith.addf %5, %128 : vector<48x32xf32>
    %130 = vector.broadcast %38 : vector<1x32xf32> to vector<48x32xf32>
    %131 = arith.addf %129, %130 : vector<48x32xf32>
    %cst_47 = arith.constant dense<0.000000e+00> : vector<48xf32>
    %132 = vector.multi_reduction <add>, %131, %cst_47 [1] : vector<48x32xf32> to vector<48xf32>
    %133 = vector.shape_cast %132 : vector<48xf32> to vector<48x1xf32>
    %cst_48 = arith.constant 3.200000e+01 : f32
    %134 = vector.broadcast %cst_48 : f32 to vector<48x1xf32>
    %135 = arith.divf %133, %134 : vector<48x1xf32>
    %136 = vector.broadcast %135 : vector<48x1xf32> to vector<48x32xf32>
    %137 = arith.subf %131, %136 : vector<48x32xf32>
    %138 = arith.mulf %137, %137 : vector<48x32xf32>
    %cst_49 = arith.constant dense<0.000000e+00> : vector<48xf32>
    %139 = vector.multi_reduction <add>, %138, %cst_49 [1] : vector<48x32xf32> to vector<48xf32>
    %140 = vector.shape_cast %139 : vector<48xf32> to vector<48x1xf32>
    %cst_50 = arith.constant 3.200000e+01 : f32
    %141 = vector.broadcast %cst_50 : f32 to vector<48x1xf32>
    %142 = arith.divf %140, %141 : vector<48x1xf32>
    %143 = vector.broadcast %135 : vector<48x1xf32> to vector<48x32xf32>
    %144 = arith.subf %131, %143 : vector<48x32xf32>
    %cst_51 = arith.constant 9.99999974E-6 : f32
    %145 = vector.broadcast %cst_51 : f32 to vector<48x1xf32>
    %146 = arith.addf %142, %145 : vector<48x1xf32>
    %147 = math.rsqrt %146 : vector<48x1xf32>
    %148 = vector.broadcast %147 : vector<48x1xf32> to vector<48x32xf32>
    %149 = arith.mulf %144, %148 : vector<48x32xf32>
    %150 = vector.broadcast %41 : vector<1x32xf32> to vector<48x32xf32>
    %151 = arith.mulf %149, %150 : vector<48x32xf32>
    %152 = vector.broadcast %42 : vector<1x32xf32> to vector<48x32xf32>
    %153 = arith.addf %151, %152 : vector<48x32xf32>
    %c0_52 = arith.constant 0 : index
    %c0_53 = arith.constant 0 : index
    %c0_54 = arith.constant 0 : index
    %154 = vector.load %arg3[%c0_52, %c0_53, %c0_54] : memref<2x32x128xf32, #tpu.memory_space<vmem>>, vector<1x32x128xf32>
    %155 = vector.shape_cast %154 : vector<1x32x128xf32> to vector<32x128xf32>
    %cst_55 = arith.constant dense<0.000000e+00> : vector<48x128xf32>
    %156 = tpu.matmul %153, %155, %cst_55 {dimension_numbers = #tpu.dot_dimension_numbers<[1], [0], [0], [1], [0, 0, 1, 1], [], []>} : vector<48x32xf32>, vector<32x128xf32>, vector<48x128xf32> -> vector<48x128xf32>
    %157 = vector.broadcast %39 : vector<1x128xf32> to vector<48x128xf32>
    %158 = arith.addf %156, %157 : vector<48x128xf32>
    %cst_56 = arith.constant 5.000000e-01 : f32
    %159 = vector.broadcast %cst_56 : f32 to vector<48x128xf32>
    %160 = arith.mulf %159, %158 : vector<48x128xf32>
    %cst_57 = arith.constant 4.471500e-02 : f32
    %161 = vector.broadcast %cst_57 : f32 to vector<48x128xf32>
    %162 = arith.mulf %161, %158 : vector<48x128xf32>
    %163 = arith.mulf %162, %158 : vector<48x128xf32>
    %164 = arith.mulf %163, %158 : vector<48x128xf32>
    %165 = arith.addf %158, %164 : vector<48x128xf32>
    %cst_58 = arith.constant 0.797884583 : f32
    %166 = vector.broadcast %cst_58 : f32 to vector<48x128xf32>
    %167 = arith.mulf %166, %165 : vector<48x128xf32>
    %168 = math.tanh %167 : vector<48x128xf32>
    %cst_59 = arith.constant 1.000000e+00 : f32
    %169 = vector.broadcast %cst_59 : f32 to vector<48x128xf32>
    %170 = arith.addf %169, %168 : vector<48x128xf32>
    %171 = arith.mulf %160, %170 : vector<48x128xf32>
    %c0_60 = arith.constant 0 : index
    %c0_61 = arith.constant 0 : index
    %c0_62 = arith.constant 0 : index
    %172 = vector.load %arg4[%c0_60, %c0_61, %c0_62] : memref<2x128x32xf32, #tpu.memory_space<vmem>>, vector<1x128x32xf32>
    %173 = vector.shape_cast %172 : vector<1x128x32xf32> to vector<128x32xf32>
    %cst_63 = arith.constant dense<0.000000e+00> : vector<48x32xf32>
    %174 = tpu.matmul %171, %173, %cst_63 {dimension_numbers = #tpu.dot_dimension_numbers<[1], [0], [0], [1], [0, 0, 1, 1], [], []>} : vector<48x128xf32>, vector<128x32xf32>, vector<48x32xf32> -> vector<48x32xf32>
    %175 = vector.broadcast %40 : vector<1x32xf32> to vector<48x32xf32>
    %176 = arith.addf %174, %175 : vector<48x32xf32>
    %177 = arith.addf %153, %176 : vector<48x32xf32>
    %cst_64 = arith.constant dense<0.000000e+00> : vector<48xf32>
    %178 = vector.multi_reduction <add>, %177, %cst_64 [1] : vector<48x32xf32> to vector<48xf32>
    %179 = vector.shape_cast %178 : vector<48xf32> to vector<48x1xf32>
    %cst_65 = arith.constant 3.200000e+01 : f32
    %180 = vector.broadcast %cst_65 : f32 to vector<48x1xf32>
    %181 = arith.divf %179, %180 : vector<48x1xf32>
    %182 = vector.broadcast %181 : vector<48x1xf32> to vector<48x32xf32>
    %183 = arith.subf %177, %182 : vector<48x32xf32>
    %184 = arith.mulf %183, %183 : vector<48x32xf32>
    %cst_66 = arith.constant dense<0.000000e+00> : vector<48xf32>
    %185 = vector.multi_reduction <add>, %184, %cst_66 [1] : vector<48x32xf32> to vector<48xf32>
    %186 = vector.shape_cast %185 : vector<48xf32> to vector<48x1xf32>
    %cst_67 = arith.constant 3.200000e+01 : f32
    %187 = vector.broadcast %cst_67 : f32 to vector<48x1xf32>
    %188 = arith.divf %186, %187 : vector<48x1xf32>
    %189 = vector.broadcast %181 : vector<48x1xf32> to vector<48x32xf32>
    %190 = arith.subf %177, %189 : vector<48x32xf32>
    %cst_68 = arith.constant 9.99999974E-6 : f32
    %191 = vector.broadcast %cst_68 : f32 to vector<48x1xf32>
    %192 = arith.addf %188, %191 : vector<48x1xf32>
    %193 = math.rsqrt %192 : vector<48x1xf32>
    %194 = vector.broadcast %193 : vector<48x1xf32> to vector<48x32xf32>
    %195 = arith.mulf %190, %194 : vector<48x32xf32>
    %196 = vector.broadcast %43 : vector<1x32xf32> to vector<48x32xf32>
    %197 = arith.mulf %195, %196 : vector<48x32xf32>
    %198 = vector.broadcast %44 : vector<1x32xf32> to vector<48x32xf32>
    %199 = arith.addf %197, %198 : vector<48x32xf32>
    %c1_69 = arith.constant 1 : index
    %c0_70 = arith.constant 0 : index
    %c0_71 = arith.constant 0 : index
    %200 = vector.load %arg5[%c1_69, %c0_70, %c0_71] : memref<2x8x128xf32, #tpu.memory_space<vmem>>, vector<1x8x128xf32>
    %201 = vector.shape_cast %200 : vector<1x8x128xf32> to vector<8x128xf32>
    %202 = vector.extract_strided_slice %201 {offsets = [0, 0], sizes = [1, 32], strides = [1, 1]} : vector<8x128xf32> to vector<1x32xf32>
    %203 = vector.extract_strided_slice %201 {offsets = [1, 0], sizes = [1, 32], strides = [1, 1]} : vector<8x128xf32> to vector<1x32xf32>
    %204 = vector.extract_strided_slice %201 {offsets = [2, 0], sizes = [1, 128], strides = [1, 1]} : vector<8x128xf32> to vector<1x128xf32>
    %205 = vector.extract_strided_slice %201 {offsets = [3, 0], sizes = [1, 32], strides = [1, 1]} : vector<8x128xf32> to vector<1x32xf32>
    %206 = vector.extract_strided_slice %201 {offsets = [4, 0], sizes = [1, 32], strides = [1, 1]} : vector<8x128xf32> to vector<1x32xf32>
    %207 = vector.extract_strided_slice %201 {offsets = [5, 0], sizes = [1, 32], strides = [1, 1]} : vector<8x128xf32> to vector<1x32xf32>
    %208 = vector.extract_strided_slice %201 {offsets = [6, 0], sizes = [1, 32], strides = [1, 1]} : vector<8x128xf32> to vector<1x32xf32>
    %209 = vector.extract_strided_slice %201 {offsets = [7, 0], sizes = [1, 32], strides = [1, 1]} : vector<8x128xf32> to vector<1x32xf32>
    %c6 = arith.constant 6 : index
    %c0_72 = arith.constant 0 : index
    %c0_73 = arith.constant 0 : index
    %210 = vector.load %arg2[%c6, %c0_72, %c0_73] : memref<12x32x32xf32, #tpu.memory_space<vmem>>, vector<1x32x32xf32>
    %211 = vector.shape_cast %210 : vector<1x32x32xf32> to vector<32x32xf32>
    %cst_74 = arith.constant dense<0.000000e+00> : vector<48x32xf32>
    %212 = tpu.matmul %199, %211, %cst_74 {dimension_numbers = #tpu.dot_dimension_numbers<[1], [0], [0], [1], [0, 0, 1, 1], [], []>} : vector<48x32xf32>, vector<32x32xf32>, vector<48x32xf32> -> vector<48x32xf32>
    %213 = vector.broadcast %202 : vector<1x32xf32> to vector<48x32xf32>
    %214 = arith.addf %212, %213 : vector<48x32xf32>
    %c7 = arith.constant 7 : index
    %c0_75 = arith.constant 0 : index
    %c0_76 = arith.constant 0 : index
    %215 = vector.load %arg2[%c7, %c0_75, %c0_76] : memref<12x32x32xf32, #tpu.memory_space<vmem>>, vector<1x32x32xf32>
    %216 = vector.shape_cast %215 : vector<1x32x32xf32> to vector<32x32xf32>
    %cst_77 = arith.constant dense<0.000000e+00> : vector<48x32xf32>
    %217 = tpu.matmul %199, %216, %cst_77 {dimension_numbers = #tpu.dot_dimension_numbers<[1], [0], [0], [1], [0, 0, 1, 1], [], []>} : vector<48x32xf32>, vector<32x32xf32>, vector<48x32xf32> -> vector<48x32xf32>
    %218 = tpu.transpose %217, [1, 0] : vector<48x32xf32> -> vector<32x48xf32>
    %219 = vector.extract_strided_slice %214 {offsets = [0, 0], sizes = [48, 8], strides = [1, 1]} : vector<48x32xf32> to vector<48x8xf32>
    %220 = vector.extract_strided_slice %218 {offsets = [0, 0], sizes = [8, 48], strides = [1, 1]} : vector<32x48xf32> to vector<8x48xf32>
    %c8 = arith.constant 8 : index
    %c0_78 = arith.constant 0 : index
    %c0_79 = arith.constant 0 : index
    %221 = vector.load %arg2[%c8, %c0_78, %c0_79] : memref<12x32x32xf32, #tpu.memory_space<vmem>>, vector<1x32x32xf32>
    %222 = vector.shape_cast %221 : vector<1x32x32xf32> to vector<32x32xf32>
    %cst_80 = arith.constant dense<0.000000e+00> : vector<48x32xf32>
    %223 = tpu.matmul %199, %222, %cst_80 {dimension_numbers = #tpu.dot_dimension_numbers<[1], [0], [0], [1], [0, 0, 1, 1], [], []>} : vector<48x32xf32>, vector<32x32xf32>, vector<48x32xf32> -> vector<48x32xf32>
    %cst_81 = arith.constant dense<0.000000e+00> : vector<48x48xf32>
    %224 = tpu.matmul %219, %220, %cst_81 {dimension_numbers = #tpu.dot_dimension_numbers<[1], [0], [0], [1], [0, 0, 1, 1], [], []>} : vector<48x8xf32>, vector<8x48xf32>, vector<48x48xf32> -> vector<48x48xf32>
    %225 = arith.addf %224, %34 : vector<48x48xf32>
    %cst_82 = arith.constant dense<0xFF800000> : vector<48xf32>
    %226 = vector.multi_reduction <maximumf>, %225, %cst_82 [1] : vector<48x48xf32> to vector<48xf32>
    %227 = vector.shape_cast %226 : vector<48xf32> to vector<48x1xf32>
    %228 = vector.broadcast %227 : vector<48x1xf32> to vector<48x48xf32>
    %229 = arith.subf %225, %228 : vector<48x48xf32>
    %230 = math.exp %229 : vector<48x48xf32>
    %cst_83 = arith.constant dense<0.000000e+00> : vector<48xf32>
    %231 = vector.multi_reduction <add>, %230, %cst_83 [1] : vector<48x48xf32> to vector<48xf32>
    %232 = vector.shape_cast %231 : vector<48xf32> to vector<48x1xf32>
    %233 = tpu.reciprocal %232 {approx = true} : vector<48x1xf32> -> vector<48x1xf32>
    %234 = vector.broadcast %233 : vector<48x1xf32> to vector<48x48xf32>
    %235 = arith.mulf %230, %234 : vector<48x48xf32>
    %cst_84 = arith.constant dense<0.000000e+00> : vector<48x32xf32>
    %236 = tpu.matmul %235, %223, %cst_84 {dimension_numbers = #tpu.dot_dimension_numbers<[1], [0], [0], [1], [0, 0, 1, 1], [], []>} : vector<48x48xf32>, vector<48x32xf32>, vector<48x32xf32> -> vector<48x32xf32>
    %237 = vector.extract_strided_slice %214 {offsets = [0, 8], sizes = [48, 8], strides = [1, 1]} : vector<48x32xf32> to vector<48x8xf32>
    %238 = vector.extract_strided_slice %218 {offsets = [8, 0], sizes = [8, 48], strides = [1, 1]} : vector<32x48xf32> to vector<8x48xf32>
    %c9 = arith.constant 9 : index
    %c0_85 = arith.constant 0 : index
    %c0_86 = arith.constant 0 : index
    %239 = vector.load %arg2[%c9, %c0_85, %c0_86] : memref<12x32x32xf32, #tpu.memory_space<vmem>>, vector<1x32x32xf32>
    %240 = vector.shape_cast %239 : vector<1x32x32xf32> to vector<32x32xf32>
    %cst_87 = arith.constant dense<0.000000e+00> : vector<48x32xf32>
    %241 = tpu.matmul %199, %240, %cst_87 {dimension_numbers = #tpu.dot_dimension_numbers<[1], [0], [0], [1], [0, 0, 1, 1], [], []>} : vector<48x32xf32>, vector<32x32xf32>, vector<48x32xf32> -> vector<48x32xf32>
    %cst_88 = arith.constant dense<0.000000e+00> : vector<48x48xf32>
    %242 = tpu.matmul %237, %238, %cst_88 {dimension_numbers = #tpu.dot_dimension_numbers<[1], [0], [0], [1], [0, 0, 1, 1], [], []>} : vector<48x8xf32>, vector<8x48xf32>, vector<48x48xf32> -> vector<48x48xf32>
    %243 = arith.addf %242, %34 : vector<48x48xf32>
    %cst_89 = arith.constant dense<0xFF800000> : vector<48xf32>
    %244 = vector.multi_reduction <maximumf>, %243, %cst_89 [1] : vector<48x48xf32> to vector<48xf32>
    %245 = vector.shape_cast %244 : vector<48xf32> to vector<48x1xf32>
    %246 = vector.broadcast %245 : vector<48x1xf32> to vector<48x48xf32>
    %247 = arith.subf %243, %246 : vector<48x48xf32>
    %248 = math.exp %247 : vector<48x48xf32>
    %cst_90 = arith.constant dense<0.000000e+00> : vector<48xf32>
    %249 = vector.multi_reduction <add>, %248, %cst_90 [1] : vector<48x48xf32> to vector<48xf32>
    %250 = vector.shape_cast %249 : vector<48xf32> to vector<48x1xf32>
    %251 = tpu.reciprocal %250 {approx = true} : vector<48x1xf32> -> vector<48x1xf32>
    %252 = vector.broadcast %251 : vector<48x1xf32> to vector<48x48xf32>
    %253 = arith.mulf %248, %252 : vector<48x48xf32>
    %cst_91 = arith.constant dense<0.000000e+00> : vector<48x32xf32>
    %254 = tpu.matmul %253, %241, %cst_91 {dimension_numbers = #tpu.dot_dimension_numbers<[1], [0], [0], [1], [0, 0, 1, 1], [], []>} : vector<48x48xf32>, vector<48x32xf32>, vector<48x32xf32> -> vector<48x32xf32>
    %255 = arith.addf %236, %254 : vector<48x32xf32>
    %256 = vector.extract_strided_slice %214 {offsets = [0, 16], sizes = [48, 8], strides = [1, 1]} : vector<48x32xf32> to vector<48x8xf32>
    %257 = vector.extract_strided_slice %218 {offsets = [16, 0], sizes = [8, 48], strides = [1, 1]} : vector<32x48xf32> to vector<8x48xf32>
    %c10 = arith.constant 10 : index
    %c0_92 = arith.constant 0 : index
    %c0_93 = arith.constant 0 : index
    %258 = vector.load %arg2[%c10, %c0_92, %c0_93] : memref<12x32x32xf32, #tpu.memory_space<vmem>>, vector<1x32x32xf32>
    %259 = vector.shape_cast %258 : vector<1x32x32xf32> to vector<32x32xf32>
    %cst_94 = arith.constant dense<0.000000e+00> : vector<48x32xf32>
    %260 = tpu.matmul %199, %259, %cst_94 {dimension_numbers = #tpu.dot_dimension_numbers<[1], [0], [0], [1], [0, 0, 1, 1], [], []>} : vector<48x32xf32>, vector<32x32xf32>, vector<48x32xf32> -> vector<48x32xf32>
    %cst_95 = arith.constant dense<0.000000e+00> : vector<48x48xf32>
    %261 = tpu.matmul %256, %257, %cst_95 {dimension_numbers = #tpu.dot_dimension_numbers<[1], [0], [0], [1], [0, 0, 1, 1], [], []>} : vector<48x8xf32>, vector<8x48xf32>, vector<48x48xf32> -> vector<48x48xf32>
    %262 = arith.addf %261, %34 : vector<48x48xf32>
    %cst_96 = arith.constant dense<0xFF800000> : vector<48xf32>
    %263 = vector.multi_reduction <maximumf>, %262, %cst_96 [1] : vector<48x48xf32> to vector<48xf32>
    %264 = vector.shape_cast %263 : vector<48xf32> to vector<48x1xf32>
    %265 = vector.broadcast %264 : vector<48x1xf32> to vector<48x48xf32>
    %266 = arith.subf %262, %265 : vector<48x48xf32>
    %267 = math.exp %266 : vector<48x48xf32>
    %cst_97 = arith.constant dense<0.000000e+00> : vector<48xf32>
    %268 = vector.multi_reduction <add>, %267, %cst_97 [1] : vector<48x48xf32> to vector<48xf32>
    %269 = vector.shape_cast %268 : vector<48xf32> to vector<48x1xf32>
    %270 = tpu.reciprocal %269 {approx = true} : vector<48x1xf32> -> vector<48x1xf32>
    %271 = vector.broadcast %270 : vector<48x1xf32> to vector<48x48xf32>
    %272 = arith.mulf %267, %271 : vector<48x48xf32>
    %cst_98 = arith.constant dense<0.000000e+00> : vector<48x32xf32>
    %273 = tpu.matmul %272, %260, %cst_98 {dimension_numbers = #tpu.dot_dimension_numbers<[1], [0], [0], [1], [0, 0, 1, 1], [], []>} : vector<48x48xf32>, vector<48x32xf32>, vector<48x32xf32> -> vector<48x32xf32>
    %274 = arith.addf %255, %273 : vector<48x32xf32>
    %275 = vector.extract_strided_slice %214 {offsets = [0, 24], sizes = [48, 8], strides = [1, 1]} : vector<48x32xf32> to vector<48x8xf32>
    %276 = vector.extract_strided_slice %218 {offsets = [24, 0], sizes = [8, 48], strides = [1, 1]} : vector<32x48xf32> to vector<8x48xf32>
    %c11 = arith.constant 11 : index
    %c0_99 = arith.constant 0 : index
    %c0_100 = arith.constant 0 : index
    %277 = vector.load %arg2[%c11, %c0_99, %c0_100] : memref<12x32x32xf32, #tpu.memory_space<vmem>>, vector<1x32x32xf32>
    %278 = vector.shape_cast %277 : vector<1x32x32xf32> to vector<32x32xf32>
    %cst_101 = arith.constant dense<0.000000e+00> : vector<48x32xf32>
    %279 = tpu.matmul %199, %278, %cst_101 {dimension_numbers = #tpu.dot_dimension_numbers<[1], [0], [0], [1], [0, 0, 1, 1], [], []>} : vector<48x32xf32>, vector<32x32xf32>, vector<48x32xf32> -> vector<48x32xf32>
    %cst_102 = arith.constant dense<0.000000e+00> : vector<48x48xf32>
    %280 = tpu.matmul %275, %276, %cst_102 {dimension_numbers = #tpu.dot_dimension_numbers<[1], [0], [0], [1], [0, 0, 1, 1], [], []>} : vector<48x8xf32>, vector<8x48xf32>, vector<48x48xf32> -> vector<48x48xf32>
    %281 = arith.addf %280, %34 : vector<48x48xf32>
    %cst_103 = arith.constant dense<0xFF800000> : vector<48xf32>
    %282 = vector.multi_reduction <maximumf>, %281, %cst_103 [1] : vector<48x48xf32> to vector<48xf32>
    %283 = vector.shape_cast %282 : vector<48xf32> to vector<48x1xf32>
    %284 = vector.broadcast %283 : vector<48x1xf32> to vector<48x48xf32>
    %285 = arith.subf %281, %284 : vector<48x48xf32>
    %286 = math.exp %285 : vector<48x48xf32>
    %cst_104 = arith.constant dense<0.000000e+00> : vector<48xf32>
    %287 = vector.multi_reduction <add>, %286, %cst_104 [1] : vector<48x48xf32> to vector<48xf32>
    %288 = vector.shape_cast %287 : vector<48xf32> to vector<48x1xf32>
    %289 = tpu.reciprocal %288 {approx = true} : vector<48x1xf32> -> vector<48x1xf32>
    %290 = vector.broadcast %289 : vector<48x1xf32> to vector<48x48xf32>
    %291 = arith.mulf %286, %290 : vector<48x48xf32>
    %cst_105 = arith.constant dense<0.000000e+00> : vector<48x32xf32>
    %292 = tpu.matmul %291, %279, %cst_105 {dimension_numbers = #tpu.dot_dimension_numbers<[1], [0], [0], [1], [0, 0, 1, 1], [], []>} : vector<48x48xf32>, vector<48x32xf32>, vector<48x32xf32> -> vector<48x32xf32>
    %293 = arith.addf %274, %292 : vector<48x32xf32>
    %294 = arith.addf %199, %293 : vector<48x32xf32>
    %295 = vector.broadcast %203 : vector<1x32xf32> to vector<48x32xf32>
    %296 = arith.addf %294, %295 : vector<48x32xf32>
    %cst_106 = arith.constant dense<0.000000e+00> : vector<48xf32>
    %297 = vector.multi_reduction <add>, %296, %cst_106 [1] : vector<48x32xf32> to vector<48xf32>
    %298 = vector.shape_cast %297 : vector<48xf32> to vector<48x1xf32>
    %cst_107 = arith.constant 3.200000e+01 : f32
    %299 = vector.broadcast %cst_107 : f32 to vector<48x1xf32>
    %300 = arith.divf %298, %299 : vector<48x1xf32>
    %301 = vector.broadcast %300 : vector<48x1xf32> to vector<48x32xf32>
    %302 = arith.subf %296, %301 : vector<48x32xf32>
    %303 = arith.mulf %302, %302 : vector<48x32xf32>
    %cst_108 = arith.constant dense<0.000000e+00> : vector<48xf32>
    %304 = vector.multi_reduction <add>, %303, %cst_108 [1] : vector<48x32xf32> to vector<48xf32>
    %305 = vector.shape_cast %304 : vector<48xf32> to vector<48x1xf32>
    %cst_109 = arith.constant 3.200000e+01 : f32
    %306 = vector.broadcast %cst_109 : f32 to vector<48x1xf32>
    %307 = arith.divf %305, %306 : vector<48x1xf32>
    %308 = vector.broadcast %300 : vector<48x1xf32> to vector<48x32xf32>
    %309 = arith.subf %296, %308 : vector<48x32xf32>
    %cst_110 = arith.constant 9.99999974E-6 : f32
    %310 = vector.broadcast %cst_110 : f32 to vector<48x1xf32>
    %311 = arith.addf %307, %310 : vector<48x1xf32>
    %312 = math.rsqrt %311 : vector<48x1xf32>
    %313 = vector.broadcast %312 : vector<48x1xf32> to vector<48x32xf32>
    %314 = arith.mulf %309, %313 : vector<48x32xf32>
    %315 = vector.broadcast %206 : vector<1x32xf32> to vector<48x32xf32>
    %316 = arith.mulf %314, %315 : vector<48x32xf32>
    %317 = vector.broadcast %207 : vector<1x32xf32> to vector<48x32xf32>
    %318 = arith.addf %316, %317 : vector<48x32xf32>
    %c1_111 = arith.constant 1 : index
    %c0_112 = arith.constant 0 : index
    %c0_113 = arith.constant 0 : index
    %319 = vector.load %arg3[%c1_111, %c0_112, %c0_113] : memref<2x32x128xf32, #tpu.memory_space<vmem>>, vector<1x32x128xf32>
    %320 = vector.shape_cast %319 : vector<1x32x128xf32> to vector<32x128xf32>
    %cst_114 = arith.constant dense<0.000000e+00> : vector<48x128xf32>
    %321 = tpu.matmul %318, %320, %cst_114 {dimension_numbers = #tpu.dot_dimension_numbers<[1], [0], [0], [1], [0, 0, 1, 1], [], []>} : vector<48x32xf32>, vector<32x128xf32>, vector<48x128xf32> -> vector<48x128xf32>
    %322 = vector.broadcast %204 : vector<1x128xf32> to vector<48x128xf32>
    %323 = arith.addf %321, %322 : vector<48x128xf32>
    %cst_115 = arith.constant 5.000000e-01 : f32
    %324 = vector.broadcast %cst_115 : f32 to vector<48x128xf32>
    %325 = arith.mulf %324, %323 : vector<48x128xf32>
    %cst_116 = arith.constant 4.471500e-02 : f32
    %326 = vector.broadcast %cst_116 : f32 to vector<48x128xf32>
    %327 = arith.mulf %326, %323 : vector<48x128xf32>
    %328 = arith.mulf %327, %323 : vector<48x128xf32>
    %329 = arith.mulf %328, %323 : vector<48x128xf32>
    %330 = arith.addf %323, %329 : vector<48x128xf32>
    %cst_117 = arith.constant 0.797884583 : f32
    %331 = vector.broadcast %cst_117 : f32 to vector<48x128xf32>
    %332 = arith.mulf %331, %330 : vector<48x128xf32>
    %333 = math.tanh %332 : vector<48x128xf32>
    %cst_118 = arith.constant 1.000000e+00 : f32
    %334 = vector.broadcast %cst_118 : f32 to vector<48x128xf32>
    %335 = arith.addf %334, %333 : vector<48x128xf32>
    %336 = arith.mulf %325, %335 : vector<48x128xf32>
    %c1_119 = arith.constant 1 : index
    %c0_120 = arith.constant 0 : index
    %c0_121 = arith.constant 0 : index
    %337 = vector.load %arg4[%c1_119, %c0_120, %c0_121] : memref<2x128x32xf32, #tpu.memory_space<vmem>>, vector<1x128x32xf32>
    %338 = vector.shape_cast %337 : vector<1x128x32xf32> to vector<128x32xf32>
    %cst_122 = arith.constant dense<0.000000e+00> : vector<48x32xf32>
    %339 = tpu.matmul %336, %338, %cst_122 {dimension_numbers = #tpu.dot_dimension_numbers<[1], [0], [0], [1], [0, 0, 1, 1], [], []>} : vector<48x128xf32>, vector<128x32xf32>, vector<48x32xf32> -> vector<48x32xf32>
    %340 = vector.broadcast %205 : vector<1x32xf32> to vector<48x32xf32>
    %341 = arith.addf %339, %340 : vector<48x32xf32>
    %342 = arith.addf %318, %341 : vector<48x32xf32>
    %cst_123 = arith.constant dense<0.000000e+00> : vector<48xf32>
    %343 = vector.multi_reduction <add>, %342, %cst_123 [1] : vector<48x32xf32> to vector<48xf32>
    %344 = vector.shape_cast %343 : vector<48xf32> to vector<48x1xf32>
    %cst_124 = arith.constant 3.200000e+01 : f32
    %345 = vector.broadcast %cst_124 : f32 to vector<48x1xf32>
    %346 = arith.divf %344, %345 : vector<48x1xf32>
    %347 = vector.broadcast %346 : vector<48x1xf32> to vector<48x32xf32>
    %348 = arith.subf %342, %347 : vector<48x32xf32>
    %349 = arith.mulf %348, %348 : vector<48x32xf32>
    %cst_125 = arith.constant dense<0.000000e+00> : vector<48xf32>
    %350 = vector.multi_reduction <add>, %349, %cst_125 [1] : vector<48x32xf32> to vector<48xf32>
    %351 = vector.shape_cast %350 : vector<48xf32> to vector<48x1xf32>
    %cst_126 = arith.constant 3.200000e+01 : f32
    %352 = vector.broadcast %cst_126 : f32 to vector<48x1xf32>
    %353 = arith.divf %351, %352 : vector<48x1xf32>
    %354 = vector.broadcast %346 : vector<48x1xf32> to vector<48x32xf32>
    %355 = arith.subf %342, %354 : vector<48x32xf32>
    %cst_127 = arith.constant 9.99999974E-6 : f32
    %356 = vector.broadcast %cst_127 : f32 to vector<48x1xf32>
    %357 = arith.addf %353, %356 : vector<48x1xf32>
    %358 = math.rsqrt %357 : vector<48x1xf32>
    %359 = vector.broadcast %358 : vector<48x1xf32> to vector<48x32xf32>
    %360 = arith.mulf %355, %359 : vector<48x32xf32>
    %361 = vector.broadcast %208 : vector<1x32xf32> to vector<48x32xf32>
    %362 = arith.mulf %360, %361 : vector<48x32xf32>
    %363 = vector.broadcast %209 : vector<1x32xf32> to vector<48x32xf32>
    %364 = arith.addf %362, %363 : vector<48x32xf32>
    %365 = tpu.iota {dimensions = array<i32: 1>} : vector<2x48xi32>
    %366 = tpu.iota {dimensions = array<i32: 0>} : vector<2x48xi32>
    %c24_i32_128 = arith.constant 24 : i32
    %367 = vector.broadcast %c24_i32_128 : i32 to vector<2x48xi32>
    %368 = arith.muli %366, %367 : vector<2x48xi32>
    %c16_i32 = arith.constant 16 : i32
    %369 = vector.broadcast %c16_i32 : i32 to vector<2x48xi32>
    %370 = arith.addi %368, %369 : vector<2x48xi32>
    %371 = arith.cmpi eq, %365, %370 : vector<2x48xi32>
    %372 = arith.extui %371 : vector<2x48xi1> to vector<2x48xi32>
    %373 = arith.sitofp %372 : vector<2x48xi32> to vector<2x48xf32>
    %cst_129 = arith.constant dense<0.000000e+00> : vector<2x32xf32>
    %374 = tpu.matmul %373, %364, %cst_129 {dimension_numbers = #tpu.dot_dimension_numbers<[1], [0], [0], [1], [0, 0, 1, 1], [], []>} : vector<2x48xf32>, vector<48x32xf32>, vector<2x32xf32> -> vector<2x32xf32>
    %c0_130 = arith.constant 0 : index
    %c0_131 = arith.constant 0 : index
    %375 = vector.load %arg6[%c0_130, %c0_131] : memref<40x4xf32, #tpu.memory_space<vmem>>, vector<40x4xf32>
    %376 = vector.extract_strided_slice %375 {offsets = [0, 0], sizes = [32, 4], strides = [1, 1]} : vector<40x4xf32> to vector<32x4xf32>
    %cst_132 = arith.constant dense<0.000000e+00> : vector<2x4xf32>
    %377 = tpu.matmul %374, %376, %cst_132 {dimension_numbers = #tpu.dot_dimension_numbers<[1], [0], [0], [1], [0, 0, 1, 1], [], []>} : vector<2x32xf32>, vector<32x4xf32>, vector<2x4xf32> -> vector<2x4xf32>
    %378 = vector.extract_strided_slice %375 {offsets = [32, 0], sizes = [1, 4], strides = [1, 1]} : vector<40x4xf32> to vector<1x4xf32>
    %379 = vector.broadcast %378 : vector<1x4xf32> to vector<2x4xf32>
    %380 = arith.addf %377, %379 : vector<2x4xf32>
    %c0_133 = arith.constant 0 : index
    %c0_134 = arith.constant 0 : index
    %381 = vector.load %arg7[%c0_133, %c0_134] : memref<2x4xf32, #tpu.memory_space<vmem>>, vector<2x4xf32>
    tpu.vector_store %arg7[%c0_133, %c0_134], %380 {strides = array<i32>} : memref<2x4xf32, #tpu.memory_space<vmem>>, vector<2x4xf32>,
    return
  }
}

</mosaic_0001>

<llo_original>
// kernel: tpu_custom_call.1
$region0: #{tpu_custom_call.1}
  #allocation0 [shape = 'u32[]', space=smem, size = 0x4, offset = 0x4, fixed_abs, tag = 'smem constant byte address 0x4 - core index']
  #allocation1 [shape = 'u32[72,128]{1,0:T(1,128)}', space=vmem, size = 0x9000, scoped, tag = 'internal scratch']
  %s0 = inlined_call_operand.hbm [shape: f32[8,128], index: 0, kind: input, shape index: {}]
  %s1 = inlined_call_operand.hbm [shape: f32[8,128], index: 1, kind: output, shape index: {}]
  %s2 = sld [smem:[#allocation0]]
  $region18: #{tpu_custom_call.1} parent=0
    _
  %s4 = ssub.s32 1, %s2
  %s5 = scalar_select 0, %s4, %s2
  $region1: #{tpu_custom_call.1} parent=0
    #allocation2 [shape = 'u8[4096]{0}', space=vmem, size = 0x1000, scoped, tag = 'input window, operand 0, single buffered']
    #allocation3 [shape = 's32[1]{0}', space=sflag, size = 0x4, scoped, tag = 'scoped memory for tpu_custom_call.1']
    #allocation4 [shape = 's32[1]{0}', space=sflag, size = 0x4, scoped, tag = 'scoped memory for tpu_custom_call.1']
    #allocation5 [shape = 'u8[4096]{0}', space=vmem, size = 0x1000, scoped, tag = 'output window, operand 0, single buffered']
    %6 = vsyncpa [#allocation3], 0
    %7 = vsyncpa [#allocation4], 0
    // Predicated region
    $region2: #{tpu_custom_call.1} parent=1 // pred_check
      _
    $region3: #{tpu_custom_call.1} parent=1 // pred_check_branch
      %9 = sbr.rel (0) target = $region5
    $region4: #{tpu_custom_call.1} parent=1 // pred_region
      %11 = vsyncadd [#allocation3], 0
      %s13 = sshll.u32 %s0, 4
      %s14 = int_to_ptr.hbm [resolvable:$true] %s13
      %s15 = sshll.u32 [#allocation2], 4
      %s16 = int_to_ptr.vmem [resolvable:$true] %s15
      %18 = dma.hbm_to_vmem [thread:$0]  %s14, 128, %s16, [#allocation3]
    $region5: #{tpu_custom_call.1} parent=1 // pred_fallthru
      _
    // Predicated region
    $region6: #{tpu_custom_call.1} parent=1 // pred_check
      _
    $region7: #{tpu_custom_call.1} parent=1 // pred_check_branch
      %20 = sbr.rel (0) target = $region9
    $region8: #{tpu_custom_call.1} parent=1 // pred_region
      %22 = dma.done [#allocation3], 128
    $region9: #{tpu_custom_call.1} parent=1 // pred_fallthru
      _
    %v23 = vld [vmem:[#allocation2] sm:$0xff]
    %v24 = vmul.f32 %v23, %v23
    %v25 = vmin.f32 16.0, %v24
    %v26 = vmul.f32 %v25, 2.1237322e-06
    %v27 = vadd.f32 %v26, 0.00028619796
    %v28 = vmul.f32 %v25, %v27
    %v29 = vadd.f32 %v28, 0.0036580483
    %v30 = vmul.f32 %v25, %v29
    %v31 = vadd.f32 %v30, 0.05243302
    %v32 = vmul.f32 %v25, %v31
    %v33 = vadd.f32 %v32, 0.18741608
    %v34 = vmul.f32 %v25, %v33
    %v35 = vadd.f32 %v34, 1.1283791
    %v36 = vmul.f32 %v23, %v35
    %v37 = vmul.f32 %v25, 3.8918573e-05
    %v38 = vadd.f32 %v37, 0.001143296
    %v39 = vmul.f32 %v25, %v38
    %v40 = vadd.f32 %v39, 0.014752088
    %v41 = vmul.f32 %v25, %v40
    %v42 = vadd.f32 %v41, 0.112945676
    %v43 = vmul.f32 %v25, %v42
    %v44 = vadd.f32 %v43, 0.4994258
    %v45 = vmul.f32 %v25, %v44
    %v46 = vadd.f32 %v45, 1.0
    %v47 = vrcp.pop %v46
    %v48 = vmul.f32 %v46, %v47
    %v49 = vsub.f32 1.0, %v48
    %v50 = vmul.f32 %v47, %v49
    %v51 = vadd.f32 %v47, %v50
    %vm52 = vweird.f32 %v46
    %vm53 = vweird.f32 %v47
    %vm54 = vmor %vm52, %vm53
    %v55 = vsel %vm54, %v47, %v51
    %v56 = vand.u32 2147483647, %v46
    %vm57 = vcmp.eq.f32.partialorder %v56, 8.507059e+37
    %v58 = vand.u32 %v46, 2147483648
    %v59 = vor.u32 1.1754944e-38, %v58
    %v60 = vsel %vm57, %v59, %v55
    %v61 = vmul.f32 %v36, %v60
    %v62 = vmin.f32 %v61, 1.0
    %v63 = vmax.f32 %v62, -1.0
    %64 = vst [vmem:[#allocation5] sm:$0xff] %v63
    // Predicated region
    $region10: #{tpu_custom_call.1} parent=1 // pred_check
      _
    $region11: #{tpu_custom_call.1} parent=1 // pred_check_branch
      %66 = sbr.rel (0) target = $region13
    $region12: #{tpu_custom_call.1} parent=1 // pred_region
      %68 = vsyncadd [#allocation4], 0
      %s70 = sshll.u32 [#allocation5], 4
      %s71 = int_to_ptr.vmem [resolvable:$true] %s70
      %s72 = sshll.u32 %s1, 4
      %s73 = int_to_ptr.hbm [resolvable:$true] %s72
      %75 = dma.vmem_to_hbm [thread:$0]  %s71, 128, %s73, [#allocation4]
    $region13: #{tpu_custom_call.1} parent=1 // pred_fallthru
      _
    // Predicated region
    $region14: #{tpu_custom_call.1} parent=1 // pred_check
      _
    $region15: #{tpu_custom_call.1} parent=1 // pred_check_branch
      %77 = sbr.rel (0) target = $region17
    $region16: #{tpu_custom_call.1} parent=1 // pred_region
      %79 = dma.done [#allocation4], 128
    $region17: #{tpu_custom_call.1} parent=1 // pred_fallthru
      _
    %80 = vsyncpa [#allocation3], 1
    %81 = vsyncpa [#allocation4], 1

// kernel: ti_mae_forward.1
$region0: #{ti_mae_forward.1}
  #allocation0 [shape = 'u32[]', space=smem, size = 0x4, offset = 0x4, fixed_abs, tag = 'smem constant byte address 0x4 - core index']
  #allocation1 [shape = 'u32[72,128]{1,0:T(1,128)}', space=vmem, size = 0x9000, scoped, tag = 'internal scratch']
  %s0 = inlined_call_operand.vmem [shape: f32[48,16], index: 0, kind: input, shape index: {}]
  %s1 = inlined_call_operand.vmem [shape: f32[64,32], index: 1, kind: input, shape index: {}]
  %s2 = inlined_call_operand.vmem [shape: f32[12,32,32], index: 2, kind: input, shape index: {}]
  %s3 = inlined_call_operand.vmem [shape: f32[2,32,128], index: 3, kind: input, shape index: {}]
  %s4 = inlined_call_operand.vmem [shape: f32[2,128,32], index: 4, kind: input, shape index: {}]
  %s5 = inlined_call_operand.vmem [shape: f32[2,8,128], index: 5, kind: input, shape index: {}]
  %s6 = inlined_call_operand.vmem [shape: f32[40,4], index: 6, kind: input, shape index: {}]
  %s7 = inlined_call_operand.hbm [shape: f32[2,4], index: 7, kind: output, shape index: {}]
  %s8 = sld [smem:[#allocation0]]
  $region38: #{ti_mae_forward.1} parent=0
    _
  %s10 = ssub.s32 1, %s8
  %s11 = scalar_select 0, %s10, %s8
  $region1: #{ti_mae_forward.1} parent=0
    #allocation2 [shape = 'u8[1024]{0}', space=vmem, size = 0x400, scoped, tag = 'output window, operand 0, single buffered']
    #allocation3 [shape = 's32[1]{0}', space=sflag, size = 0x4, scoped, tag = 'scoped memory for ti_mae_forward.1']
    %12 = vsyncpa [#allocation3], 0
    // Predicated region
    $region2: #{ti_mae_forward.1} parent=1 // pred_check
      _
    $region3: #{ti_mae_forward.1} parent=1 // pred_check_branch
      %14 = sbr.rel (0) target = $region5
    $region4: #{ti_mae_forward.1} parent=1 // pred_region
      _
    $region5: #{ti_mae_forward.1} parent=1 // pred_fallthru
      _
    // Predicated region
    $region6: #{ti_mae_forward.1} parent=1 // pred_check
      _
    $region7: #{ti_mae_forward.1} parent=1 // pred_check_branch
      %16 = sbr.rel (0) target = $region9
    $region8: #{ti_mae_forward.1} parent=1 // pred_region
      _
    $region9: #{ti_mae_forward.1} parent=1 // pred_fallthru
      _
    // Predicated region
    $region10: #{ti_mae_forward.1} parent=1 // pred_check
      _
    $region11: #{ti_mae_forward.1} parent=1 // pred_check_branch
      %18 = sbr.rel (0) target = $region13
    $region12: #{ti_mae_forward.1} parent=1 // pred_region
      _
    $region13: #{ti_mae_forward.1} parent=1 // pred_fallthru
      _
    // Predicated region
    $region14: #{ti_mae_forward.1} parent=1 // pred_check
      _
    $region15: #{ti_mae_forward.1} parent=1 // pred_check_branch
      %20 = sbr.rel (0) target = $region17
    $region16: #{ti_mae_forward.1} parent=1 // pred_region
      _
    $region17: #{ti_mae_forward.1} parent=1 // pred_fallthru
      _
    // Predicated region
    $region18: #{ti_mae_forward.1} parent=1 // pred_check
      _
    $region19: #{ti_mae_forward.1} parent=1 // pred_check_branch
      %22 = sbr.rel (0) target = $region21
    $region20: #{ti_mae_forward.1} parent=1 // pred_region
      _
    $region21: #{ti_mae_forward.1} parent=1 // pred_fallthru
      _
    // Predicated region
    $region22: #{ti_mae_forward.1} parent=1 // pred_check
      _
    $region23: #{ti_mae_forward.1} parent=1 // pred_check_branch
      %24 = sbr.rel (0) target = $region25
    $region24: #{ti_mae_forward.1} parent=1 // pred_region
      _
    $region25: #{ti_mae_forward.1} parent=1 // pred_fallthru
      _
    // Predicated region
    $region26: #{ti_mae_forward.1} parent=1 // pred_check
      _
    $region27: #{ti_mae_forward.1} parent=1 // pred_check_branch
      %26 = sbr.rel (0) target = $region29
    $region28: #{ti_mae_forward.1} parent=1 // pred_region
      _
    $region29: #{ti_mae_forward.1} parent=1 // pred_fallthru
      _
    %v27 = vld [vmem:[%s1] sm:$0xff]
    %v28 = vld [vmem:[%s1 + $0x8] sm:$0xff]
    %v29 = vld [vmem:[%s1 + $0x10] sm:$0xff]
    %v30 = vld [vmem:[%s1 + $0x18] sm:$0xff]
    %v31 = vld [vmem:[%s1 + $0x20] sm:$0xff]
    %v32 = vld [vmem:[%s1 + $0x28] sm:$0xff]
    %v33 = vld [vmem:[%s1 + $0x30] sm:$0xff]
    %v34 = vld [vmem:[%s1 + $0x38] sm:$0xff]
    %v35 = vld [vmem:[%s0] sm:$0xff]
    %v36 = vld [vmem:[%s0 + $0x8] sm:$0xff]
    %v37 = vld [vmem:[%s0 + $0x10] sm:$0xff]
    %v38 = vld [vmem:[%s0 + $0x18] sm:$0xff]
    %v39 = vld [vmem:[%s0 + $0x20] sm:$0xff]
    %v40 = vld [vmem:[%s0 + $0x28] sm:$0xff]
    %vm41 = vcmask 130048
    %v43 = vsel %vm41, %v35, 0
    %v46 = vsel %vm41, %v36, 0
    %v49 = vsel %vm41, %v37, 0
    %v52 = vsel %vm41, %v38, 0
    %v55 = vsel %vm41, %v39, 0
    %v58 = vsel %vm41, %v40, 0
    %60 = vmatpush.msra.mxu0 0.0
    %61 = vmatpush.msra.mxu0 0.0
    %62 = vmatpush.msra.mxu0 0.0
    %63 = vmatpush.msra.mxu0 0.0
    %64 = vmatpush.msra.mxu0 0.0
    %65 = vmatpush.msra.mxu0 0.0
    %66 = vmatpush.msra.mxu0 0.0
    %67 = vmatpush.msra.mxu0 0.0
    %68 = vmatpush.msra.mxu0 0.0
    %69 = vmatpush.msra.mxu0 0.0
    %70 = vmatpush.msra.mxu0 0.0
    %71 = vmatpush.msra.mxu0 0.0
    %72 = vmatpush.msra.mxu0 0.0
    %73 = vmatpush.msra.mxu0 0.0
    %74 = vmatpush.msra.mxu0 %v28
    %75 = vmatpush.msra.mxu0 %v27
    %76 = vmatmul.f32.gmra.mxu0 %v43
    %v77 = vpop.f32.mrf.mxu0
    %v78 = vadd.f32 %v29, %v77
    %79 = vmatmul.f32.gmra.mxu0 %v46
    %v80 = vpop.f32.mrf.mxu0
    %v81 = vadd.f32 %v30, %v80
    %82 = vmatmul.f32.gmra.mxu0 %v49
    %v83 = vpop.f32.mrf.mxu0
    %v84 = vadd.f32 %v31, %v83
    %85 = vmatmul.f32.gmra.mxu0 %v52
    %v86 = vpop.f32.mrf.mxu0
    %v87 = vadd.f32 %v32, %v86
    %88 = vmatmul.f32.gmra.mxu0 %v55
    %v89 = vpop.f32.mrf.mxu0
    %v90 = vadd.f32 %v33, %v89
    %91 = vmatmul.f32.gmra.mxu0 %v58
    %v92 = vpop.f32.mrf.mxu0
    %v93 = vadd.f32 %v34, %v92
    %94 = vdwg.mxu0
    %v95 = vlaneseq
    %v96 = vshrl.u32 %v95, 7
    %v97 = vadd.s32 %v96, 8
    %v98 = vadd.s32 %v96, 16
    %v99 = vadd.s32 %v96, 24
    %v100 = vadd.s32 %v96, 32
    %v101 = vadd.s32 %v96, 40
    %v102 = vlaneseq
    %v103 = vand.u32 %v102, 127
    %vm104 = vcmp.ge.s32.totalorder %v96, 0
    %vm105 = vcmp.ge.s32.totalorder %v97, 0
    %vm106 = vcmp.ge.s32.totalorder %v98, 0
    %vm107 = vcmp.ge.s32.totalorder %v99, 0
    %vm108 = vcmp.ge.s32.totalorder %v100, 0
    %vm109 = vcmp.ge.s32.totalorder %v101, 0
    %vm110 = vcmp.lt.s32.totalorder %v96, 24
    %vm111 = vcmp.lt.s32.totalorder %v97, 24
    %vm112 = vcmp.lt.s32.totalorder %v98, 24
    %vm113 = vcmp.lt.s32.totalorder %v99, 24
    %vm114 = vcmp.lt.s32.totalorder %v100, 24
    %vm115 = vcmp.lt.s32.totalorder %v101, 24
    %vm116 = vmand %vm104, %vm110
    %vm117 = vmand %vm105, %vm111
    %vm118 = vmand %vm106, %vm112
    %vm119 = vmand %vm107, %vm113
    %vm120 = vmand %vm108, %vm114
    %vm121 = vmand %vm109, %vm115
    %vm122 = vcmp.ge.s32.totalorder %v103, 0
    %vm123 = vmand %vm116, %vm122
    %vm124 = vmand %vm117, %vm122
    %vm125 = vmand %vm118, %vm122
    %vm126 = vmand %vm119, %vm122
    %vm127 = vmand %vm120, %vm122
    %vm128 = vmand %vm121, %vm122
    %vm129 = vcmp.lt.s32.totalorder %v103, 17
    %vm130 = vmand %vm123, %vm129
    %vm131 = vmand %vm124, %vm129
    %vm132 = vmand %vm125, %vm129
    %vm133 = vmand %vm126, %vm129
    %vm134 = vmand %vm127, %vm129
    %vm135 = vmand %vm128, %vm129
    %v136 = vsel %vm130, 0.0, -1e+30
    %v137 = vsel %vm131, 0.0, -1e+30
    %v138 = vsel %vm132, 0.0, -1e+30
    %v139 = vsel %vm133, 0.0, -1e+30
    %v140 = vsel %vm134, 0.0, -1e+30
    %v141 = vsel %vm135, 0.0, -1e+30
    %vm142 = vcmp.ge.s32.totalorder %v96, 24
    %vm143 = vcmp.ge.s32.totalorder %v97, 24
    %vm144 = vcmp.ge.s32.totalorder %v98, 24
    %vm145 = vcmp.ge.s32.totalorder %v99, 24
    %vm146 = vcmp.ge.s32.totalorder %v100, 24
    %vm147 = vcmp.ge.s32.totalorder %v101, 24
    %vm148 = vcmp.lt.s32.totalorder %v96, 48
    %vm149 = vcmp.lt.s32.totalorder %v97, 48
    %vm150 = vcmp.lt.s32.totalorder %v98, 48
    %vm151 = vcmp.lt.s32.totalorder %v99, 48
    %vm152 = vcmp.lt.s32.totalorder %v100, 48
    %vm153 = vcmp.lt.s32.totalorder %v101, 48
    %vm154 = vmand %vm142, %vm148
    %vm155 = vmand %vm143, %vm149
    %vm156 = vmand %vm144, %vm150
    %vm157 = vmand %vm145, %vm151
    %vm158 = vmand %vm146, %vm152
    %vm159 = vmand %vm147, %vm153
    %vm160 = vcmp.ge.s32.totalorder %v103, 24
    %vm161 = vmand %vm154, %vm160
    %vm162 = vmand %vm155, %vm160
    %vm163 = vmand %vm156, %vm160
    %vm164 = vmand %vm157, %vm160
    %vm165 = vmand %vm158, %vm160
    %vm166 = vmand %vm159, %vm160
    %vm167 = vcmp.lt.s32.totalorder %v103, 41
    %vm168 = vmand %vm161, %vm167
    %vm169 = vmand %vm162, %vm167
    %vm170 = vmand %vm163, %vm167
    %vm171 = vmand %vm164, %vm167
    %vm172 = vmand %vm165, %vm167
    %vm173 = vmand %vm166, %vm167
    %v174 = vsel %vm168, 0.0, %v136
    %v175 = vsel %vm169, 0.0, %v137
    %v176 = vsel %vm170, 0.0, %v138
    %v177 = vsel %vm171, 0.0, %v139
    %v178 = vsel %vm172, 0.0, %v140
    %v179 = vsel %vm173, 0.0, %v141
    %v180 = vld [vmem:[%s5] sm:$0xff]
    %v181 = vld [vmem:[%s2] sm:$0xff]
    %v182 = vld [vmem:[%s2 + $0x8] sm:$0xff]
    %v183 = vld [vmem:[%s2 + $0x10] sm:$0xff]
    %v184 = vld [vmem:[%s2 + $0x18] sm:$0xff]
    %v185 = vperm.slane %v180, 0
    %vm186 = vcmask 261120
    %v188 = vsel %vm186, %v78, 0
    %v191 = vsel %vm186, %v81, 0
    %v194 = vsel %vm186, %v84, 0
    %v197 = vsel %vm186, %v87, 0
    %v200 = vsel %vm186, %v90, 0
    %v203 = vsel %vm186, %v93, 0
    %205 = vmatpush.msra.mxu0 0.0
    %206 = vmatpush.msra.mxu0 0.0
    %207 = vmatpush.msra.mxu0 0.0
    %208 = vmatpush.msra.mxu0 0.0
    %209 = vmatpush.msra.mxu0 0.0
    %210 = vmatpush.msra.mxu0 0.0
    %211 = vmatpush.msra.mxu0 0.0
    %212 = vmatpush.msra.mxu0 0.0
    %213 = vmatpush.msra.mxu0 0.0
    %214 = vmatpush.msra.mxu0 0.0
    %215 = vmatpush.msra.mxu0 0.0
    %216 = vmatpush.msra.mxu0 0.0
    %217 = vmatpush.msra.mxu0 %v184
    %218 = vmatpush.msra.mxu0 %v183
    %219 = vmatpush.msra.mxu0 %v182
    %220 = vmatpush.msra.mxu0 %v181
    %221 = vmatmul.f32.gmra.mxu0 %v188
    %v222 = vpop.f32.mrf.mxu0
    %v223 = vadd.f32 %v185, %v222
    %224 = vmatmul.f32.gmra.mxu0 %v191
    %v225 = vpop.f32.mrf.mxu0
    %v226 = vadd.f32 %v185, %v225
    %227 = vmatmul.f32.gmra.mxu0 %v194
    %v228 = vpop.f32.mrf.mxu0
    %v229 = vadd.f32 %v185, %v228
    %230 = vmatmul.f32.gmra.mxu0 %v197
    %v231 = vpop.f32.mrf.mxu0
    %v232 = vadd.f32 %v185, %v231
    %233 = vmatmul.f32.gmra.mxu0 %v200
    %v234 = vpop.f32.mrf.mxu0
    %v235 = vadd.f32 %v185, %v234
    %236 = vmatmul.f32.gmra.mxu0 %v203
    %v237 = vpop.f32.mrf.mxu0
    %v238 = vadd.f32 %v185, %v237
    %239 = vdwg.mxu0
    %s240 = scalar_lea.vmem %s2, 32
    %v241 = vld [vmem:[%s240] sm:$0xff]
    %v242 = vld [vmem:[%s240 + $0x8] sm:$0xff]
    %v243 = vld [vmem:[%s240 + $0x10] sm:$0xff]
    %v244 = vld [vmem:[%s240 + $0x18] sm:$0xff]
    %245 = vmatpush.msra.mxu0 0.0
    %246 = vmatpush.msra.mxu0 0.0
    %247 = vmatpush.msra.mxu0 0.0
    %248 = vmatpush.msra.mxu0 0.0
    %249 = vmatpush.msra.mxu0 0.0
    %250 = vmatpush.msra.mxu0 0.0
    %251 = vmatpush.msra.mxu0 0.0
    %252 = vmatpush.msra.mxu0 0.0
    %253 = vmatpush.msra.mxu0 0.0
    %254 = vmatpush.msra.mxu0 0.0
    %255 = vmatpush.msra.mxu0 0.0
    %256 = vmatpush.msra.mxu0 0.0
    %257 = vmatpush.msra.mxu0 %v244
    %258 = vmatpush.msra.mxu0 %v243
    %259 = vmatpush.msra.mxu0 %v242
    %260 = vmatpush.msra.mxu0 %v241
    %261 = vmatmul.f32.gmra.mxu0 %v188
    %v262 = vpop.f32.mrf.mxu0
    %v263 = vadd.f32 0.0, %v262
    %264 = vmatmul.f32.gmra.mxu0 %v191
    %v265 = vpop.f32.mrf.mxu0
    %v266 = vadd.f32 0.0, %v265
    %267 = vmatmul.f32.gmra.mxu0 %v194
    %v268 = vpop.f32.mrf.mxu0
    %v269 = vadd.f32 0.0, %v268
    %270 = vmatmul.f32.gmra.mxu0 %v197
    %v271 = vpop.f32.mrf.mxu0
    %v272 = vadd.f32 0.0, %v271
    %273 = vmatmul.f32.gmra.mxu0 %v200
    %v274 = vpop.f32.mrf.mxu0
    %v275 = vadd.f32 0.0, %v274
    %276 = vmatmul.f32.gmra.mxu0 %v203
    %v277 = vpop.f32.mrf.mxu0
    %v278 = vadd.f32 0.0, %v277
    %279 = vdwg.mxu0
    %s280 = scalar_lea.vmem %s2, 64
    %v281 = vld [vmem:[%s280] sm:$0xff]
    %v282 = vld [vmem:[%s280 + $0x8] sm:$0xff]
    %v283 = vld [vmem:[%s280 + $0x10] sm:$0xff]
    %v284 = vld [vmem:[%s280 + $0x18] sm:$0xff]
    %285 = vmatpush.msra.mxu0 0.0
    %286 = vmatpush.msra.mxu0 0.0
    %287 = vmatpush.msra.mxu0 0.0
    %288 = vmatpush.msra.mxu0 0.0
    %289 = vmatpush.msra.mxu0 0.0
    %290 = vmatpush.msra.mxu0 0.0
    %291 = vmatpush.msra.mxu0 0.0
    %292 = vmatpush.msra.mxu0 0.0
    %293 = vmatpush.msra.mxu0 0.0
    %294 = vmatpush.msra.mxu0 0.0
    %295 = vmatpush.msra.mxu0 0.0
    %296 = vmatpush.msra.mxu0 0.0
    %297 = vmatpush.msra.mxu0 %v284
    %298 = vmatpush.msra.mxu0 %v283
    %299 = vmatpush.msra.mxu0 %v282
    %300 = vmatpush.msra.mxu0 %v281
    %301 = vmatmul.f32.gmra.mxu0 %v188
    %v302 = vpop.f32.mrf.mxu0
    %v303 = vadd.f32 0.0, %v302
    %304 = vmatmul.f32.gmra.mxu0 %v191
    %v305 = vpop.f32.mrf.mxu0
    %v306 = vadd.f32 0.0, %v305
    %307 = vmatmul.f32.gmra.mxu0 %v194
    %v308 = vpop.f32.mrf.mxu0
    %v309 = vadd.f32 0.0, %v308
    %310 = vmatmul.f32.gmra.mxu0 %v197
    %v311 = vpop.f32.mrf.mxu0
    %v312 = vadd.f32 0.0, %v311
    %313 = vmatmul.f32.gmra.mxu0 %v200
    %v314 = vpop.f32.mrf.mxu0
    %v315 = vadd.f32 0.0, %v314
    %316 = vmatmul.f32.gmra.mxu0 %v203
    %v317 = vpop.f32.mrf.mxu0
    %v318 = vadd.f32 0.0, %v317
    %319 = vdwg.mxu0
    %vm320 = vcmask 64512
    %v322 = vsel %vm320, %v223, 0
    %v325 = vsel %vm320, %v226, 0
    %v328 = vsel %vm320, %v229, 0
    %v331 = vsel %vm320, %v232, 0
    %v334 = vsel %vm320, %v235, 0
    %v337 = vsel %vm320, %v238, 0
    %v340 = vsel %vm320, %v263, 0
    %v343 = vsel %vm320, %v266, 0
    %v346 = vsel %vm320, %v269, 0
    %v349 = vsel %vm320, %v272, 0
    %v352 = vsel %vm320, %v275, 0
    %v355 = vsel %vm320, %v278, 0
    %357 = vmatpush.xpose.msra.mxu0 0.0
    %358 = vmatpush.xpose.msra.mxu0 0.0
    %359 = vmatpush.xpose.msra.mxu0 0.0
    %360 = vmatpush.xpose.msra.mxu0 0.0
    %361 = vmatpush.xpose.msra.mxu0 0.0
    %362 = vmatpush.xpose.msra.mxu0 0.0
    %363 = vmatpush.xpose.msra.mxu0 0.0
    %364 = vmatpush.xpose.msra.mxu0 0.0
    %365 = vmatpush.xpose.msra.mxu0 0.0
    %366 = vmatpush.xpose.msra.mxu0 0.0
    %367 = vmatpush.xpose.msra.mxu0 %v355
    %368 = vmatpush.xpose.msra.mxu0 %v352
    %369 = vmatpush.xpose.msra.mxu0 %v349
    %370 = vmatpush.xpose.msra.mxu0 %v346
    %371 = vmatpush.xpose.msra.mxu0 %v343
    %372 = vmatpush.xpose.msra.mxu0 %v340
    %373 = vmatmul.f32.gmra.mxu0 %v322
    %v374 = vpop.f32.mrf.mxu0
    %v375 = vadd.f32 %v174, %v374
    %376 = vmatmul.f32.gmra.mxu0 %v325
    %v377 = vpop.f32.mrf.mxu0
    %v378 = vadd.f32 %v175, %v377
    %379 = vmatmul.f32.gmra.mxu0 %v328
    %v380 = vpop.f32.mrf.mxu0
    %v381 = vadd.f32 %v176, %v380
    %382 = vmatmul.f32.gmra.mxu0 %v331
    %v383 = vpop.f32.mrf.mxu0
    %v384 = vadd.f32 %v177, %v383
    %385 = vmatmul.f32.gmra.mxu0 %v334
    %v386 = vpop.f32.mrf.mxu0
    %v387 = vadd.f32 %v178, %v386
    %388 = vmatmul.f32.gmra.mxu0 %v337
    %v389 = vpop.f32.mrf.mxu0
    %v390 = vadd.f32 %v179, %v389
    %391 = vdwg.mxu0
    %vm392 = vcmask 392192
    %v393 = vsel %vm392, %v375, -inf
    %394 = vmax.xlane.f32.xlu0 %v393
    %v395 = vpop.xlane.xlu0 %394
    %v396 = vsel %vm392, %v378, -inf
    %397 = vmax.xlane.f32.xlu0 %v396
    %v398 = vpop.xlane.xlu0 %397
    %v399 = vsel %vm392, %v381, -inf
    %400 = vmax.xlane.f32.xlu0 %v399
    %v401 = vpop.xlane.xlu0 %400
    %v402 = vsel %vm392, %v384, -inf
    %403 = vmax.xlane.f32.xlu0 %v402
    %v404 = vpop.xlane.xlu0 %403
    %v405 = vsel %vm392, %v387, -inf
    %406 = vmax.xlane.f32.xlu0 %v405
    %v407 = vpop.xlane.xlu0 %406
    %v408 = vsel %vm392, %v390, -inf
    %409 = vmax.xlane.f32.xlu0 %v408
    %v410 = vpop.xlane.xlu0 %409
    %v411 = vsub.f32 %v375, %v395
    %v412 = vsub.f32 %v378, %v398
    %v413 = vsub.f32 %v381, %v401
    %v414 = vsub.f32 %v384, %v404
    %v415 = vsub.f32 %v387, %v407
    %v416 = vsub.f32 %v390, %v410
    %v417 = vmul.f32 %v411, 1.442695
    %v418 = vpow.pop %v417
    %v419 = vmul.f32 %v412, 1.442695
    %v420 = vpow.pop %v419
    %v421 = vmul.f32 %v413, 1.442695
    %v422 = vpow.pop %v421
    %v423 = vmul.f32 %v414, 1.442695
    %v424 = vpow.pop %v423
    %v425 = vmul.f32 %v415, 1.442695
    %v426 = vpow.pop %v425
    %v427 = vmul.f32 %v416, 1.442695
    %v428 = vpow.pop %v427
    %v429 = vsel %vm392, %v418, 0.0
    %430 = vadd.xlane.f32.xlu0 %v429
    %v431 = vpop.xlane.xlu0 %430
    %v432 = vsel %vm392, %v420, 0.0
    %433 = vadd.xlane.f32.xlu0 %v432
    %v434 = vpop.xlane.xlu0 %433
    %v435 = vsel %vm392, %v422, 0.0
    %436 = vadd.xlane.f32.xlu0 %v435
    %v437 = vpop.xlane.xlu0 %436
    %v438 = vsel %vm392, %v424, 0.0
    %439 = vadd.xlane.f32.xlu0 %v438
    %v440 = vpop.xlane.xlu0 %439
    %v441 = vsel %vm392, %v426, 0.0
    %442 = vadd.xlane.f32.xlu0 %v441
    %v443 = vpop.xlane.xlu0 %442
    %v444 = vsel %vm392, %v428, 0.0
    %445 = vadd.xlane.f32.xlu0 %v444
    %v446 = vpop.xlane.xlu0 %445
    %v447 = vrcp.pop %v431
    %v448 = vrcp.pop %v434
    %v449 = vrcp.pop %v437
    %v450 = vrcp.pop %v440
    %v451 = vrcp.pop %v443
    %v452 = vrcp.pop %v446
    %v453 = vmul.f32 %v418, %v447
    %v454 = vmul.f32 %v420, %v448
    %v455 = vmul.f32 %v422, %v449
    %v456 = vmul.f32 %v424, %v450
    %v457 = vmul.f32 %v426, %v451
    %v458 = vmul.f32 %v428, %v452
    %s459 = scalar_lea.vmem %s2, 96
    %v460 = vld [vmem:[%s459] sm:$0xff]
    %v461 = vld [vmem:[%s459 + $0x8] sm:$0xff]
    %v462 = vld [vmem:[%s459 + $0x10] sm:$0xff]
    %v463 = vld [vmem:[%s459 + $0x18] sm:$0xff]
    %464 = vmatpush.msra.mxu0 0.0
    %465 = vmatpush.msra.mxu0 0.0
    %466 = vmatpush.msra.mxu0 0.0
    %467 = vmatpush.msra.mxu0 0.0
    %468 = vmatpush.msra.mxu0 0.0
    %469 = vmatpush.msra.mxu0 0.0
    %470 = vmatpush.msra.mxu0 0.0
    %471 = vmatpush.msra.mxu0 0.0
    %472 = vmatpush.msra.mxu0 0.0
    %473 = vmatpush.msra.mxu0 0.0
    %474 = vmatpush.msra.mxu0 0.0
    %475 = vmatpush.msra.mxu0 0.0
    %476 = vmatpush.msra.mxu0 %v463
    %477 = vmatpush.msra.mxu0 %v462
    %478 = vmatpush.msra.mxu0 %v461
    %479 = vmatpush.msra.mxu0 %v460
    %480 = vmatmul.f32.gmra.mxu0 %v188
    %v481 = vpop.f32.mrf.mxu0
    %v482 = vadd.f32 0.0, %v481
    %483 = vmatmul.f32.gmra.mxu0 %v191
    %v484 = vpop.f32.mrf.mxu0
    %v485 = vadd.f32 0.0, %v484
    %486 = vmatmul.f32.gmra.mxu0 %v194
    %v487 = vpop.f32.mrf.mxu0
    %v488 = vadd.f32 0.0, %v487
    %489 = vmatmul.f32.gmra.mxu0 %v197
    %v490 = vpop.f32.mrf.mxu0
    %v491 = vadd.f32 0.0, %v490
    %492 = vmatmul.f32.gmra.mxu0 %v200
    %v493 = vpop.f32.mrf.mxu0
    %v494 = vadd.f32 0.0, %v493
    %495 = vmatmul.f32.gmra.mxu0 %v203
    %v496 = vpop.f32.mrf.mxu0
    %v497 = vadd.f32 0.0, %v496
    %498 = vdwg.mxu0
    %499 = vrot.lane.b32.xlu0 %v223, 120
    %v500 = vpop.permute.xlu0 %499
    %501 = vrot.lane.b32.xlu0 %v226, 120
    %v502 = vpop.permute.xlu0 %501
    %503 = vrot.lane.b32.xlu0 %v229, 120
    %v504 = vpop.permute.xlu0 %503
    %505 = vrot.lane.b32.xlu0 %v232, 120
    %v506 = vpop.permute.xlu0 %505
    %507 = vrot.lane.b32.xlu0 %v235, 120
    %v508 = vpop.permute.xlu0 %507
    %509 = vrot.lane.b32.xlu0 %v238, 120
    %v510 = vpop.permute.xlu0 %509
    %511 = vrot.lane.b32.xlu0 %v263, 120
    %v512 = vpop.permute.xlu0 %511
    %513 = vrot.lane.b32.xlu0 %v266, 120
    %v514 = vpop.permute.xlu0 %513
    %515 = vrot.lane.b32.xlu0 %v269, 120
    %v516 = vpop.permute.xlu0 %515
    %517 = vrot.lane.b32.xlu0 %v272, 120
    %v518 = vpop.permute.xlu0 %517
    %519 = vrot.lane.b32.xlu0 %v275, 120
    %v520 = vpop.permute.xlu0 %519
    %521 = vrot.lane.b32.xlu0 %v278, 120
    %v522 = vpop.permute.xlu0 %521
    %v523 = vsel %vm320, %v500, 0
    %v525 = vsel %vm320, %v502, 0
    %v527 = vsel %vm320, %v504, 0
    %v529 = vsel %vm320, %v506, 0
    %v531 = vsel %vm320, %v508, 0
    %v533 = vsel %vm320, %v510, 0
    %v535 = vsel %vm320, %v512, 0
    %v537 = vsel %vm320, %v514, 0
    %v539 = vsel %vm320, %v516, 0
    %v541 = vsel %vm320, %v518, 0
    %v543 = vsel %vm320, %v520, 0
    %v545 = vsel %vm320, %v522, 0
    %547 = vmatpush.xpose.msra.mxu0 0.0
    %548 = vmatpush.xpose.msra.mxu0 0.0
    %549 = vmatpush.xpose.msra.mxu0 0.0
    %550 = vmatpush.xpose.msra.mxu0 0.0
    %551 = vmatpush.xpose.msra.mxu0 0.0
    %552 = vmatpush.xpose.msra.mxu0 0.0
    %553 = vmatpush.xpose.msra.mxu0 0.0
    %554 = vmatpush.xpose.msra.mxu0 0.0
    %555 = vmatpush.xpose.msra.mxu0 0.0
    %556 = vmatpush.xpose.msra.mxu0 0.0
    %557 = vmatpush.xpose.msra.mxu0 %v545
    %558 = vmatpush.xpose.msra.mxu0 %v543
    %559 = vmatpush.xpose.msra.mxu0 %v541
    %560 = vmatpush.xpose.msra.mxu0 %v539
    %561 = vmatpush.xpose.msra.mxu0 %v537
    %562 = vmatpush.xpose.msra.mxu0 %v535
    %563 = vmatmul.f32.gmra.mxu0 %v523
    %v564 = vpop.f32.mrf.mxu0
    %v565 = vadd.f32 %v174, %v564
    %566 = vmatmul.f32.gmra.mxu0 %v525
    %v567 = vpop.f32.mrf.mxu0
    %v568 = vadd.f32 %v175, %v567
    %569 = vmatmul.f32.gmra.mxu0 %v527
    %v570 = vpop.f32.mrf.mxu0
    %v571 = vadd.f32 %v176, %v570
    %572 = vmatmul.f32.gmra.mxu0 %v529
    %v573 = vpop.f32.mrf.mxu0
    %v574 = vadd.f32 %v177, %v573
    %575 = vmatmul.f32.gmra.mxu0 %v531
    %v576 = vpop.f32.mrf.mxu0
    %v577 = vadd.f32 %v178, %v576
    %578 = vmatmul.f32.gmra.mxu0 %v533
    %v579 = vpop.f32.mrf.mxu0
    %v580 = vadd.f32 %v179, %v579
    %581 = vdwg.mxu0
    %v582 = vsel %vm392, %v565, -inf
    %583 = vmax.xlane.f32.xlu0 %v582
    %v584 = vpop.xlane.xlu0 %583
    %v585 = vsel %vm392, %v568, -inf
    %586 = vmax.xlane.f32.xlu0 %v585
    %v587 = vpop.xlane.xlu0 %586
    %v588 = vsel %vm392, %v571, -inf
    %589 = vmax.xlane.f32.xlu0 %v588
    %v590 = vpop.xlane.xlu0 %589
    %v591 = vsel %vm392, %v574, -inf
    %592 = vmax.xlane.f32.xlu0 %v591
    %v593 = vpop.xlane.xlu0 %592
    %v594 = vsel %vm392, %v577, -inf
    %595 = vmax.xlane.f32.xlu0 %v594
    %v596 = vpop.xlane.xlu0 %595
    %v597 = vsel %vm392, %v580, -inf
    %598 = vmax.xlane.f32.xlu0 %v597
    %v599 = vpop.xlane.xlu0 %598
    %v600 = vsub.f32 %v565, %v584
    %v601 = vsub.f32 %v568, %v587
    %v602 = vsub.f32 %v571, %v590
    %v603 = vsub.f32 %v574, %v593
    %v604 = vsub.f32 %v577, %v596
    %v605 = vsub.f32 %v580, %v599
    %v606 = vmul.f32 %v600, 1.442695
    %v607 = vpow.pop %v606
    %v608 = vmul.f32 %v601, 1.442695
    %v609 = vpow.pop %v608
    %v610 = vmul.f32 %v602, 1.442695
    %v611 = vpow.pop %v610
    %v612 = vmul.f32 %v603, 1.442695
    %v613 = vpow.pop %v612
    %v614 = vmul.f32 %v604, 1.442695
    %v615 = vpow.pop %v614
    %v616 = vmul.f32 %v605, 1.442695
    %v617 = vpow.pop %v616
    %v618 = vsel %vm392, %v607, 0.0
    %619 = vadd.xlane.f32.xlu0 %v618
    %v620 = vpop.xlane.xlu0 %619
    %v621 = vsel %vm392, %v609, 0.0
    %622 = vadd.xlane.f32.xlu0 %v621
    %v623 = vpop.xlane.xlu0 %622
    %v624 = vsel %vm392, %v611, 0.0
    %625 = vadd.xlane.f32.xlu0 %v624
    %v626 = vpop.xlane.xlu0 %625
    %v627 = vsel %vm392, %v613, 0.0
    %628 = vadd.xlane.f32.xlu0 %v627
    %v629 = vpop.xlane.xlu0 %628
    %v630 = vsel %vm392, %v615, 0.0
    %631 = vadd.xlane.f32.xlu0 %v630
    %v632 = vpop.xlane.xlu0 %631
    %v633 = vsel %vm392, %v617, 0.0
    %634 = vadd.xlane.f32.xlu0 %v633
    %v635 = vpop.xlane.xlu0 %634
    %v636 = vrcp.pop %v620
    %v637 = vrcp.pop %v623
    %v638 = vrcp.pop %v626
    %v639 = vrcp.pop %v629
    %v640 = vrcp.pop %v632
    %v641 = vrcp.pop %v635
    %v642 = vmul.f32 %v607, %v636
    %v643 = vmul.f32 %v609, %v637
    %v644 = vmul.f32 %v611, %v638
    %v645 = vmul.f32 %v613, %v639
    %v646 = vmul.f32 %v615, %v640
    %v647 = vmul.f32 %v617, %v641
    %v649 = vsel %vm392, %v642, 0
    %v652 = vsel %vm392, %v643, 0
    %v655 = vsel %vm392, %v644, 0
    %v658 = vsel %vm392, %v645, 0
    %v661 = vsel %vm392, %v646, 0
    %v664 = vsel %vm392, %v647, 0
    %666 = vmatpush.msra.mxu0 0.0
    %667 = vmatpush.msra.mxu0 0.0
    %668 = vmatpush.msra.mxu0 0.0
    %669 = vmatpush.msra.mxu0 0.0
    %670 = vmatpush.msra.mxu0 0.0
    %671 = vmatpush.msra.mxu0 0.0
    %672 = vmatpush.msra.mxu0 0.0
    %673 = vmatpush.msra.mxu0 0.0
    %674 = vmatpush.msra.mxu0 0.0
    %675 = vmatpush.msra.mxu0 0.0
    %676 = vmatpush.msra.mxu0 %v497
    %677 = vmatpush.msra.mxu0 %v494
    %678 = vmatpush.msra.mxu0 %v491
    %679 = vmatpush.msra.mxu0 %v488
    %680 = vmatpush.msra.mxu0 %v485
    %681 = vmatpush.msra.mxu0 %v482
    %682 = vmatmul.f32.gmra.mxu0 %v649
    %v683 = vpop.f32.mrf.mxu0
    %v684 = vadd.f32 0.0, %v683
    %685 = vmatmul.f32.gmra.mxu0 %v652
    %v686 = vpop.f32.mrf.mxu0
    %v687 = vadd.f32 0.0, %v686
    %688 = vmatmul.f32.gmra.mxu0 %v655
    %v689 = vpop.f32.mrf.mxu0
    %v690 = vadd.f32 0.0, %v689
    %691 = vmatmul.f32.gmra.mxu0 %v658
    %v692 = vpop.f32.mrf.mxu0
    %v693 = vadd.f32 0.0, %v692
    %694 = vmatmul.f32.gmra.mxu0 %v661
    %v695 = vpop.f32.mrf.mxu0
    %v696 = vadd.f32 0.0, %v695
    %697 = vmatmul.f32.gmra.mxu0 %v664
    %v698 = vpop.f32.mrf.mxu0
    %v699 = vadd.f32 0.0, %v698
    %700 = vdwg.mxu0
    %v702 = vsel %vm392, %v453, 0
    %v705 = vsel %vm392, %v454, 0
    %v708 = vsel %vm392, %v455, 0
    %v711 = vsel %vm392, %v456, 0
    %v714 = vsel %vm392, %v457, 0
    %v717 = vsel %vm392, %v458, 0
    %719 = vmatpush.msra.mxu0 0.0
    %720 = vmatpush.msra.mxu0 0.0
    %721 = vmatpush.msra.mxu0 0.0
    %722 = vmatpush.msra.mxu0 0.0
    %723 = vmatpush.msra.mxu0 0.0
    %724 = vmatpush.msra.mxu0 0.0
    %725 = vmatpush.msra.mxu0 0.0
    %726 = vmatpush.msra.mxu0 0.0
    %727 = vmatpush.msra.mxu0 0.0
    %728 = vmatpush.msra.mxu0 0.0
    %729 = vmatpush.msra.mxu0 %v318
    %730 = vmatpush.msra.mxu0 %v315
    %731 = vmatpush.msra.mxu0 %v312
    %732 = vmatpush.msra.mxu0 %v309
    %733 = vmatpush.msra.mxu0 %v306
    %734 = vmatpush.msra.mxu0 %v303
    %735 = vmatmul.f32.gmra.mxu0 %v702
    %v736 = vpop.f32.mrf.mxu0
    %v737 = vadd.f32 %v684, %v736
    %738 = vmatmul.f32.gmra.mxu0 %v705
    %v739 = vpop.f32.mrf.mxu0
    %v740 = vadd.f32 %v687, %v739
    %741 = vmatmul.f32.gmra.mxu0 %v708
    %v742 = vpop.f32.mrf.mxu0
    %v743 = vadd.f32 %v690, %v742
    %744 = vmatmul.f32.gmra.mxu0 %v711
    %v745 = vpop.f32.mrf.mxu0
    %v746 = vadd.f32 %v693, %v745
    %747 = vmatmul.f32.gmra.mxu0 %v714
    %v748 = vpop.f32.mrf.mxu0
    %v749 = vadd.f32 %v696, %v748
    %750 = vmatmul.f32.gmra.mxu0 %v717
    %v751 = vpop.f32.mrf.mxu0
    %v752 = vadd.f32 %v699, %v751
    %753 = vdwg.mxu0
    %s754 = scalar_lea.vmem %s2, 128
    %v755 = vld [vmem:[%s754] sm:$0xff]
    %v756 = vld [vmem:[%s754 + $0x8] sm:$0xff]
    %v757 = vld [vmem:[%s754 + $0x10] sm:$0xff]
    %v758 = vld [vmem:[%s754 + $0x18] sm:$0xff]
    %759 = vmatpush.msra.mxu0 0.0
    %760 = vmatpush.msra.mxu0 0.0
    %761 = vmatpush.msra.mxu0 0.0
    %762 = vmatpush.msra.mxu0 0.0
    %763 = vmatpush.msra.mxu0 0.0
    %764 = vmatpush.msra.mxu0 0.0
    %765 = vmatpush.msra.mxu0 0.0
    %766 = vmatpush.msra.mxu0 0.0
    %767 = vmatpush.msra.mxu0 0.0
    %768 = vmatpush.msra.mxu0 0.0
    %769 = vmatpush.msra.mxu0 0.0
    %770 = vmatpush.msra.mxu0 0.0
    %771 = vmatpush.msra.mxu0 %v758
    %772 = vmatpush.msra.mxu0 %v757
    %773 = vmatpush.msra.mxu0 %v756
    %774 = vmatpush.msra.mxu0 %v755
    %775 = vmatmul.f32.gmra.mxu0 %v188
    %v776 = vpop.f32.mrf.mxu0
    %v777 = vadd.f32 0.0, %v776
    %778 = vmatmul.f32.gmra.mxu0 %v191
    %v779 = vpop.f32.mrf.mxu0
    %v780 = vadd.f32 0.0, %v779
    %781 = vmatmul.f32.gmra.mxu0 %v194
    %v782 = vpop.f32.mrf.mxu0
    %v783 = vadd.f32 0.0, %v782
    %784 = vmatmul.f32.gmra.mxu0 %v197
    %v785 = vpop.f32.mrf.mxu0
    %v786 = vadd.f32 0.0, %v785
    %787 = vmatmul.f32.gmra.mxu0 %v200
    %v788 = vpop.f32.mrf.mxu0
    %v789 = vadd.f32 0.0, %v788
    %790 = vmatmul.f32.gmra.mxu0 %v203
    %v791 = vpop.f32.mrf.mxu0
    %v792 = vadd.f32 0.0, %v791
    %793 = vdwg.mxu0
    %794 = vrot.lane.b32.xlu0 %v223, 112
    %v795 = vpop.permute.xlu0 %794
    %796 = vrot.lane.b32.xlu0 %v226, 112
    %v797 = vpop.permute.xlu0 %796
    %798 = vrot.lane.b32.xlu0 %v229, 112
    %v799 = vpop.permute.xlu0 %798
    %800 = vrot.lane.b32.xlu0 %v232, 112
    %v801 = vpop.permute.xlu0 %800
    %802 = vrot.lane.b32.xlu0 %v235, 112
    %v803 = vpop.permute.xlu0 %802
    %804 = vrot.lane.b32.xlu0 %v238, 112
    %v805 = vpop.permute.xlu0 %804
    %806 = vrot.lane.b32.xlu0 %v263, 112
    %v807 = vpop.permute.xlu0 %806
    %808 = vrot.lane.b32.xlu0 %v266, 112
    %v809 = vpop.permute.xlu0 %808
    %810 = vrot.lane.b32.xlu0 %v269, 112
    %v811 = vpop.permute.xlu0 %810
    %812 = vrot.lane.b32.xlu0 %v272, 112
    %v813 = vpop.permute.xlu0 %812
    %814 = vrot.lane.b32.xlu0 %v275, 112
    %v815 = vpop.permute.xlu0 %814
    %816 = vrot.lane.b32.xlu0 %v278, 112
    %v817 = vpop.permute.xlu0 %816
    %v818 = vsel %vm320, %v795, 0
    %v820 = vsel %vm320, %v797, 0
    %v822 = vsel %vm320, %v799, 0
    %v824 = vsel %vm320, %v801, 0
    %v826 = vsel %vm320, %v803, 0
    %v828 = vsel %vm320, %v805, 0
    %v830 = vsel %vm320, %v807, 0
    %v832 = vsel %vm320, %v809, 0
    %v834 = vsel %vm320, %v811, 0
    %v836 = vsel %vm320, %v813, 0
    %v838 = vsel %vm320, %v815, 0
    %v840 = vsel %vm320, %v817, 0
    %842 = vmatpush.xpose.msra.mxu0 0.0
    %843 = vmatpush.xpose.msra.mxu0 0.0
    %844 = vmatpush.xpose.msra.mxu0 0.0
    %845 = vmatpush.xpose.msra.mxu0 0.0
    %846 = vmatpush.xpose.msra.mxu0 0.0
    %847 = vmatpush.xpose.msra.mxu0 0.0
    %848 = vmatpush.xpose.msra.mxu0 0.0
    %849 = vmatpush.xpose.msra.mxu0 0.0
    %850 = vmatpush.xpose.msra.mxu0 0.0
    %851 = vmatpush.xpose.msra.mxu0 0.0
    %852 = vmatpush.xpose.msra.mxu0 %v840
    %853 = vmatpush.xpose.msra.mxu0 %v838
    %854 = vmatpush.xpose.msra.mxu0 %v836
    %855 = vmatpush.xpose.msra.mxu0 %v834
    %856 = vmatpush.xpose.msra.mxu0 %v832
    %857 = vmatpush.xpose.msra.mxu0 %v830
    %858 = vmatmul.f32.gmra.mxu0 %v818
    %v859 = vpop.f32.mrf.mxu0
    %v860 = vadd.f32 %v174, %v859
    %861 = vmatmul.f32.gmra.mxu0 %v820
    %v862 = vpop.f32.mrf.mxu0
    %v863 = vadd.f32 %v175, %v862
    %864 = vmatmul.f32.gmra.mxu0 %v822
    %v865 = vpop.f32.mrf.mxu0
    %v866 = vadd.f32 %v176, %v865
    %867 = vmatmul.f32.gmra.mxu0 %v824
    %v868 = vpop.f32.mrf.mxu0
    %v869 = vadd.f32 %v177, %v868
    %870 = vmatmul.f32.gmra.mxu0 %v826
    %v871 = vpop.f32.mrf.mxu0
    %v872 = vadd.f32 %v178, %v871
    %873 = vmatmul.f32.gmra.mxu0 %v828
    %v874 = vpop.f32.mrf.mxu0
    %v875 = vadd.f32 %v179, %v874
    %876 = vdwg.mxu0
    %v877 = vsel %vm392, %v860, -inf
    %878 = vmax.xlane.f32.xlu0 %v877
    %v879 = vpop.xlane.xlu0 %878
    %v880 = vsel %vm392, %v863, -inf
    %881 = vmax.xlane.f32.xlu0 %v880
    %v882 = vpop.xlane.xlu0 %881
    %v883 = vsel %vm392, %v866, -inf
    %884 = vmax.xlane.f32.xlu0 %v883
    %v885 = vpop.xlane.xlu0 %884
    %v886 = vsel %vm392, %v869, -inf
    %887 = vmax.xlane.f32.xlu0 %v886
    %v888 = vpop.xlane.xlu0 %887
    %v889 = vsel %vm392, %v872, -inf
    %890 = vmax.xlane.f32.xlu0 %v889
    %v891 = vpop.xlane.xlu0 %890
    %v892 = vsel %vm392, %v875, -inf
    %893 = vmax.xlane.f32.xlu0 %v892
    %v894 = vpop.xlane.xlu0 %893
    %v895 = vsub.f32 %v860, %v879
    %v896 = vsub.f32 %v863, %v882
    %v897 = vsub.f32 %v866, %v885
    %v898 = vsub.f32 %v869, %v888
    %v899 = vsub.f32 %v872, %v891
    %v900 = vsub.f32 %v875, %v894
    %v901 = vmul.f32 %v895, 1.442695
    %v902 = vpow.pop %v901
    %v903 = vmul.f32 %v896, 1.442695
    %v904 = vpow.pop %v903
    %v905 = vmul.f32 %v897, 1.442695
    %v906 = vpow.pop %v905
    %v907 = vmul.f32 %v898, 1.442695
    %v908 = vpow.pop %v907
    %v909 = vmul.f32 %v899, 1.442695
    %v910 = vpow.pop %v909
    %v911 = vmul.f32 %v900, 1.442695
    %v912 = vpow.pop %v911
    %v913 = vsel %vm392, %v902, 0.0
    %914 = vadd.xlane.f32.xlu0 %v913
    %v915 = vpop.xlane.xlu0 %914
    %v916 = vsel %vm392, %v904, 0.0
    %917 = vadd.xlane.f32.xlu0 %v916
    %v918 = vpop.xlane.xlu0 %917
    %v919 = vsel %vm392, %v906, 0.0
    %920 = vadd.xlane.f32.xlu0 %v919
    %v921 = vpop.xlane.xlu0 %920
    %v922 = vsel %vm392, %v908, 0.0
    %923 = vadd.xlane.f32.xlu0 %v922
    %v924 = vpop.xlane.xlu0 %923
    %v925 = vsel %vm392, %v910, 0.0
    %926 = vadd.xlane.f32.xlu0 %v925
    %v927 = vpop.xlane.xlu0 %926
    %v928 = vsel %vm392, %v912, 0.0
    %929 = vadd.xlane.f32.xlu0 %v928
    %v930 = vpop.xlane.xlu0 %929
    %v931 = vrcp.pop %v915
    %v932 = vrcp.pop %v918
    %v933 = vrcp.pop %v921
    %v934 = vrcp.pop %v924
    %v935 = vrcp.pop %v927
    %v936 = vrcp.pop %v930
    %v937 = vmul.f32 %v902, %v931
    %v938 = vmul.f32 %v904, %v932
    %v939 = vmul.f32 %v906, %v933
    %v940 = vmul.f32 %v908, %v934
    %v941 = vmul.f32 %v910, %v935
    %v942 = vmul.f32 %v912, %v936
    %v944 = vsel %vm392, %v937, 0
    %v947 = vsel %vm392, %v938, 0
    %v950 = vsel %vm392, %v939, 0
    %v953 = vsel %vm392, %v940, 0
    %v956 = vsel %vm392, %v941, 0
    %v959 = vsel %vm392, %v942, 0
    %961 = vmatpush.msra.mxu0 0.0
    %962 = vmatpush.msra.mxu0 0.0
    %963 = vmatpush.msra.mxu0 0.0
    %964 = vmatpush.msra.mxu0 0.0
    %965 = vmatpush.msra.mxu0 0.0
    %966 = vmatpush.msra.mxu0 0.0
    %967 = vmatpush.msra.mxu0 0.0
    %968 = vmatpush.msra.mxu0 0.0
    %969 = vmatpush.msra.mxu0 0.0
    %970 = vmatpush.msra.mxu0 0.0
    %971 = vmatpush.msra.mxu0 %v792
    %972 = vmatpush.msra.mxu0 %v789
    %973 = vmatpush.msra.mxu0 %v786
    %974 = vmatpush.msra.mxu0 %v783
    %975 = vmatpush.msra.mxu0 %v780
    %976 = vmatpush.msra.mxu0 %v777
    %977 = vmatmul.f32.gmra.mxu0 %v944
    %v978 = vpop.f32.mrf.mxu0
    %v979 = vadd.f32 0.0, %v978
    %980 = vmatmul.f32.gmra.mxu0 %v947
    %v981 = vpop.f32.mrf.mxu0
    %v982 = vadd.f32 0.0, %v981
    %983 = vmatmul.f32.gmra.mxu0 %v950
    %v984 = vpop.f32.mrf.mxu0
    %v985 = vadd.f32 0.0, %v984
    %986 = vmatmul.f32.gmra.mxu0 %v953
    %v987 = vpop.f32.mrf.mxu0
    %v988 = vadd.f32 0.0, %v987
    %989 = vmatmul.f32.gmra.mxu0 %v956
    %v990 = vpop.f32.mrf.mxu0
    %v991 = vadd.f32 0.0, %v990
    %992 = vmatmul.f32.gmra.mxu0 %v959
    %v993 = vpop.f32.mrf.mxu0
    %v994 = vadd.f32 0.0, %v993
    %995 = vdwg.mxu0
    %v996 = vadd.f32 %v737, %v979
    %v997 = vadd.f32 %v740, %v982
    %v998 = vadd.f32 %v743, %v985
    %v999 = vadd.f32 %v746, %v988
    %v1000 = vadd.f32 %v749, %v991
    %v1001 = vadd.f32 %v752, %v994
    %s1002 = scalar_lea.vmem %s2, 160
    %v1003 = vld [vmem:[%s1002] sm:$0xff]
    %v1004 = vld [vmem:[%s1002 + $0x8] sm:$0xff]
    %v1005 = vld [vmem:[%s1002 + $0x10] sm:$0xff]
    %v1006 = vld [vmem:[%s1002 + $0x18] sm:$0xff]
    %1007 = vmatpush.msra.mxu0 0.0
    %1008 = vmatpush.msra.mxu0 0.0
    %1009 = vmatpush.msra.mxu0 0.0
    %1010 = vmatpush.msra.mxu0 0.0
    %1011 = vmatpush.msra.mxu0 0.0
    %1012 = vmatpush.msra.mxu0 0.0
    %1013 = vmatpush.msra.mxu0 0.0
    %1014 = vmatpush.msra.mxu0 0.0
    %1015 = vmatpush.msra.mxu0 0.0
    %1016 = vmatpush.msra.mxu0 0.0
    %1017 = vmatpush.msra.mxu0 0.0
    %1018 = vmatpush.msra.mxu0 0.0
    %1019 = vmatpush.msra.mxu0 %v1006
    %1020 = vmatpush.msra.mxu0 %v1005
    %1021 = vmatpush.msra.mxu0 %v1004
    %1022 = vmatpush.msra.mxu0 %v1003
    %1023 = vmatmul.f32.gmra.mxu0 %v188
    %v1024 = vpop.f32.mrf.mxu0
    %v1025 = vadd.f32 0.0, %v1024
    %1026 = vmatmul.f32.gmra.mxu0 %v191
    %v1027 = vpop.f32.mrf.mxu0
    %v1028 = vadd.f32 0.0, %v1027
    %1029 = vmatmul.f32.gmra.mxu0 %v194
    %v1030 = vpop.f32.mrf.mxu0
    %v1031 = vadd.f32 0.0, %v1030
    %1032 = vmatmul.f32.gmra.mxu0 %v197
    %v1033 = vpop.f32.mrf.mxu0
    %v1034 = vadd.f32 0.0, %v1033
    %1035 = vmatmul.f32.gmra.mxu0 %v200
    %v1036 = vpop.f32.mrf.mxu0
    %v1037 = vadd.f32 0.0, %v1036
    %1038 = vmatmul.f32.gmra.mxu0 %v203
    %v1039 = vpop.f32.mrf.mxu0
    %v1040 = vadd.f32 0.0, %v1039
    %1041 = vdwg.mxu0
    %1042 = vrot.lane.b32.xlu0 %v223, 104
    %v1043 = vpop.permute.xlu0 %1042
    %1044 = vrot.lane.b32.xlu0 %v226, 104
    %v1045 = vpop.permute.xlu0 %1044
    %1046 = vrot.lane.b32.xlu0 %v229, 104
    %v1047 = vpop.permute.xlu0 %1046
    %1048 = vrot.lane.b32.xlu0 %v232, 104
    %v1049 = vpop.permute.xlu0 %1048
    %1050 = vrot.lane.b32.xlu0 %v235, 104
    %v1051 = vpop.permute.xlu0 %1050
    %1052 = vrot.lane.b32.xlu0 %v238, 104
    %v1053 = vpop.permute.xlu0 %1052
    %1054 = vrot.lane.b32.xlu0 %v263, 104
    %v1055 = vpop.permute.xlu0 %1054
    %1056 = vrot.lane.b32.xlu0 %v266, 104
    %v1057 = vpop.permute.xlu0 %1056
    %1058 = vrot.lane.b32.xlu0 %v269, 104
    %v1059 = vpop.permute.xlu0 %1058
    %1060 = vrot.lane.b32.xlu0 %v272, 104
    %v1061 = vpop.permute.xlu0 %1060
    %1062 = vrot.lane.b32.xlu0 %v275, 104
    %v1063 = vpop.permute.xlu0 %1062
    %1064 = vrot.lane.b32.xlu0 %v278, 104
    %v1065 = vpop.permute.xlu0 %1064
    %v1066 = vsel %vm320, %v1043, 0
    %v1068 = vsel %vm320, %v1045, 0
    %v1070 = vsel %vm320, %v1047, 0
    %v1072 = vsel %vm320, %v1049, 0
    %v1074 = vsel %vm320, %v1051, 0
    %v1076 = vsel %vm320, %v1053, 0
    %v1078 = vsel %vm320, %v1055, 0
    %v1080 = vsel %vm320, %v1057, 0
    %v1082 = vsel %vm320, %v1059, 0
    %v1084 = vsel %vm320, %v1061, 0
    %v1086 = vsel %vm320, %v1063, 0
    %v1088 = vsel %vm320, %v1065, 0
    %1090 = vmatpush.xpose.msra.mxu0 0.0
    %1091 = vmatpush.xpose.msra.mxu0 0.0
    %1092 = vmatpush.xpose.msra.mxu0 0.0
    %1093 = vmatpush.xpose.msra.mxu0 0.0
    %1094 = vmatpush.xpose.msra.mxu0 0.0
    %1095 = vmatpush.xpose.msra.mxu0 0.0
    %1096 = vmatpush.xpose.msra.mxu0 0.0
    %1097 = vmatpush.xpose.msra.mxu0 0.0
    %1098 = vmatpush.xpose.msra.mxu0 0.0
    %1099 = vmatpush.xpose.msra.mxu0 0.0
    %1100 = vmatpush.xpose.msra.mxu0 %v1088
    %1101 = vmatpush.xpose.msra.mxu0 %v1086
    %1102 = vmatpush.xpose.msra.mxu0 %v1084
    %1103 = vmatpush.xpose.msra.mxu0 %v1082
    %1104 = vmatpush.xpose.msra.mxu0 %v1080
    %1105 = vmatpush.xpose.msra.mxu0 %v1078
    %1106 = vmatmul.f32.gmra.mxu0 %v1066
    %v1107 = vpop.f32.mrf.mxu0
    %v1108 = vadd.f32 %v174, %v1107
    %1109 = vmatmul.f32.gmra.mxu0 %v1068
    %v1110 = vpop.f32.mrf.mxu0
    %v1111 = vadd.f32 %v175, %v1110
    %1112 = vmatmul.f32.gmra.mxu0 %v1070
    %v1113 = vpop.f32.mrf.mxu0
    %v1114 = vadd.f32 %v176, %v1113
    %1115 = vmatmul.f32.gmra.mxu0 %v1072
    %v1116 = vpop.f32.mrf.mxu0
    %v1117 = vadd.f32 %v177, %v1116
    %1118 = vmatmul.f32.gmra.mxu0 %v1074
    %v1119 = vpop.f32.mrf.mxu0
    %v1120 = vadd.f32 %v178, %v1119
    %1121 = vmatmul.f32.gmra.mxu0 %v1076
    %v1122 = vpop.f32.mrf.mxu0
    %v1123 = vadd.f32 %v179, %v1122
    %1124 = vdwg.mxu0
    %v1125 = vsel %vm392, %v1108, -inf
    %1126 = vmax.xlane.f32.xlu0 %v1125
    %v1127 = vpop.xlane.xlu0 %1126
    %v1128 = vsel %vm392, %v1111, -inf
    %1129 = vmax.xlane.f32.xlu0 %v1128
    %v1130 = vpop.xlane.xlu0 %1129
    %v1131 = vsel %vm392, %v1114, -inf
    %1132 = vmax.xlane.f32.xlu0 %v1131
    %v1133 = vpop.xlane.xlu0 %1132
    %v1134 = vsel %vm392, %v1117, -inf
    %1135 = vmax.xlane.f32.xlu0 %v1134
    %v1136 = vpop.xlane.xlu0 %1135
    %v1137 = vsel %vm392, %v1120, -inf
    %1138 = vmax.xlane.f32.xlu0 %v1137
    %v1139 = vpop.xlane.xlu0 %1138
    %v1140 = vsel %vm392, %v1123, -inf
    %1141 = vmax.xlane.f32.xlu0 %v1140
    %v1142 = vpop.xlane.xlu0 %1141
    %v1143 = vsub.f32 %v1108, %v1127
    %v1144 = vsub.f32 %v1111, %v1130
    %v1145 = vsub.f32 %v1114, %v1133
    %v1146 = vsub.f32 %v1117, %v1136
    %v1147 = vsub.f32 %v1120, %v1139
    %v1148 = vsub.f32 %v1123, %v1142
    %v1149 = vmul.f32 %v1143, 1.442695
    %v1150 = vpow.pop %v1149
    %v1151 = vmul.f32 %v1144, 1.442695
    %v1152 = vpow.pop %v1151
    %v1153 = vmul.f32 %v1145, 1.442695
    %v1154 = vpow.pop %v1153
    %v1155 = vmul.f32 %v1146, 1.442695
    %v1156 = vpow.pop %v1155
    %v1157 = vmul.f32 %v1147, 1.442695
    %v1158 = vpow.pop %v1157
    %v1159 = vmul.f32 %v1148, 1.442695
    %v1160 = vpow.pop %v1159
    %v1161 = vsel %vm392, %v1150, 0.0
    %1162 = vadd.xlane.f32.xlu0 %v1161
    %v1163 = vpop.xlane.xlu0 %1162
    %v1164 = vsel %vm392, %v1152, 0.0
    %1165 = vadd.xlane.f32.xlu0 %v1164
    %v1166 = vpop.xlane.xlu0 %1165
    %v1167 = vsel %vm392, %v1154, 0.0
    %1168 = vadd.xlane.f32.xlu0 %v1167
    %v1169 = vpop.xlane.xlu0 %1168
    %v1170 = vsel %vm392, %v1156, 0.0
    %1171 = vadd.xlane.f32.xlu0 %v1170
    %v1172 = vpop.xlane.xlu0 %1171
    %v1173 = vsel %vm392, %v1158, 0.0
    %1174 = vadd.xlane.f32.xlu0 %v1173
    %v1175 = vpop.xlane.xlu0 %1174
    %v1176 = vsel %vm392, %v1160, 0.0
    %1177 = vadd.xlane.f32.xlu0 %v1176
    %v1178 = vpop.xlane.xlu0 %1177
    %v1179 = vrcp.pop %v1163
    %v1180 = vrcp.pop %v1166
    %v1181 = vrcp.pop %v1169
    %v1182 = vrcp.pop %v1172
    %v1183 = vrcp.pop %v1175
    %v1184 = vrcp.pop %v1178
    %v1185 = vmul.f32 %v1150, %v1179
    %v1186 = vmul.f32 %v1152, %v1180
    %v1187 = vmul.f32 %v1154, %v1181
    %v1188 = vmul.f32 %v1156, %v1182
    %v1189 = vmul.f32 %v1158, %v1183
    %v1190 = vmul.f32 %v1160, %v1184
    %v1192 = vsel %vm392, %v1185, 0
    %v1195 = vsel %vm392, %v1186, 0
    %v1198 = vsel %vm392, %v1187, 0
    %v1201 = vsel %vm392, %v1188, 0
    %v1204 = vsel %vm392, %v1189, 0
    %v1207 = vsel %vm392, %v1190, 0
    %1209 = vmatpush.msra.mxu0 0.0
    %1210 = vmatpush.msra.mxu0 0.0
    %1211 = vmatpush.msra.mxu0 0.0
    %1212 = vmatpush.msra.mxu0 0.0
    %1213 = vmatpush.msra.mxu0 0.0
    %1214 = vmatpush.msra.mxu0 0.0
    %1215 = vmatpush.msra.mxu0 0.0
    %1216 = vmatpush.msra.mxu0 0.0
    %1217 = vmatpush.msra.mxu0 0.0
    %1218 = vmatpush.msra.mxu0 0.0
    %1219 = vmatpush.msra.mxu0 %v1040
    %1220 = vmatpush.msra.mxu0 %v1037
    %1221 = vmatpush.msra.mxu0 %v1034
    %1222 = vmatpush.msra.mxu0 %v1031
    %1223 = vmatpush.msra.mxu0 %v1028
    %1224 = vmatpush.msra.mxu0 %v1025
    %1225 = vmatmul.f32.gmra.mxu0 %v1192
    %v1226 = vpop.f32.mrf.mxu0
    %v1227 = vadd.f32 0.0, %v1226
    %1228 = vmatmul.f32.gmra.mxu0 %v1195
    %v1229 = vpop.f32.mrf.mxu0
    %v1230 = vadd.f32 0.0, %v1229
    %1231 = vmatmul.f32.gmra.mxu0 %v1198
    %v1232 = vpop.f32.mrf.mxu0
    %v1233 = vadd.f32 0.0, %v1232
    %1234 = vmatmul.f32.gmra.mxu0 %v1201
    %v1235 = vpop.f32.mrf.mxu0
    %v1236 = vadd.f32 0.0, %v1235
    %1237 = vmatmul.f32.gmra.mxu0 %v1204
    %v1238 = vpop.f32.mrf.mxu0
    %v1239 = vadd.f32 0.0, %v1238
    %1240 = vmatmul.f32.gmra.mxu0 %v1207
    %v1241 = vpop.f32.mrf.mxu0
    %v1242 = vadd.f32 0.0, %v1241
    %1243 = vdwg.mxu0
    %v1244 = vadd.f32 %v996, %v1227
    %v1245 = vadd.f32 %v997, %v1230
    %v1246 = vadd.f32 %v998, %v1233
    %v1247 = vadd.f32 %v999, %v1236
    %v1248 = vadd.f32 %v1000, %v1239
    %v1249 = vadd.f32 %v1001, %v1242
    %v1250 = vadd.f32 %v78, %v1244
    %v1251 = vadd.f32 %v81, %v1245
    %v1252 = vadd.f32 %v84, %v1246
    %v1253 = vadd.f32 %v87, %v1247
    %v1254 = vadd.f32 %v90, %v1248
    %v1255 = vadd.f32 %v93, %v1249
    %v1256 = vperm.slane %v180, 1
    %v1257 = vadd.f32 %v1250, %v1256
    %v1258 = vadd.f32 %v1251, %v1256
    %v1259 = vadd.f32 %v1252, %v1256
    %v1260 = vadd.f32 %v1253, %v1256
    %v1261 = vadd.f32 %v1254, %v1256
    %v1262 = vadd.f32 %v1255, %v1256
    %v1263 = vsel %vm186, %v1257, 0.0
    %1264 = vadd.xlane.f32.xlu0 %v1263
    %v1265 = vpop.xlane.xlu0 %1264
    %v1266 = vsel %vm186, %v1258, 0.0
    %1267 = vadd.xlane.f32.xlu0 %v1266
    %v1268 = vpop.xlane.xlu0 %1267
    %v1269 = vsel %vm186, %v1259, 0.0
    %1270 = vadd.xlane.f32.xlu0 %v1269
    %v1271 = vpop.xlane.xlu0 %1270
    %v1272 = vsel %vm186, %v1260, 0.0
    %1273 = vadd.xlane.f32.xlu0 %v1272
    %v1274 = vpop.xlane.xlu0 %1273
    %v1275 = vsel %vm186, %v1261, 0.0
    %1276 = vadd.xlane.f32.xlu0 %v1275
    %v1277 = vpop.xlane.xlu0 %1276
    %v1278 = vsel %vm186, %v1262, 0.0
    %1279 = vadd.xlane.f32.xlu0 %v1278
    %v1280 = vpop.xlane.xlu0 %1279
    %v1281 = vrcp.pop 32.0
    %v1282 = vmul.f32 32.0, %v1281
    %v1283 = vsub.f32 1.0, %v1282
    %v1284 = vmul.f32 %v1281, %v1283
    %v1285 = vadd.f32 %v1281, %v1284
    %vm1286 = vweird.f32 %v1281
    %v1287 = vsel %vm1286, %v1281, %v1285
    %v1288 = vmul.f32 %v1265, %v1287
    %v1289 = vmul.f32 %v1268, %v1287
    %v1290 = vmul.f32 %v1271, %v1287
    %v1291 = vmul.f32 %v1274, %v1287
    %v1292 = vmul.f32 %v1277, %v1287
    %v1293 = vmul.f32 %v1280, %v1287
    %v1294 = vsub.f32 %v1257, %v1288
    %v1295 = vsub.f32 %v1258, %v1289
    %v1296 = vsub.f32 %v1259, %v1290
    %v1297 = vsub.f32 %v1260, %v1291
    %v1298 = vsub.f32 %v1261, %v1292
    %v1299 = vsub.f32 %v1262, %v1293
    %v1300 = vmul.f32 %v1294, %v1294
    %v1301 = vmul.f32 %v1295, %v1295
    %v1302 = vmul.f32 %v1296, %v1296
    %v1303 = vmul.f32 %v1297, %v1297
    %v1304 = vmul.f32 %v1298, %v1298
    %v1305 = vmul.f32 %v1299, %v1299
    %v1306 = vsel %vm186, %v1300, 0.0
    %1307 = vadd.xlane.f32.xlu0 %v1306
    %v1308 = vpop.xlane.xlu0 %1307
    %v1309 = vsel %vm186, %v1301, 0.0
    %1310 = vadd.xlane.f32.xlu0 %v1309
    %v1311 = vpop.xlane.xlu0 %1310
    %v1312 = vsel %vm186, %v1302, 0.0
    %1313 = vadd.xlane.f32.xlu0 %v1312
    %v1314 = vpop.xlane.xlu0 %1313
    %v1315 = vsel %vm186, %v1303, 0.0
    %1316 = vadd.xlane.f32.xlu0 %v1315
    %v1317 = vpop.xlane.xlu0 %1316
    %v1318 = vsel %vm186, %v1304, 0.0
    %1319 = vadd.xlane.f32.xlu0 %v1318
    %v1320 = vpop.xlane.xlu0 %1319
    %v1321 = vsel %vm186, %v1305, 0.0
    %1322 = vadd.xlane.f32.xlu0 %v1321
    %v1323 = vpop.xlane.xlu0 %1322
    %v1324 = vmul.f32 %v1308, %v1287
    %v1325 = vmul.f32 %v1311, %v1287
    %v1326 = vmul.f32 %v1314, %v1287
    %v1327 = vmul.f32 %v1317, %v1287
    %v1328 = vmul.f32 %v1320, %v1287
    %v1329 = vmul.f32 %v1323, %v1287
    %v1330 = vadd.f32 %v1324, 1e-05
    %v1331 = vadd.f32 %v1325, 1e-05
    %v1332 = vadd.f32 %v1326, 1e-05
    %v1333 = vadd.f32 %v1327, 1e-05
    %v1334 = vadd.f32 %v1328, 1e-05
    %v1335 = vadd.f32 %v1329, 1e-05
    %v1336 = vrsqrt.pop %v1330
    %v1337 = vmul.f32 %v1336, %v1330
    %v1338 = vmul.f32 %v1337, %v1336
    %v1339 = vmul.f32 0.5, %v1338
    %v1340 = vsub.f32 1.5, %v1339
    %v1341 = vmul.f32 %v1336, %v1340
    %vm1342 = vweird.f32 %v1330
    %vm1343 = vweird.f32 %v1336
    %vm1344 = vmor %vm1342, %vm1343
    %v1345 = vsel %vm1344, %v1336, %v1341
    %v1346 = vrsqrt.pop %v1331
    %v1347 = vmul.f32 %v1346, %v1331
    %v1348 = vmul.f32 %v1347, %v1346
    %v1349 = vmul.f32 0.5, %v1348
    %v1350 = vsub.f32 1.5, %v1349
    %v1351 = vmul.f32 %v1346, %v1350
    %vm1352 = vweird.f32 %v1331
    %vm1353 = vweird.f32 %v1346
    %vm1354 = vmor %vm1352, %vm1353
    %v1355 = vsel %vm1354, %v1346, %v1351
    %v1356 = vrsqrt.pop %v1332
    %v1357 = vmul.f32 %v1356, %v1332
    %v1358 = vmul.f32 %v1357, %v1356
    %v1359 = vmul.f32 0.5, %v1358
    %v1360 = vsub.f32 1.5, %v1359
    %v1361 = vmul.f32 %v1356, %v1360
    %vm1362 = vweird.f32 %v1332
    %vm1363 = vweird.f32 %v1356
    %vm1364 = vmor %vm1362, %vm1363
    %v1365 = vsel %vm1364, %v1356, %v1361
    %v1366 = vrsqrt.pop %v1333
    %v1367 = vmul.f32 %v1366, %v1333
    %v1368 = vmul.f32 %v1367, %v1366
    %v1369 = vmul.f32 0.5, %v1368
    %v1370 = vsub.f32 1.5, %v1369
    %v1371 = vmul.f32 %v1366, %v1370
    %vm1372 = vweird.f32 %v1333
    %vm1373 = vweird.f32 %v1366
    %vm1374 = vmor %vm1372, %vm1373
    %v1375 = vsel %vm1374, %v1366, %v1371
    %v1376 = vrsqrt.pop %v1334
    %v1377 = vmul.f32 %v1376, %v1334
    %v1378 = vmul.f32 %v1377, %v1376
    %v1379 = vmul.f32 0.5, %v1378
    %v1380 = vsub.f32 1.5, %v1379
    %v1381 = vmul.f32 %v1376, %v1380
    %vm1382 = vweird.f32 %v1334
    %vm1383 = vweird.f32 %v1376
    %vm1384 = vmor %vm1382, %vm1383
    %v1385 = vsel %vm1384, %v1376, %v1381
    %v1386 = vrsqrt.pop %v1335
    %v1387 = vmul.f32 %v1386, %v1335
    %v1388 = vmul.f32 %v1387, %v1386
    %v1389 = vmul.f32 0.5, %v1388
    %v1390 = vsub.f32 1.5, %v1389
    %v1391 = vmul.f32 %v1386, %v1390
    %vm1392 = vweird.f32 %v1335
    %vm1393 = vweird.f32 %v1386
    %vm1394 = vmor %vm1392, %vm1393
    %v1395 = vsel %vm1394, %v1386, %v1391
    %v1396 = vmul.f32 %v1294, %v1345
    %v1397 = vmul.f32 %v1295, %v1355
    %v1398 = vmul.f32 %v1296, %v1365
    %v1399 = vmul.f32 %v1297, %v1375
    %v1400 = vmul.f32 %v1298, %v1385
    %v1401 = vmul.f32 %v1299, %v1395
    %v1402 = vperm.slane %v180, 4
    %v1403 = vmul.f32 %v1396, %v1402
    %v1404 = vmul.f32 %v1397, %v1402
    %v1405 = vmul.f32 %v1398, %v1402
    %v1406 = vmul.f32 %v1399, %v1402
    %v1407 = vmul.f32 %v1400, %v1402
    %v1408 = vmul.f32 %v1401, %v1402
    %v1409 = vperm.slane %v180, 5
    %v1410 = vadd.f32 %v1403, %v1409
    %v1411 = vadd.f32 %v1404, %v1409
    %v1412 = vadd.f32 %v1405, %v1409
    %v1413 = vadd.f32 %v1406, %v1409
    %v1414 = vadd.f32 %v1407, %v1409
    %v1415 = vadd.f32 %v1408, %v1409
    %v1416 = vld [vmem:[%s3] sm:$0xff]
    %v1417 = vld [vmem:[%s3 + $0x8] sm:$0xff]
    %v1418 = vld [vmem:[%s3 + $0x10] sm:$0xff]
    %v1419 = vld [vmem:[%s3 + $0x18] sm:$0xff]
    %v1420 = vperm.slane %v180, 2
    %v1422 = vsel %vm186, %v1410, 0
    %v1425 = vsel %vm186, %v1411, 0
    %v1428 = vsel %vm186, %v1412, 0
    %v1431 = vsel %vm186, %v1413, 0
    %v1434 = vsel %vm186, %v1414, 0
    %v1437 = vsel %vm186, %v1415, 0
    %1439 = vmatpush.msra.mxu0 0.0
    %1440 = vmatpush.msra.mxu0 0.0
    %1441 = vmatpush.msra.mxu0 0.0
    %1442 = vmatpush.msra.mxu0 0.0
    %1443 = vmatpush.msra.mxu0 0.0
    %1444 = vmatpush.msra.mxu0 0.0
    %1445 = vmatpush.msra.mxu0 0.0
    %1446 = vmatpush.msra.mxu0 0.0
    %1447 = vmatpush.msra.mxu0 0.0
    %1448 = vmatpush.msra.mxu0 0.0
    %1449 = vmatpush.msra.mxu0 0.0
    %1450 = vmatpush.msra.mxu0 0.0
    %1451 = vmatpush.msra.mxu0 %v1419
    %1452 = vmatpush.msra.mxu0 %v1418
    %1453 = vmatpush.msra.mxu0 %v1417
    %1454 = vmatpush.msra.mxu0 %v1416
    %1455 = vmatmul.f32.gmra.mxu0 %v1422
    %v1456 = vpop.f32.mrf.mxu0
    %v1457 = vadd.f32 %v1420, %v1456
    %1458 = vmatmul.f32.gmra.mxu0 %v1425
    %v1459 = vpop.f32.mrf.mxu0
    %v1460 = vadd.f32 %v1420, %v1459
    %1461 = vmatmul.f32.gmra.mxu0 %v1428
    %v1462 = vpop.f32.mrf.mxu0
    %v1463 = vadd.f32 %v1420, %v1462
    %1464 = vmatmul.f32.gmra.mxu0 %v1431
    %v1465 = vpop.f32.mrf.mxu0
    %v1466 = vadd.f32 %v1420, %v1465
    %1467 = vmatmul.f32.gmra.mxu0 %v1434
    %v1468 = vpop.f32.mrf.mxu0
    %v1469 = vadd.f32 %v1420, %v1468
    %1470 = vmatmul.f32.gmra.mxu0 %v1437
    %v1471 = vpop.f32.mrf.mxu0
    %v1472 = vadd.f32 %v1420, %v1471
    %1473 = vdwg.mxu0
    %v1474 = vmul.f32 %v1457, 0.5
    %v1475 = vmul.f32 %v1460, 0.5
    %v1476 = vmul.f32 %v1463, 0.5
    %v1477 = vmul.f32 %v1466, 0.5
    %v1478 = vmul.f32 %v1469, 0.5
    %v1479 = vmul.f32 %v1472, 0.5
    %v1480 = vmul.f32 %v1457, 0.044715
    %v1481 = vmul.f32 %v1460, 0.044715
    %v1482 = vmul.f32 %v1463, 0.044715
    %v1483 = vmul.f32 %v1466, 0.044715
    %v1484 = vmul.f32 %v1469, 0.044715
    %v1485 = vmul.f32 %v1472, 0.044715
    %v1486 = vmul.f32 %v1480, %v1457
    %v1487 = vmul.f32 %v1481, %v1460
    %v1488 = vmul.f32 %v1482, %v1463
    %v1489 = vmul.f32 %v1483, %v1466
    %v1490 = vmul.f32 %v1484, %v1469
    %v1491 = vmul.f32 %v1485, %v1472
    %v1492 = vmul.f32 %v1486, %v1457
    %v1493 = vmul.f32 %v1487, %v1460
    %v1494 = vmul.f32 %v1488, %v1463
    %v1495 = vmul.f32 %v1489, %v1466
    %v1496 = vmul.f32 %v1490, %v1469
    %v1497 = vmul.f32 %v1491, %v1472
    %v1498 = vadd.f32 %v1457, %v1492
    %v1499 = vadd.f32 %v1460, %v1493
    %v1500 = vadd.f32 %v1463, %v1494
    %v1501 = vadd.f32 %v1466, %v1495
    %v1502 = vadd.f32 %v1469, %v1496
    %v1503 = vadd.f32 %v1472, %v1497
    %v1504 = vmul.f32 %v1498, 0.7978846
    %v1505 = vmul.f32 %v1499, 0.7978846
    %v1506 = vmul.f32 %v1500, 0.7978846
    %v1507 = vmul.f32 %v1501, 0.7978846
    %v1508 = vmul.f32 %v1502, 0.7978846
    %v1509 = vmul.f32 %v1503, 0.7978846
    %v1510 = vtanh.pop %v1504
    %v1511 = vtanh.pop %v1505
    %v1512 = vtanh.pop %v1506
    %v1513 = vtanh.pop %v1507
    %v1514 = vtanh.pop %v1508
    %v1515 = vtanh.pop %v1509
    %v1516 = vadd.f32 %v1510, 1.0
    %v1517 = vadd.f32 %v1511, 1.0
    %v1518 = vadd.f32 %v1512, 1.0
    %v1519 = vadd.f32 %v1513, 1.0
    %v1520 = vadd.f32 %v1514, 1.0
    %v1521 = vadd.f32 %v1515, 1.0
    %v1522 = vmul.f32 %v1474, %v1516
    %v1523 = vmul.f32 %v1475, %v1517
    %v1524 = vmul.f32 %v1476, %v1518
    %v1525 = vmul.f32 %v1477, %v1519
    %v1526 = vmul.f32 %v1478, %v1520
    %v1527 = vmul.f32 %v1479, %v1521
    %v1528 = vld [vmem:[%s4] sm:$0xff]
    %v1529 = vld [vmem:[%s4 + $0x8] sm:$0xff]
    %v1530 = vld [vmem:[%s4 + $0x10] sm:$0xff]
    %v1531 = vld [vmem:[%s4 + $0x18] sm:$0xff]
    %v1532 = vld [vmem:[%s4 + $0x20] sm:$0xff]
    %v1533 = vld [vmem:[%s4 + $0x28] sm:$0xff]
    %v1534 = vld [vmem:[%s4 + $0x30] sm:$0xff]
    %v1535 = vld [vmem:[%s4 + $0x38] sm:$0xff]
    %v1536 = vld [vmem:[%s4 + $0x40] sm:$0xff]
    %v1537 = vld [vmem:[%s4 + $0x48] sm:$0xff]
    %v1538 = vld [vmem:[%s4 + $0x50] sm:$0xff]
    %v1539 = vld [vmem:[%s4 + $0x58] sm:$0xff]
    %v1540 = vld [vmem:[%s4 + $0x60] sm:$0xff]
    %v1541 = vld [vmem:[%s4 + $0x68] sm:$0xff]
    %v1542 = vld [vmem:[%s4 + $0x70] sm:$0xff]
    %v1543 = vld [vmem:[%s4 + $0x78] sm:$0xff]
    %v1544 = vperm.slane %v180, 3
    %1545 = vmatpush.msra.mxu0 %v1543
    %1546 = vmatpush.msra.mxu0 %v1542
    %1547 = vmatpush.msra.mxu0 %v1541
    %1548 = vmatpush.msra.mxu0 %v1540
    %1549 = vmatpush.msra.mxu0 %v1539
    %1550 = vmatpush.msra.mxu0 %v1538
    %1551 = vmatpush.msra.mxu0 %v1537
    %1552 = vmatpush.msra.mxu0 %v1536
    %1553 = vmatpush.msra.mxu0 %v1535
    %1554 = vmatpush.msra.mxu0 %v1534
    %1555 = vmatpush.msra.mxu0 %v1533
    %1556 = vmatpush.msra.mxu0 %v1532
    %1557 = vmatpush.msra.mxu0 %v1531
    %1558 = vmatpush.msra.mxu0 %v1530
    %1559 = vmatpush.msra.mxu0 %v1529
    %1560 = vmatpush.msra.mxu0 %v1528
    %1561 = vmatmul.f32.gmra.mxu0 %v1522
    %v1562 = vpop.f32.mrf.mxu0
    %v1563 = vadd.f32 %v1544, %v1562
    %1564 = vmatmul.f32.gmra.mxu0 %v1523
    %v1565 = vpop.f32.mrf.mxu0
    %v1566 = vadd.f32 %v1544, %v1565
    %1567 = vmatmul.f32.gmra.mxu0 %v1524
    %v1568 = vpop.f32.mrf.mxu0
    %v1569 = vadd.f32 %v1544, %v1568
    %1570 = vmatmul.f32.gmra.mxu0 %v1525
    %v1571 = vpop.f32.mrf.mxu0
    %v1572 = vadd.f32 %v1544, %v1571
    %1573 = vmatmul.f32.gmra.mxu0 %v1526
    %v1574 = vpop.f32.mrf.mxu0
    %v1575 = vadd.f32 %v1544, %v1574
    %1576 = vmatmul.f32.gmra.mxu0 %v1527
    %v1577 = vpop.f32.mrf.mxu0
    %v1578 = vadd.f32 %v1544, %v1577
    %1579 = vdwg.mxu0
    %v1580 = vadd.f32 %v1410, %v1563
    %v1581 = vadd.f32 %v1411, %v1566
    %v1582 = vadd.f32 %v1412, %v1569
    %v1583 = vadd.f32 %v1413, %v1572
    %v1584 = vadd.f32 %v1414, %v1575
    %v1585 = vadd.f32 %v1415, %v1578
    %v1586 = vsel %vm186, %v1580, 0.0
    %1587 = vadd.xlane.f32.xlu0 %v1586
    %v1588 = vpop.xlane.xlu0 %1587
    %v1589 = vsel %vm186, %v1581, 0.0
    %1590 = vadd.xlane.f32.xlu0 %v1589
    %v1591 = vpop.xlane.xlu0 %1590
    %v1592 = vsel %vm186, %v1582, 0.0
    %1593 = vadd.xlane.f32.xlu0 %v1592
    %v1594 = vpop.xlane.xlu0 %1593
    %v1595 = vsel %vm186, %v1583, 0.0
    %1596 = vadd.xlane.f32.xlu0 %v1595
    %v1597 = vpop.xlane.xlu0 %1596
    %v1598 = vsel %vm186, %v1584, 0.0
    %1599 = vadd.xlane.f32.xlu0 %v1598
    %v1600 = vpop.xlane.xlu0 %1599
    %v1601 = vsel %vm186, %v1585, 0.0
    %1602 = vadd.xlane.f32.xlu0 %v1601
    %v1603 = vpop.xlane.xlu0 %1602
    %v1604 = vmul.f32 %v1588, %v1287
    %v1605 = vmul.f32 %v1591, %v1287
    %v1606 = vmul.f32 %v1594, %v1287
    %v1607 = vmul.f32 %v1597, %v1287
    %v1608 = vmul.f32 %v1600, %v1287
    %v1609 = vmul.f32 %v1603, %v1287
    %v1610 = vsub.f32 %v1580, %v1604
    %v1611 = vsub.f32 %v1581, %v1605
    %v1612 = vsub.f32 %v1582, %v1606
    %v1613 = vsub.f32 %v1583, %v1607
    %v1614 = vsub.f32 %v1584, %v1608
    %v1615 = vsub.f32 %v1585, %v1609
    %v1616 = vmul.f32 %v1610, %v1610
    %v1617 = vmul.f32 %v1611, %v1611
    %v1618 = vmul.f32 %v1612, %v1612
    %v1619 = vmul.f32 %v1613, %v1613
    %v1620 = vmul.f32 %v1614, %v1614
    %v1621 = vmul.f32 %v1615, %v1615
    %v1622 = vsel %vm186, %v1616, 0.0
    %1623 = vadd.xlane.f32.xlu0 %v1622
    %v1624 = vpop.xlane.xlu0 %1623
    %v1625 = vsel %vm186, %v1617, 0.0
    %1626 = vadd.xlane.f32.xlu0 %v1625
    %v1627 = vpop.xlane.xlu0 %1626
    %v1628 = vsel %vm186, %v1618, 0.0
    %1629 = vadd.xlane.f32.xlu0 %v1628
    %v1630 = vpop.xlane.xlu0 %1629
    %v1631 = vsel %vm186, %v1619, 0.0
    %1632 = vadd.xlane.f32.xlu0 %v1631
    %v1633 = vpop.xlane.xlu0 %1632
    %v1634 = vsel %vm186, %v1620, 0.0
    %1635 = vadd.xlane.f32.xlu0 %v1634
    %v1636 = vpop.xlane.xlu0 %1635
    %v1637 = vsel %vm186, %v1621, 0.0
    %1638 = vadd.xlane.f32.xlu0 %v1637
    %v1639 = vpop.xlane.xlu0 %1638
    %v1640 = vmul.f32 %v1624, %v1287
    %v1641 = vmul.f32 %v1627, %v1287
    %v1642 = vmul.f32 %v1630, %v1287
    %v1643 = vmul.f32 %v1633, %v1287
    %v1644 = vmul.f32 %v1636, %v1287
    %v1645 = vmul.f32 %v1639, %v1287
    %v1646 = vadd.f32 %v1640, 1e-05
    %v1647 = vadd.f32 %v1641, 1e-05
    %v1648 = vadd.f32 %v1642, 1e-05
    %v1649 = vadd.f32 %v1643, 1e-05
    %v1650 = vadd.f32 %v1644, 1e-05
    %v1651 = vadd.f32 %v1645, 1e-05
    %v1652 = vrsqrt.pop %v1646
    %v1653 = vmul.f32 %v1652, %v1646
    %v1654 = vmul.f32 %v1653, %v1652
    %v1655 = vmul.f32 0.5, %v1654
    %v1656 = vsub.f32 1.5, %v1655
    %v1657 = vmul.f32 %v1652, %v1656
    %vm1658 = vweird.f32 %v1646
    %vm1659 = vweird.f32 %v1652
    %vm1660 = vmor %vm1658, %vm1659
    %v1661 = vsel %vm1660, %v1652, %v1657
    %v1662 = vrsqrt.pop %v1647
    %v1663 = vmul.f32 %v1662, %v1647
    %v1664 = vmul.f32 %v1663, %v1662
    %v1665 = vmul.f32 0.5, %v1664
    %v1666 = vsub.f32 1.5, %v1665
    %v1667 = vmul.f32 %v1662, %v1666
    %vm1668 = vweird.f32 %v1647
    %vm1669 = vweird.f32 %v1662
    %vm1670 = vmor %vm1668, %vm1669
    %v1671 = vsel %vm1670, %v1662, %v1667
    %v1672 = vrsqrt.pop %v1648
    %v1673 = vmul.f32 %v1672, %v1648
    %v1674 = vmul.f32 %v1673, %v1672
    %v1675 = vmul.f32 0.5, %v1674
    %v1676 = vsub.f32 1.5, %v1675
    %v1677 = vmul.f32 %v1672, %v1676
    %vm1678 = vweird.f32 %v1648
    %vm1679 = vweird.f32 %v1672
    %vm1680 = vmor %vm1678, %vm1679
    %v1681 = vsel %vm1680, %v1672, %v1677
    %v1682 = vrsqrt.pop %v1649
    %v1683 = vmul.f32 %v1682, %v1649
    %v1684 = vmul.f32 %v1683, %v1682
    %v1685 = vmul.f32 0.5, %v1684
    %v1686 = vsub.f32 1.5, %v1685
    %v1687 = vmul.f32 %v1682, %v1686
    %vm1688 = vweird.f32 %v1649
    %vm1689 = vweird.f32 %v1682
    %vm1690 = vmor %vm1688, %vm1689
    %v1691 = vsel %vm1690, %v1682, %v1687
    %v1692 = vrsqrt.pop %v1650
    %v1693 = vmul.f32 %v1692, %v1650
    %v1694 = vmul.f32 %v1693, %v1692
    %v1695 = vmul.f32 0.5, %v1694
    %v1696 = vsub.f32 1.5, %v1695
    %v1697 = vmul.f32 %v1692, %v1696
    %vm1698 = vweird.f32 %v1650
    %vm1699 = vweird.f32 %v1692
    %vm1700 = vmor %vm1698, %vm1699
    %v1701 = vsel %vm1700, %v1692, %v1697
    %v1702 = vrsqrt.pop %v1651
    %v1703 = vmul.f32 %v1702, %v1651
    %v1704 = vmul.f32 %v1703, %v1702
    %v1705 = vmul.f32 0.5, %v1704
    %v1706 = vsub.f32 1.5, %v1705
    %v1707 = vmul.f32 %v1702, %v1706
    %vm1708 = vweird.f32 %v1651
    %vm1709 = vweird.f32 %v1702
    %vm1710 = vmor %vm1708, %vm1709
    %v1711 = vsel %vm1710, %v1702, %v1707
    %v1712 = vmul.f32 %v1610, %v1661
    %v1713 = vmul.f32 %v1611, %v1671
    %v1714 = vmul.f32 %v1612, %v1681
    %v1715 = vmul.f32 %v1613, %v1691
    %v1716 = vmul.f32 %v1614, %v1701
    %v1717 = vmul.f32 %v1615, %v1711
    %v1718 = vperm.slane %v180, 6
    %v1719 = vmul.f32 %v1712, %v1718
    %v1720 = vmul.f32 %v1713, %v1718
    %v1721 = vmul.f32 %v1714, %v1718
    %v1722 = vmul.f32 %v1715, %v1718
    %v1723 = vmul.f32 %v1716, %v1718
    %v1724 = vmul.f32 %v1717, %v1718
    %v1725 = vperm.slane %v180, 7
    %v1726 = vadd.f32 %v1719, %v1725
    %v1727 = vadd.f32 %v1720, %v1725
    %v1728 = vadd.f32 %v1721, %v1725
    %v1729 = vadd.f32 %v1722, %v1725
    %v1730 = vadd.f32 %v1723, %v1725
    %v1731 = vadd.f32 %v1724, %v1725
    %s1732 = scalar_lea.vmem %s5, 8
    %v1733 = vld [vmem:[%s1732] sm:$0xff]
    %s1734 = scalar_lea.vmem %s2, 192
    %v1735 = vld [vmem:[%s1734] sm:$0xff]
    %v1736 = vld [vmem:[%s1734 + $0x8] sm:$0xff]
    %v1737 = vld [vmem:[%s1734 + $0x10] sm:$0xff]
    %v1738 = vld [vmem:[%s1734 + $0x18] sm:$0xff]
    %v1739 = vperm.slane %v1733, 0
    %v1741 = vsel %vm186, %v1726, 0
    %v1744 = vsel %vm186, %v1727, 0
    %v1747 = vsel %vm186, %v1728, 0
    %v1750 = vsel %vm186, %v1729, 0
    %v1753 = vsel %vm186, %v1730, 0
    %v1756 = vsel %vm186, %v1731, 0
    %1758 = vmatpush.msra.mxu0 0.0
    %1759 = vmatpush.msra.mxu0 0.0
    %1760 = vmatpush.msra.mxu0 0.0
    %1761 = vmatpush.msra.mxu0 0.0
    %1762 = vmatpush.msra.mxu0 0.0
    %1763 = vmatpush.msra.mxu0 0.0
    %1764 = vmatpush.msra.mxu0 0.0
    %1765 = vmatpush.msra.mxu0 0.0
    %1766 = vmatpush.msra.mxu0 0.0
    %1767 = vmatpush.msra.mxu0 0.0
    %1768 = vmatpush.msra.mxu0 0.0
    %1769 = vmatpush.msra.mxu0 0.0
    %1770 = vmatpush.msra.mxu0 %v1738
    %1771 = vmatpush.msra.mxu0 %v1737
    %1772 = vmatpush.msra.mxu0 %v1736
    %1773 = vmatpush.msra.mxu0 %v1735
    %1774 = vmatmul.f32.gmra.mxu0 %v1741
    %v1775 = vpop.f32.mrf.mxu0
    %v1776 = vadd.f32 %v1739, %v1775
    %1777 = vmatmul.f32.gmra.mxu0 %v1744
    %v1778 = vpop.f32.mrf.mxu0
    %v1779 = vadd.f32 %v1739, %v1778
    %1780 = vmatmul.f32.gmra.mxu0 %v1747
    %v1781 = vpop.f32.mrf.mxu0
    %v1782 = vadd.f32 %v1739, %v1781
    %1783 = vmatmul.f32.gmra.mxu0 %v1750
    %v1784 = vpop.f32.mrf.mxu0
    %v1785 = vadd.f32 %v1739, %v1784
    %1786 = vmatmul.f32.gmra.mxu0 %v1753
    %v1787 = vpop.f32.mrf.mxu0
    %v1788 = vadd.f32 %v1739, %v1787
    %1789 = vmatmul.f32.gmra.mxu0 %v1756
    %v1790 = vpop.f32.mrf.mxu0
    %v1791 = vadd.f32 %v1739, %v1790
    %1792 = vdwg.mxu0
    %s1793 = scalar_lea.vmem %s2, 224
    %v1794 = vld [vmem:[%s1793] sm:$0xff]
    %v1795 = vld [vmem:[%s1793 + $0x8] sm:$0xff]
    %v1796 = vld [vmem:[%s1793 + $0x10] sm:$0xff]
    %v1797 = vld [vmem:[%s1793 + $0x18] sm:$0xff]
    %1798 = vmatpush.msra.mxu0 0.0
    %1799 = vmatpush.msra.mxu0 0.0
    %1800 = vmatpush.msra.mxu0 0.0
    %1801 = vmatpush.msra.mxu0 0.0
    %1802 = vmatpush.msra.mxu0 0.0
    %1803 = vmatpush.msra.mxu0 0.0
    %1804 = vmatpush.msra.mxu0 0.0
    %1805 = vmatpush.msra.mxu0 0.0
    %1806 = vmatpush.msra.mxu0 0.0
    %1807 = vmatpush.msra.mxu0 0.0
    %1808 = vmatpush.msra.mxu0 0.0
    %1809 = vmatpush.msra.mxu0 0.0
    %1810 = vmatpush.msra.mxu0 %v1797
    %1811 = vmatpush.msra.mxu0 %v1796
    %1812 = vmatpush.msra.mxu0 %v1795
    %1813 = vmatpush.msra.mxu0 %v1794
    %1814 = vmatmul.f32.gmra.mxu0 %v1741
    %v1815 = vpop.f32.mrf.mxu0
    %v1816 = vadd.f32 0.0, %v1815
    %1817 = vmatmul.f32.gmra.mxu0 %v1744
    %v1818 = vpop.f32.mrf.mxu0
    %v1819 = vadd.f32 0.0, %v1818
    %1820 = vmatmul.f32.gmra.mxu0 %v1747
    %v1821 = vpop.f32.mrf.mxu0
    %v1822 = vadd.f32 0.0, %v1821
    %1823 = vmatmul.f32.gmra.mxu0 %v1750
    %v1824 = vpop.f32.mrf.mxu0
    %v1825 = vadd.f32 0.0, %v1824
    %1826 = vmatmul.f32.gmra.mxu0 %v1753
    %v1827 = vpop.f32.mrf.mxu0
    %v1828 = vadd.f32 0.0, %v1827
    %1829 = vmatmul.f32.gmra.mxu0 %v1756
    %v1830 = vpop.f32.mrf.mxu0
    %v1831 = vadd.f32 0.0, %v1830
    %1832 = vdwg.mxu0
    %s1833 = scalar_lea.vmem %s2, 256
    %v1834 = vld [vmem:[%s1833] sm:$0xff]
    %v1835 = vld [vmem:[%s1833 + $0x8] sm:$0xff]
    %v1836 = vld [vmem:[%s1833 + $0x10] sm:$0xff]
    %v1837 = vld [vmem:[%s1833 + $0x18] sm:$0xff]
    %1838 = vmatpush.msra.mxu0 0.0
    %1839 = vmatpush.msra.mxu0 0.0
    %1840 = vmatpush.msra.mxu0 0.0
    %1841 = vmatpush.msra.mxu0 0.0
    %1842 = vmatpush.msra.mxu0 0.0
    %1843 = vmatpush.msra.mxu0 0.0
    %1844 = vmatpush.msra.mxu0 0.0
    %1845 = vmatpush.msra.mxu0 0.0
    %1846 = vmatpush.msra.mxu0 0.0
    %1847 = vmatpush.msra.mxu0 0.0
    %1848 = vmatpush.msra.mxu0 0.0
    %1849 = vmatpush.msra.mxu0 0.0
    %1850 = vmatpush.msra.mxu0 %v1837
    %1851 = vmatpush.msra.mxu0 %v1836
    %1852 = vmatpush.msra.mxu0 %v1835
    %1853 = vmatpush.msra.mxu0 %v1834
    %1854 = vmatmul.f32.gmra.mxu0 %v1741
    %v1855 = vpop.f32.mrf.mxu0
    %v1856 = vadd.f32 0.0, %v1855
    %1857 = vmatmul.f32.gmra.mxu0 %v1744
    %v1858 = vpop.f32.mrf.mxu0
    %v1859 = vadd.f32 0.0, %v1858
    %1860 = vmatmul.f32.gmra.mxu0 %v1747
    %v1861 = vpop.f32.mrf.mxu0
    %v1862 = vadd.f32 0.0, %v1861
    %1863 = vmatmul.f32.gmra.mxu0 %v1750
    %v1864 = vpop.f32.mrf.mxu0
    %v1865 = vadd.f32 0.0, %v1864
    %1866 = vmatmul.f32.gmra.mxu0 %v1753
    %v1867 = vpop.f32.mrf.mxu0
    %v1868 = vadd.f32 0.0, %v1867
    %1869 = vmatmul.f32.gmra.mxu0 %v1756
    %v1870 = vpop.f32.mrf.mxu0
    %v1871 = vadd.f32 0.0, %v1870
    %1872 = vdwg.mxu0
    %v1874 = vsel %vm320, %v1776, 0
    %v1877 = vsel %vm320, %v1779, 0
    %v1880 = vsel %vm320, %v1782, 0
    %v1883 = vsel %vm320, %v1785, 0
    %v1886 = vsel %vm320, %v1788, 0
    %v1889 = vsel %vm320, %v1791, 0
    %v1892 = vsel %vm320, %v1816, 0
    %v1895 = vsel %vm320, %v1819, 0
    %v1898 = vsel %vm320, %v1822, 0
    %v1901 = vsel %vm320, %v1825, 0
    %v1904 = vsel %vm320, %v1828, 0
    %v1907 = vsel %vm320, %v1831, 0
    %1909 = vmatpush.xpose.msra.mxu0 0.0
    %1910 = vmatpush.xpose.msra.mxu0 0.0
    %1911 = vmatpush.xpose.msra.mxu0 0.0
    %1912 = vmatpush.xpose.msra.mxu0 0.0
    %1913 = vmatpush.xpose.msra.mxu0 0.0
    %1914 = vmatpush.xpose.msra.mxu0 0.0
    %1915 = vmatpush.xpose.msra.mxu0 0.0
    %1916 = vmatpush.xpose.msra.mxu0 0.0
    %1917 = vmatpush.xpose.msra.mxu0 0.0
    %1918 = vmatpush.xpose.msra.mxu0 0.0
    %1919 = vmatpush.xpose.msra.mxu0 %v1907
    %1920 = vmatpush.xpose.msra.mxu0 %v1904
    %1921 = vmatpush.xpose.msra.mxu0 %v1901
    %1922 = vmatpush.xpose.msra.mxu0 %v1898
    %1923 = vmatpush.xpose.msra.mxu0 %v1895
    %1924 = vmatpush.xpose.msra.mxu0 %v1892
    %1925 = vmatmul.f32.gmra.mxu0 %v1874
    %v1926 = vpop.f32.mrf.mxu0
    %v1927 = vadd.f32 %v174, %v1926
    %1928 = vmatmul.f32.gmra.mxu0 %v1877
    %v1929 = vpop.f32.mrf.mxu0
    %v1930 = vadd.f32 %v175, %v1929
    %1931 = vmatmul.f32.gmra.mxu0 %v1880
    %v1932 = vpop.f32.mrf.mxu0
    %v1933 = vadd.f32 %v176, %v1932
    %1934 = vmatmul.f32.gmra.mxu0 %v1883
    %v1935 = vpop.f32.mrf.mxu0
    %v1936 = vadd.f32 %v177, %v1935
    %1937 = vmatmul.f32.gmra.mxu0 %v1886
    %v1938 = vpop.f32.mrf.mxu0
    %v1939 = vadd.f32 %v178, %v1938
    %1940 = vmatmul.f32.gmra.mxu0 %v1889
    %v1941 = vpop.f32.mrf.mxu0
    %v1942 = vadd.f32 %v179, %v1941
    %1943 = vdwg.mxu0
    %v1944 = vsel %vm392, %v1927, -inf
    %1945 = vmax.xlane.f32.xlu0 %v1944
    %v1946 = vpop.xlane.xlu0 %1945
    %v1947 = vsel %vm392, %v1930, -inf
    %1948 = vmax.xlane.f32.xlu0 %v1947
    %v1949 = vpop.xlane.xlu0 %1948
    %v1950 = vsel %vm392, %v1933, -inf
    %1951 = vmax.xlane.f32.xlu0 %v1950
    %v1952 = vpop.xlane.xlu0 %1951
    %v1953 = vsel %vm392, %v1936, -inf
    %1954 = vmax.xlane.f32.xlu0 %v1953
    %v1955 = vpop.xlane.xlu0 %1954
    %v1956 = vsel %vm392, %v1939, -inf
    %1957 = vmax.xlane.f32.xlu0 %v1956
    %v1958 = vpop.xlane.xlu0 %1957
    %v1959 = vsel %vm392, %v1942, -inf
    %1960 = vmax.xlane.f32.xlu0 %v1959
    %v1961 = vpop.xlane.xlu0 %1960
    %v1962 = vsub.f32 %v1927, %v1946
    %v1963 = vsub.f32 %v1930, %v1949
    %v1964 = vsub.f32 %v1933, %v1952
    %v1965 = vsub.f32 %v1936, %v1955
    %v1966 = vsub.f32 %v1939, %v1958
    %v1967 = vsub.f32 %v1942, %v1961
    %v1968 = vmul.f32 %v1962, 1.442695
    %v1969 = vpow.pop %v1968
    %v1970 = vmul.f32 %v1963, 1.442695
    %v1971 = vpow.pop %v1970
    %v1972 = vmul.f32 %v1964, 1.442695
    %v1973 = vpow.pop %v1972
    %v1974 = vmul.f32 %v1965, 1.442695
    %v1975 = vpow.pop %v1974
    %v1976 = vmul.f32 %v1966, 1.442695
    %v1977 = vpow.pop %v1976
    %v1978 = vmul.f32 %v1967, 1.442695
    %v1979 = vpow.pop %v1978
    %v1980 = vsel %vm392, %v1969, 0.0
    %1981 = vadd.xlane.f32.xlu0 %v1980
    %v1982 = vpop.xlane.xlu0 %1981
    %v1983 = vsel %vm392, %v1971, 0.0
    %1984 = vadd.xlane.f32.xlu0 %v1983
    %v1985 = vpop.xlane.xlu0 %1984
    %v1986 = vsel %vm392, %v1973, 0.0
    %1987 = vadd.xlane.f32.xlu0 %v1986
    %v1988 = vpop.xlane.xlu0 %1987
    %v1989 = vsel %vm392, %v1975, 0.0
    %1990 = vadd.xlane.f32.xlu0 %v1989
    %v1991 = vpop.xlane.xlu0 %1990
    %v1992 = vsel %vm392, %v1977, 0.0
    %1993 = vadd.xlane.f32.xlu0 %v1992
    %v1994 = vpop.xlane.xlu0 %1993
    %v1995 = vsel %vm392, %v1979, 0.0
    %1996 = vadd.xlane.f32.xlu0 %v1995
    %v1997 = vpop.xlane.xlu0 %1996
    %v1998 = vrcp.pop %v1982
    %v1999 = vrcp.pop %v1985
    %v2000 = vrcp.pop %v1988
    %v2001 = vrcp.pop %v1991
    %v2002 = vrcp.pop %v1994
    %v2003 = vrcp.pop %v1997
    %v2004 = vmul.f32 %v1969, %v1998
    %v2005 = vmul.f32 %v1971, %v1999
    %v2006 = vmul.f32 %v1973, %v2000
    %v2007 = vmul.f32 %v1975, %v2001
    %v2008 = vmul.f32 %v1977, %v2002
    %v2009 = vmul.f32 %v1979, %v2003
    %s2010 = scalar_lea.vmem %s2, 288
    %v2011 = vld [vmem:[%s2010] sm:$0xff]
    %v2012 = vld [vmem:[%s2010 + $0x8] sm:$0xff]
    %v2013 = vld [vmem:[%s2010 + $0x10] sm:$0xff]
    %v2014 = vld [vmem:[%s2010 + $0x18] sm:$0xff]
    %2015 = vmatpush.msra.mxu0 0.0
    %2016 = vmatpush.msra.mxu0 0.0
    %2017 = vmatpush.msra.mxu0 0.0
    %2018 = vmatpush.msra.mxu0 0.0
    %2019 = vmatpush.msra.mxu0 0.0
    %2020 = vmatpush.msra.mxu0 0.0
    %2021 = vmatpush.msra.mxu0 0.0
    %2022 = vmatpush.msra.mxu0 0.0
    %2023 = vmatpush.msra.mxu0 0.0
    %2024 = vmatpush.msra.mxu0 0.0
    %2025 = vmatpush.msra.mxu0 0.0
    %2026 = vmatpush.msra.mxu0 0.0
    %2027 = vmatpush.msra.mxu0 %v2014
    %2028 = vmatpush.msra.mxu0 %v2013
    %2029 = vmatpush.msra.mxu0 %v2012
    %2030 = vmatpush.msra.mxu0 %v2011
    %2031 = vmatmul.f32.gmra.mxu0 %v1741
    %v2032 = vpop.f32.mrf.mxu0
    %v2033 = vadd.f32 0.0, %v2032
    %2034 = vmatmul.f32.gmra.mxu0 %v1744
    %v2035 = vpop.f32.mrf.mxu0
    %v2036 = vadd.f32 0.0, %v2035
    %2037 = vmatmul.f32.gmra.mxu0 %v1747
    %v2038 = vpop.f32.mrf.mxu0
    %v2039 = vadd.f32 0.0, %v2038
    %2040 = vmatmul.f32.gmra.mxu0 %v1750
    %v2041 = vpop.f32.mrf.mxu0
    %v2042 = vadd.f32 0.0, %v2041
    %2043 = vmatmul.f32.gmra.mxu0 %v1753
    %v2044 = vpop.f32.mrf.mxu0
    %v2045 = vadd.f32 0.0, %v2044
    %2046 = vmatmul.f32.gmra.mxu0 %v1756
    %v2047 = vpop.f32.mrf.mxu0
    %v2048 = vadd.f32 0.0, %v2047
    %2049 = vdwg.mxu0
    %2050 = vrot.lane.b32.xlu0 %v1776, 120
    %v2051 = vpop.permute.xlu0 %2050
    %2052 = vrot.lane.b32.xlu0 %v1779, 120
    %v2053 = vpop.permute.xlu0 %2052
    %2054 = vrot.lane.b32.xlu0 %v1782, 120
    %v2055 = vpop.permute.xlu0 %2054
    %2056 = vrot.lane.b32.xlu0 %v1785, 120
    %v2057 = vpop.permute.xlu0 %2056
    %2058 = vrot.lane.b32.xlu0 %v1788, 120
    %v2059 = vpop.permute.xlu0 %2058
    %2060 = vrot.lane.b32.xlu0 %v1791, 120
    %v2061 = vpop.permute.xlu0 %2060
    %2062 = vrot.lane.b32.xlu0 %v1816, 120
    %v2063 = vpop.permute.xlu0 %2062
    %2064 = vrot.lane.b32.xlu0 %v1819, 120
    %v2065 = vpop.permute.xlu0 %2064
    %2066 = vrot.lane.b32.xlu0 %v1822, 120
    %v2067 = vpop.permute.xlu0 %2066
    %2068 = vrot.lane.b32.xlu0 %v1825, 120
    %v2069 = vpop.permute.xlu0 %2068
    %2070 = vrot.lane.b32.xlu0 %v1828, 120
    %v2071 = vpop.permute.xlu0 %2070
    %2072 = vrot.lane.b32.xlu0 %v1831, 120
    %v2073 = vpop.permute.xlu0 %2072
    %v2074 = vsel %vm320, %v2051, 0
    %v2076 = vsel %vm320, %v2053, 0
    %v2078 = vsel %vm320, %v2055, 0
    %v2080 = vsel %vm320, %v2057, 0
    %v2082 = vsel %vm320, %v2059, 0
    %v2084 = vsel %vm320, %v2061, 0
    %v2086 = vsel %vm320, %v2063, 0
    %v2088 = vsel %vm320, %v2065, 0
    %v2090 = vsel %vm320, %v2067, 0
    %v2092 = vsel %vm320, %v2069, 0
    %v2094 = vsel %vm320, %v2071, 0
    %v2096 = vsel %vm320, %v2073, 0
    %2098 = vmatpush.xpose.msra.mxu0 0.0
    %2099 = vmatpush.xpose.msra.mxu0 0.0
    %2100 = vmatpush.xpose.msra.mxu0 0.0
    %2101 = vmatpush.xpose.msra.mxu0 0.0
    %2102 = vmatpush.xpose.msra.mxu0 0.0
    %2103 = vmatpush.xpose.msra.mxu0 0.0
    %2104 = vmatpush.xpose.msra.mxu0 0.0
    %2105 = vmatpush.xpose.msra.mxu0 0.0
    %2106 = vmatpush.xpose.msra.mxu0 0.0
    %2107 = vmatpush.xpose.msra.mxu0 0.0
    %2108 = vmatpush.xpose.msra.mxu0 %v2096
    %2109 = vmatpush.xpose.msra.mxu0 %v2094
    %2110 = vmatpush.xpose.msra.mxu0 %v2092
    %2111 = vmatpush.xpose.msra.mxu0 %v2090
    %2112 = vmatpush.xpose.msra.mxu0 %v2088
    %2113 = vmatpush.xpose.msra.mxu0 %v2086
    %2114 = vmatmul.f32.gmra.mxu0 %v2074
    %v2115 = vpop.f32.mrf.mxu0
    %v2116 = vadd.f32 %v174, %v2115
    %2117 = vmatmul.f32.gmra.mxu0 %v2076
    %v2118 = vpop.f32.mrf.mxu0
    %v2119 = vadd.f32 %v175, %v2118
    %2120 = vmatmul.f32.gmra.mxu0 %v2078
    %v2121 = vpop.f32.mrf.mxu0
    %v2122 = vadd.f32 %v176, %v2121
    %2123 = vmatmul.f32.gmra.mxu0 %v2080
    %v2124 = vpop.f32.mrf.mxu0
    %v2125 = vadd.f32 %v177, %v2124
    %2126 = vmatmul.f32.gmra.mxu0 %v2082
    %v2127 = vpop.f32.mrf.mxu0
    %v2128 = vadd.f32 %v178, %v2127
    %2129 = vmatmul.f32.gmra.mxu0 %v2084
    %v2130 = vpop.f32.mrf.mxu0
    %v2131 = vadd.f32 %v179, %v2130
    %2132 = vdwg.mxu0
    %v2133 = vsel %vm392, %v2116, -inf
    %2134 = vmax.xlane.f32.xlu0 %v2133
    %v2135 = vpop.xlane.xlu0 %2134
    %v2136 = vsel %vm392, %v2119, -inf
    %2137 = vmax.xlane.f32.xlu0 %v2136
    %v2138 = vpop.xlane.xlu0 %2137
    %v2139 = vsel %vm392, %v2122, -inf
    %2140 = vmax.xlane.f32.xlu0 %v2139
    %v2141 = vpop.xlane.xlu0 %2140
    %v2142 = vsel %vm392, %v2125, -inf
    %2143 = vmax.xlane.f32.xlu0 %v2142
    %v2144 = vpop.xlane.xlu0 %2143
    %v2145 = vsel %vm392, %v2128, -inf
    %2146 = vmax.xlane.f32.xlu0 %v2145
    %v2147 = vpop.xlane.xlu0 %2146
    %v2148 = vsel %vm392, %v2131, -inf
    %2149 = vmax.xlane.f32.xlu0 %v2148
    %v2150 = vpop.xlane.xlu0 %2149
    %v2151 = vsub.f32 %v2116, %v2135
    %v2152 = vsub.f32 %v2119, %v2138
    %v2153 = vsub.f32 %v2122, %v2141
    %v2154 = vsub.f32 %v2125, %v2144
    %v2155 = vsub.f32 %v2128, %v2147
    %v2156 = vsub.f32 %v2131, %v2150
    %v2157 = vmul.f32 %v2151, 1.442695
    %v2158 = vpow.pop %v2157
    %v2159 = vmul.f32 %v2152, 1.442695
    %v2160 = vpow.pop %v2159
    %v2161 = vmul.f32 %v2153, 1.442695
    %v2162 = vpow.pop %v2161
    %v2163 = vmul.f32 %v2154, 1.442695
    %v2164 = vpow.pop %v2163
    %v2165 = vmul.f32 %v2155, 1.442695
    %v2166 = vpow.pop %v2165
    %v2167 = vmul.f32 %v2156, 1.442695
    %v2168 = vpow.pop %v2167
    %v2169 = vsel %vm392, %v2158, 0.0
    %2170 = vadd.xlane.f32.xlu0 %v2169
    %v2171 = vpop.xlane.xlu0 %2170
    %v2172 = vsel %vm392, %v2160, 0.0
    %2173 = vadd.xlane.f32.xlu0 %v2172
    %v2174 = vpop.xlane.xlu0 %2173
    %v2175 = vsel %vm392, %v2162, 0.0
    %2176 = vadd.xlane.f32.xlu0 %v2175
    %v2177 = vpop.xlane.xlu0 %2176
    %v2178 = vsel %vm392, %v2164, 0.0
    %2179 = vadd.xlane.f32.xlu0 %v2178
    %v2180 = vpop.xlane.xlu0 %2179
    %v2181 = vsel %vm392, %v2166, 0.0
    %2182 = vadd.xlane.f32.xlu0 %v2181
    %v2183 = vpop.xlane.xlu0 %2182
    %v2184 = vsel %vm392, %v2168, 0.0
    %2185 = vadd.xlane.f32.xlu0 %v2184
    %v2186 = vpop.xlane.xlu0 %2185
    %v2187 = vrcp.pop %v2171
    %v2188 = vrcp.pop %v2174
    %v2189 = vrcp.pop %v2177
    %v2190 = vrcp.pop %v2180
    %v2191 = vrcp.pop %v2183
    %v2192 = vrcp.pop %v2186
    %v2193 = vmul.f32 %v2158, %v2187
    %v2194 = vmul.f32 %v2160, %v2188
    %v2195 = vmul.f32 %v2162, %v2189
    %v2196 = vmul.f32 %v2164, %v2190
    %v2197 = vmul.f32 %v2166, %v2191
    %v2198 = vmul.f32 %v2168, %v2192
    %v2200 = vsel %vm392, %v2193, 0
    %v2203 = vsel %vm392, %v2194, 0
    %v2206 = vsel %vm392, %v2195, 0
    %v2209 = vsel %vm392, %v2196, 0
    %v2212 = vsel %vm392, %v2197, 0
    %v2215 = vsel %vm392, %v2198, 0
    %2217 = vmatpush.msra.mxu0 0.0
    %2218 = vmatpush.msra.mxu0 0.0
    %2219 = vmatpush.msra.mxu0 0.0
    %2220 = vmatpush.msra.mxu0 0.0
    %2221 = vmatpush.msra.mxu0 0.0
    %2222 = vmatpush.msra.mxu0 0.0
    %2223 = vmatpush.msra.mxu0 0.0
    %2224 = vmatpush.msra.mxu0 0.0
    %2225 = vmatpush.msra.mxu0 0.0
    %2226 = vmatpush.msra.mxu0 0.0
    %2227 = vmatpush.msra.mxu0 %v2048
    %2228 = vmatpush.msra.mxu0 %v2045
    %2229 = vmatpush.msra.mxu0 %v2042
    %2230 = vmatpush.msra.mxu0 %v2039
    %2231 = vmatpush.msra.mxu0 %v2036
    %2232 = vmatpush.msra.mxu0 %v2033
    %2233 = vmatmul.f32.gmra.mxu0 %v2200
    %v2234 = vpop.f32.mrf.mxu0
    %v2235 = vadd.f32 0.0, %v2234
    %2236 = vmatmul.f32.gmra.mxu0 %v2203
    %v2237 = vpop.f32.mrf.mxu0
    %v2238 = vadd.f32 0.0, %v2237
    %2239 = vmatmul.f32.gmra.mxu0 %v2206
    %v2240 = vpop.f32.mrf.mxu0
    %v2241 = vadd.f32 0.0, %v2240
    %2242 = vmatmul.f32.gmra.mxu0 %v2209
    %v2243 = vpop.f32.mrf.mxu0
    %v2244 = vadd.f32 0.0, %v2243
    %2245 = vmatmul.f32.gmra.mxu0 %v2212
    %v2246 = vpop.f32.mrf.mxu0
    %v2247 = vadd.f32 0.0, %v2246
    %2248 = vmatmul.f32.gmra.mxu0 %v2215
    %v2249 = vpop.f32.mrf.mxu0
    %v2250 = vadd.f32 0.0, %v2249
    %2251 = vdwg.mxu0
    %v2253 = vsel %vm392, %v2004, 0
    %v2256 = vsel %vm392, %v2005, 0
    %v2259 = vsel %vm392, %v2006, 0
    %v2262 = vsel %vm392, %v2007, 0
    %v2265 = vsel %vm392, %v2008, 0
    %v2268 = vsel %vm392, %v2009, 0
    %2270 = vmatpush.msra.mxu0 0.0
    %2271 = vmatpush.msra.mxu0 0.0
    %2272 = vmatpush.msra.mxu0 0.0
    %2273 = vmatpush.msra.mxu0 0.0
    %2274 = vmatpush.msra.mxu0 0.0
    %2275 = vmatpush.msra.mxu0 0.0
    %2276 = vmatpush.msra.mxu0 0.0
    %2277 = vmatpush.msra.mxu0 0.0
    %2278 = vmatpush.msra.mxu0 0.0
    %2279 = vmatpush.msra.mxu0 0.0
    %2280 = vmatpush.msra.mxu0 %v1871
    %2281 = vmatpush.msra.mxu0 %v1868
    %2282 = vmatpush.msra.mxu0 %v1865
    %2283 = vmatpush.msra.mxu0 %v1862
    %2284 = vmatpush.msra.mxu0 %v1859
    %2285 = vmatpush.msra.mxu0 %v1856
    %2286 = vmatmul.f32.gmra.mxu0 %v2253
    %v2287 = vpop.f32.mrf.mxu0
    %v2288 = vadd.f32 %v2235, %v2287
    %2289 = vmatmul.f32.gmra.mxu0 %v2256
    %v2290 = vpop.f32.mrf.mxu0
    %v2291 = vadd.f32 %v2238, %v2290
    %2292 = vmatmul.f32.gmra.mxu0 %v2259
    %v2293 = vpop.f32.mrf.mxu0
    %v2294 = vadd.f32 %v2241, %v2293
    %2295 = vmatmul.f32.gmra.mxu0 %v2262
    %v2296 = vpop.f32.mrf.mxu0
    %v2297 = vadd.f32 %v2244, %v2296
    %2298 = vmatmul.f32.gmra.mxu0 %v2265
    %v2299 = vpop.f32.mrf.mxu0
    %v2300 = vadd.f32 %v2247, %v2299
    %2301 = vmatmul.f32.gmra.mxu0 %v2268
    %v2302 = vpop.f32.mrf.mxu0
    %v2303 = vadd.f32 %v2250, %v2302
    %2304 = vdwg.mxu0
    %s2305 = scalar_lea.vmem %s2, 320
    %v2306 = vld [vmem:[%s2305] sm:$0xff]
    %v2307 = vld [vmem:[%s2305 + $0x8] sm:$0xff]
    %v2308 = vld [vmem:[%s2305 + $0x10] sm:$0xff]
    %v2309 = vld [vmem:[%s2305 + $0x18] sm:$0xff]
    %2310 = vmatpush.msra.mxu0 0.0
    %2311 = vmatpush.msra.mxu0 0.0
    %2312 = vmatpush.msra.mxu0 0.0
    %2313 = vmatpush.msra.mxu0 0.0
    %2314 = vmatpush.msra.mxu0 0.0
    %2315 = vmatpush.msra.mxu0 0.0
    %2316 = vmatpush.msra.mxu0 0.0
    %2317 = vmatpush.msra.mxu0 0.0
    %2318 = vmatpush.msra.mxu0 0.0
    %2319 = vmatpush.msra.mxu0 0.0
    %2320 = vmatpush.msra.mxu0 0.0
    %2321 = vmatpush.msra.mxu0 0.0
    %2322 = vmatpush.msra.mxu0 %v2309
    %2323 = vmatpush.msra.mxu0 %v2308
    %2324 = vmatpush.msra.mxu0 %v2307
    %2325 = vmatpush.msra.mxu0 %v2306
    %2326 = vmatmul.f32.gmra.mxu0 %v1741
    %v2327 = vpop.f32.mrf.mxu0
    %v2328 = vadd.f32 0.0, %v2327
    %2329 = vmatmul.f32.gmra.mxu0 %v1744
    %v2330 = vpop.f32.mrf.mxu0
    %v2331 = vadd.f32 0.0, %v2330
    %2332 = vmatmul.f32.gmra.mxu0 %v1747
    %v2333 = vpop.f32.mrf.mxu0
    %v2334 = vadd.f32 0.0, %v2333
    %2335 = vmatmul.f32.gmra.mxu0 %v1750
    %v2336 = vpop.f32.mrf.mxu0
    %v2337 = vadd.f32 0.0, %v2336
    %2338 = vmatmul.f32.gmra.mxu0 %v1753
    %v2339 = vpop.f32.mrf.mxu0
    %v2340 = vadd.f32 0.0, %v2339
    %2341 = vmatmul.f32.gmra.mxu0 %v1756
    %v2342 = vpop.f32.mrf.mxu0
    %v2343 = vadd.f32 0.0, %v2342
    %2344 = vdwg.mxu0
    %2345 = vrot.lane.b32.xlu0 %v1776, 112
    %v2346 = vpop.permute.xlu0 %2345
    %2347 = vrot.lane.b32.xlu0 %v1779, 112
    %v2348 = vpop.permute.xlu0 %2347
    %2349 = vrot.lane.b32.xlu0 %v1782, 112
    %v2350 = vpop.permute.xlu0 %2349
    %2351 = vrot.lane.b32.xlu0 %v1785, 112
    %v2352 = vpop.permute.xlu0 %2351
    %2353 = vrot.lane.b32.xlu0 %v1788, 112
    %v2354 = vpop.permute.xlu0 %2353
    %2355 = vrot.lane.b32.xlu0 %v1791, 112
    %v2356 = vpop.permute.xlu0 %2355
    %2357 = vrot.lane.b32.xlu0 %v1816, 112
    %v2358 = vpop.permute.xlu0 %2357
    %2359 = vrot.lane.b32.xlu0 %v1819, 112
    %v2360 = vpop.permute.xlu0 %2359
    %2361 = vrot.lane.b32.xlu0 %v1822, 112
    %v2362 = vpop.permute.xlu0 %2361
    %2363 = vrot.lane.b32.xlu0 %v1825, 112
    %v2364 = vpop.permute.xlu0 %2363
    %2365 = vrot.lane.b32.xlu0 %v1828, 112
    %v2366 = vpop.permute.xlu0 %2365
    %2367 = vrot.lane.b32.xlu0 %v1831, 112
    %v2368 = vpop.permute.xlu0 %2367
    %v2369 = vsel %vm320, %v2346, 0
    %v2371 = vsel %vm320, %v2348, 0
    %v2373 = vsel %vm320, %v2350, 0
    %v2375 = vsel %vm320, %v2352, 0
    %v2377 = vsel %vm320, %v2354, 0
    %v2379 = vsel %vm320, %v2356, 0
    %v2381 = vsel %vm320, %v2358, 0
    %v2383 = vsel %vm320, %v2360, 0
    %v2385 = vsel %vm320, %v2362, 0
    %v2387 = vsel %vm320, %v2364, 0
    %v2389 = vsel %vm320, %v2366, 0
    %v2391 = vsel %vm320, %v2368, 0
    %2393 = vmatpush.xpose.msra.mxu0 0.0
    %2394 = vmatpush.xpose.msra.mxu0 0.0
    %2395 = vmatpush.xpose.msra.mxu0 0.0
    %2396 = vmatpush.xpose.msra.mxu0 0.0
    %2397 = vmatpush.xpose.msra.mxu0 0.0
    %2398 = vmatpush.xpose.msra.mxu0 0.0
    %2399 = vmatpush.xpose.msra.mxu0 0.0
    %2400 = vmatpush.xpose.msra.mxu0 0.0
    %2401 = vmatpush.xpose.msra.mxu0 0.0
    %2402 = vmatpush.xpose.msra.mxu0 0.0
    %2403 = vmatpush.xpose.msra.mxu0 %v2391
    %2404 = vmatpush.xpose.msra.mxu0 %v2389
    %2405 = vmatpush.xpose.msra.mxu0 %v2387
    %2406 = vmatpush.xpose.msra.mxu0 %v2385
    %2407 = vmatpush.xpose.msra.mxu0 %v2383
    %2408 = vmatpush.xpose.msra.mxu0 %v2381
    %2409 = vmatmul.f32.gmra.mxu0 %v2369
    %v2410 = vpop.f32.mrf.mxu0
    %v2411 = vadd.f32 %v174, %v2410
    %2412 = vmatmul.f32.gmra.mxu0 %v2371
    %v2413 = vpop.f32.mrf.mxu0
    %v2414 = vadd.f32 %v175, %v2413
    %2415 = vmatmul.f32.gmra.mxu0 %v2373
    %v2416 = vpop.f32.mrf.mxu0
    %v2417 = vadd.f32 %v176, %v2416
    %2418 = vmatmul.f32.gmra.mxu0 %v2375
    %v2419 = vpop.f32.mrf.mxu0
    %v2420 = vadd.f32 %v177, %v2419
    %2421 = vmatmul.f32.gmra.mxu0 %v2377
    %v2422 = vpop.f32.mrf.mxu0
    %v2423 = vadd.f32 %v178, %v2422
    %2424 = vmatmul.f32.gmra.mxu0 %v2379
    %v2425 = vpop.f32.mrf.mxu0
    %v2426 = vadd.f32 %v179, %v2425
    %2427 = vdwg.mxu0
    %v2428 = vsel %vm392, %v2411, -inf
    %2429 = vmax.xlane.f32.xlu0 %v2428
    %v2430 = vpop.xlane.xlu0 %2429
    %v2431 = vsel %vm392, %v2414, -inf
    %2432 = vmax.xlane.f32.xlu0 %v2431
    %v2433 = vpop.xlane.xlu0 %2432
    %v2434 = vsel %vm392, %v2417, -inf
    %2435 = vmax.xlane.f32.xlu0 %v2434
    %v2436 = vpop.xlane.xlu0 %2435
    %v2437 = vsel %vm392, %v2420, -inf
    %2438 = vmax.xlane.f32.xlu0 %v2437
    %v2439 = vpop.xlane.xlu0 %2438
    %v2440 = vsel %vm392, %v2423, -inf
    %2441 = vmax.xlane.f32.xlu0 %v2440
    %v2442 = vpop.xlane.xlu0 %2441
    %v2443 = vsel %vm392, %v2426, -inf
    %2444 = vmax.xlane.f32.xlu0 %v2443
    %v2445 = vpop.xlane.xlu0 %2444
    %v2446 = vsub.f32 %v2411, %v2430
    %v2447 = vsub.f32 %v2414, %v2433
    %v2448 = vsub.f32 %v2417, %v2436
    %v2449 = vsub.f32 %v2420, %v2439
    %v2450 = vsub.f32 %v2423, %v2442
    %v2451 = vsub.f32 %v2426, %v2445
    %v2452 = vmul.f32 %v2446, 1.442695
    %v2453 = vpow.pop %v2452
    %v2454 = vmul.f32 %v2447, 1.442695
    %v2455 = vpow.pop %v2454
    %v2456 = vmul.f32 %v2448, 1.442695
    %v2457 = vpow.pop %v2456
    %v2458 = vmul.f32 %v2449, 1.442695
    %v2459 = vpow.pop %v2458
    %v2460 = vmul.f32 %v2450, 1.442695
    %v2461 = vpow.pop %v2460
    %v2462 = vmul.f32 %v2451, 1.442695
    %v2463 = vpow.pop %v2462
    %v2464 = vsel %vm392, %v2453, 0.0
    %2465 = vadd.xlane.f32.xlu0 %v2464
    %v2466 = vpop.xlane.xlu0 %2465
    %v2467 = vsel %vm392, %v2455, 0.0
    %2468 = vadd.xlane.f32.xlu0 %v2467
    %v2469 = vpop.xlane.xlu0 %2468
    %v2470 = vsel %vm392, %v2457, 0.0
    %2471 = vadd.xlane.f32.xlu0 %v2470
    %v2472 = vpop.xlane.xlu0 %2471
    %v2473 = vsel %vm392, %v2459, 0.0
    %2474 = vadd.xlane.f32.xlu0 %v2473
    %v2475 = vpop.xlane.xlu0 %2474
    %v2476 = vsel %vm392, %v2461, 0.0
    %2477 = vadd.xlane.f32.xlu0 %v2476
    %v2478 = vpop.xlane.xlu0 %2477
    %v2479 = vsel %vm392, %v2463, 0.0
    %2480 = vadd.xlane.f32.xlu0 %v2479
    %v2481 = vpop.xlane.xlu0 %2480
    %v2482 = vrcp.pop %v2466
    %v2483 = vrcp.pop %v2469
    %v2484 = vrcp.pop %v2472
    %v2485 = vrcp.pop %v2475
    %v2486 = vrcp.pop %v2478
    %v2487 = vrcp.pop %v2481
    %v2488 = vmul.f32 %v2453, %v2482
    %v2489 = vmul.f32 %v2455, %v2483
    %v2490 = vmul.f32 %v2457, %v2484
    %v2491 = vmul.f32 %v2459, %v2485
    %v2492 = vmul.f32 %v2461, %v2486
    %v2493 = vmul.f32 %v2463, %v2487
    %v2495 = vsel %vm392, %v2488, 0
    %v2498 = vsel %vm392, %v2489, 0
    %v2501 = vsel %vm392, %v2490, 0
    %v2504 = vsel %vm392, %v2491, 0
    %v2507 = vsel %vm392, %v2492, 0
    %v2510 = vsel %vm392, %v2493, 0
    %2512 = vmatpush.msra.mxu0 0.0
    %2513 = vmatpush.msra.mxu0 0.0
    %2514 = vmatpush.msra.mxu0 0.0
    %2515 = vmatpush.msra.mxu0 0.0
    %2516 = vmatpush.msra.mxu0 0.0
    %2517 = vmatpush.msra.mxu0 0.0
    %2518 = vmatpush.msra.mxu0 0.0
    %2519 = vmatpush.msra.mxu0 0.0
    %2520 = vmatpush.msra.mxu0 0.0
    %2521 = vmatpush.msra.mxu0 0.0
    %2522 = vmatpush.msra.mxu0 %v2343
    %2523 = vmatpush.msra.mxu0 %v2340
    %2524 = vmatpush.msra.mxu0 %v2337
    %2525 = vmatpush.msra.mxu0 %v2334
    %2526 = vmatpush.msra.mxu0 %v2331
    %2527 = vmatpush.msra.mxu0 %v2328
    %2528 = vmatmul.f32.gmra.mxu0 %v2495
    %v2529 = vpop.f32.mrf.mxu0
    %v2530 = vadd.f32 0.0, %v2529
    %2531 = vmatmul.f32.gmra.mxu0 %v2498
    %v2532 = vpop.f32.mrf.mxu0
    %v2533 = vadd.f32 0.0, %v2532
    %2534 = vmatmul.f32.gmra.mxu0 %v2501
    %v2535 = vpop.f32.mrf.mxu0
    %v2536 = vadd.f32 0.0, %v2535
    %2537 = vmatmul.f32.gmra.mxu0 %v2504
    %v2538 = vpop.f32.mrf.mxu0
    %v2539 = vadd.f32 0.0, %v2538
    %2540 = vmatmul.f32.gmra.mxu0 %v2507
    %v2541 = vpop.f32.mrf.mxu0
    %v2542 = vadd.f32 0.0, %v2541
    %2543 = vmatmul.f32.gmra.mxu0 %v2510
    %v2544 = vpop.f32.mrf.mxu0
    %v2545 = vadd.f32 0.0, %v2544
    %2546 = vdwg.mxu0
    %v2547 = vadd.f32 %v2288, %v2530
    %v2548 = vadd.f32 %v2291, %v2533
    %v2549 = vadd.f32 %v2294, %v2536
    %v2550 = vadd.f32 %v2297, %v2539
    %v2551 = vadd.f32 %v2300, %v2542
    %v2552 = vadd.f32 %v2303, %v2545
    %s2553 = scalar_lea.vmem %s2, 352
    %v2554 = vld [vmem:[%s2553] sm:$0xff]
    %v2555 = vld [vmem:[%s2553 + $0x8] sm:$0xff]
    %v2556 = vld [vmem:[%s2553 + $0x10] sm:$0xff]
    %v2557 = vld [vmem:[%s2553 + $0x18] sm:$0xff]
    %2558 = vmatpush.msra.mxu0 0.0
    %2559 = vmatpush.msra.mxu0 0.0
    %2560 = vmatpush.msra.mxu0 0.0
    %2561 = vmatpush.msra.mxu0 0.0
    %2562 = vmatpush.msra.mxu0 0.0
    %2563 = vmatpush.msra.mxu0 0.0
    %2564 = vmatpush.msra.mxu0 0.0
    %2565 = vmatpush.msra.mxu0 0.0
    %2566 = vmatpush.msra.mxu0 0.0
    %2567 = vmatpush.msra.mxu0 0.0
    %2568 = vmatpush.msra.mxu0 0.0
    %2569 = vmatpush.msra.mxu0 0.0
    %2570 = vmatpush.msra.mxu0 %v2557
    %2571 = vmatpush.msra.mxu0 %v2556
    %2572 = vmatpush.msra.mxu0 %v2555
    %2573 = vmatpush.msra.mxu0 %v2554
    %2574 = vmatmul.f32.gmra.mxu0 %v1741
    %v2575 = vpop.f32.mrf.mxu0
    %v2576 = vadd.f32 0.0, %v2575
    %2577 = vmatmul.f32.gmra.mxu0 %v1744
    %v2578 = vpop.f32.mrf.mxu0
    %v2579 = vadd.f32 0.0, %v2578
    %2580 = vmatmul.f32.gmra.mxu0 %v1747
    %v2581 = vpop.f32.mrf.mxu0
    %v2582 = vadd.f32 0.0, %v2581
    %2583 = vmatmul.f32.gmra.mxu0 %v1750
    %v2584 = vpop.f32.mrf.mxu0
    %v2585 = vadd.f32 0.0, %v2584
    %2586 = vmatmul.f32.gmra.mxu0 %v1753
    %v2587 = vpop.f32.mrf.mxu0
    %v2588 = vadd.f32 0.0, %v2587
    %2589 = vmatmul.f32.gmra.mxu0 %v1756
    %v2590 = vpop.f32.mrf.mxu0
    %v2591 = vadd.f32 0.0, %v2590
    %2592 = vdwg.mxu0
    %2593 = vrot.lane.b32.xlu0 %v1776, 104
    %v2594 = vpop.permute.xlu0 %2593
    %2595 = vrot.lane.b32.xlu0 %v1779, 104
    %v2596 = vpop.permute.xlu0 %2595
    %2597 = vrot.lane.b32.xlu0 %v1782, 104
    %v2598 = vpop.permute.xlu0 %2597
    %2599 = vrot.lane.b32.xlu0 %v1785, 104
    %v2600 = vpop.permute.xlu0 %2599
    %2601 = vrot.lane.b32.xlu0 %v1788, 104
    %v2602 = vpop.permute.xlu0 %2601
    %2603 = vrot.lane.b32.xlu0 %v1791, 104
    %v2604 = vpop.permute.xlu0 %2603
    %2605 = vrot.lane.b32.xlu0 %v1816, 104
    %v2606 = vpop.permute.xlu0 %2605
    %2607 = vrot.lane.b32.xlu0 %v1819, 104
    %v2608 = vpop.permute.xlu0 %2607
    %2609 = vrot.lane.b32.xlu0 %v1822, 104
    %v2610 = vpop.permute.xlu0 %2609
    %2611 = vrot.lane.b32.xlu0 %v1825, 104
    %v2612 = vpop.permute.xlu0 %2611
    %2613 = vrot.lane.b32.xlu0 %v1828, 104
    %v2614 = vpop.permute.xlu0 %2613
    %2615 = vrot.lane.b32.xlu0 %v1831, 104
    %v2616 = vpop.permute.xlu0 %2615
    %v2617 = vsel %vm320, %v2594, 0
    %v2619 = vsel %vm320, %v2596, 0
    %v2621 = vsel %vm320, %v2598, 0
    %v2623 = vsel %vm320, %v2600, 0
    %v2625 = vsel %vm320, %v2602, 0
    %v2627 = vsel %vm320, %v2604, 0
    %v2629 = vsel %vm320, %v2606, 0
    %v2631 = vsel %vm320, %v2608, 0
    %v2633 = vsel %vm320, %v2610, 0
    %v2635 = vsel %vm320, %v2612, 0
    %v2637 = vsel %vm320, %v2614, 0
    %v2639 = vsel %vm320, %v2616, 0
    %2641 = vmatpush.xpose.msra.mxu0 0.0
    %2642 = vmatpush.xpose.msra.mxu0 0.0
    %2643 = vmatpush.xpose.msra.mxu0 0.0
    %2644 = vmatpush.xpose.msra.mxu0 0.0
    %2645 = vmatpush.xpose.msra.mxu0 0.0
    %2646 = vmatpush.xpose.msra.mxu0 0.0
    %2647 = vmatpush.xpose.msra.mxu0 0.0
    %2648 = vmatpush.xpose.msra.mxu0 0.0
    %2649 = vmatpush.xpose.msra.mxu0 0.0
    %2650 = vmatpush.xpose.msra.mxu0 0.0
    %2651 = vmatpush.xpose.msra.mxu0 %v2639
    %2652 = vmatpush.xpose.msra.mxu0 %v2637
    %2653 = vmatpush.xpose.msra.mxu0 %v2635
    %2654 = vmatpush.xpose.msra.mxu0 %v2633
    %2655 = vmatpush.xpose.msra.mxu0 %v2631
    %2656 = vmatpush.xpose.msra.mxu0 %v2629
    %2657 = vmatmul.f32.gmra.mxu0 %v2617
    %v2658 = vpop.f32.mrf.mxu0
    %v2659 = vadd.f32 %v174, %v2658
    %2660 = vmatmul.f32.gmra.mxu0 %v2619
    %v2661 = vpop.f32.mrf.mxu0
    %v2662 = vadd.f32 %v175, %v2661
    %2663 = vmatmul.f32.gmra.mxu0 %v2621
    %v2664 = vpop.f32.mrf.mxu0
    %v2665 = vadd.f32 %v176, %v2664
    %2666 = vmatmul.f32.gmra.mxu0 %v2623
    %v2667 = vpop.f32.mrf.mxu0
    %v2668 = vadd.f32 %v177, %v2667
    %2669 = vmatmul.f32.gmra.mxu0 %v2625
    %v2670 = vpop.f32.mrf.mxu0
    %v2671 = vadd.f32 %v178, %v2670
    %2672 = vmatmul.f32.gmra.mxu0 %v2627
    %v2673 = vpop.f32.mrf.mxu0
    %v2674 = vadd.f32 %v179, %v2673
    %2675 = vdwg.mxu0
    %v2676 = vsel %vm392, %v2659, -inf
    %2677 = vmax.xlane.f32.xlu0 %v2676
    %v2678 = vpop.xlane.xlu0 %2677
    %v2679 = vsel %vm392, %v2662, -inf
    %2680 = vmax.xlane.f32.xlu0 %v2679
    %v2681 = vpop.xlane.xlu0 %2680
    %v2682 = vsel %vm392, %v2665, -inf
    %2683 = vmax.xlane.f32.xlu0 %v2682
    %v2684 = vpop.xlane.xlu0 %2683
    %v2685 = vsel %vm392, %v2668, -inf
    %2686 = vmax.xlane.f32.xlu0 %v2685
    %v2687 = vpop.xlane.xlu0 %2686
    %v2688 = vsel %vm392, %v2671, -inf
    %2689 = vmax.xlane.f32.xlu0 %v2688
    %v2690 = vpop.xlane.xlu0 %2689
    %v2691 = vsel %vm392, %v2674, -inf
    %2692 = vmax.xlane.f32.xlu0 %v2691
    %v2693 = vpop.xlane.xlu0 %2692
    %v2694 = vsub.f32 %v2659, %v2678
    %v2695 = vsub.f32 %v2662, %v2681
    %v2696 = vsub.f32 %v2665, %v2684
    %v2697 = vsub.f32 %v2668, %v2687
    %v2698 = vsub.f32 %v2671, %v2690
    %v2699 = vsub.f32 %v2674, %v2693
    %v2700 = vmul.f32 %v2694, 1.442695
    %v2701 = vpow.pop %v2700
    %v2702 = vmul.f32 %v2695, 1.442695
    %v2703 = vpow.pop %v2702
    %v2704 = vmul.f32 %v2696, 1.442695
    %v2705 = vpow.pop %v2704
    %v2706 = vmul.f32 %v2697, 1.442695
    %v2707 = vpow.pop %v2706
    %v2708 = vmul.f32 %v2698, 1.442695
    %v2709 = vpow.pop %v2708
    %v2710 = vmul.f32 %v2699, 1.442695
    %v2711 = vpow.pop %v2710
    %v2712 = vsel %vm392, %v2701, 0.0
    %2713 = vadd.xlane.f32.xlu0 %v2712
    %v2714 = vpop.xlane.xlu0 %2713
    %v2715 = vsel %vm392, %v2703, 0.0
    %2716 = vadd.xlane.f32.xlu0 %v2715
    %v2717 = vpop.xlane.xlu0 %2716
    %v2718 = vsel %vm392, %v2705, 0.0
    %2719 = vadd.xlane.f32.xlu0 %v2718
    %v2720 = vpop.xlane.xlu0 %2719
    %v2721 = vsel %vm392, %v2707, 0.0
    %2722 = vadd.xlane.f32.xlu0 %v2721
    %v2723 = vpop.xlane.xlu0 %2722
    %v2724 = vsel %vm392, %v2709, 0.0
    %2725 = vadd.xlane.f32.xlu0 %v2724
    %v2726 = vpop.xlane.xlu0 %2725
    %v2727 = vsel %vm392, %v2711, 0.0
    %2728 = vadd.xlane.f32.xlu0 %v2727
    %v2729 = vpop.xlane.xlu0 %2728
    %v2730 = vrcp.pop %v2714
    %v2731 = vrcp.pop %v2717
    %v2732 = vrcp.pop %v2720
    %v2733 = vrcp.pop %v2723
    %v2734 = vrcp.pop %v2726
    %v2735 = vrcp.pop %v2729
    %v2736 = vmul.f32 %v2701, %v2730
    %v2737 = vmul.f32 %v2703, %v2731
    %v2738 = vmul.f32 %v2705, %v2732
    %v2739 = vmul.f32 %v2707, %v2733
    %v2740 = vmul.f32 %v2709, %v2734
    %v2741 = vmul.f32 %v2711, %v2735
    %v2743 = vsel %vm392, %v2736, 0
    %v2746 = vsel %vm392, %v2737, 0
    %v2749 = vsel %vm392, %v2738, 0
    %v2752 = vsel %vm392, %v2739, 0
    %v2755 = vsel %vm392, %v2740, 0
    %v2758 = vsel %vm392, %v2741, 0
    %2760 = vmatpush.msra.mxu0 0.0
    %2761 = vmatpush.msra.mxu0 0.0
    %2762 = vmatpush.msra.mxu0 0.0
    %2763 = vmatpush.msra.mxu0 0.0
    %2764 = vmatpush.msra.mxu0 0.0
    %2765 = vmatpush.msra.mxu0 0.0
    %2766 = vmatpush.msra.mxu0 0.0
    %2767 = vmatpush.msra.mxu0 0.0
    %2768 = vmatpush.msra.mxu0 0.0
    %2769 = vmatpush.msra.mxu0 0.0
    %2770 = vmatpush.msra.mxu0 %v2591
    %2771 = vmatpush.msra.mxu0 %v2588
    %2772 = vmatpush.msra.mxu0 %v2585
    %2773 = vmatpush.msra.mxu0 %v2582
    %2774 = vmatpush.msra.mxu0 %v2579
    %2775 = vmatpush.msra.mxu0 %v2576
    %2776 = vmatmul.f32.gmra.mxu0 %v2743
    %v2777 = vpop.f32.mrf.mxu0
    %v2778 = vadd.f32 0.0, %v2777
    %2779 = vmatmul.f32.gmra.mxu0 %v2746
    %v2780 = vpop.f32.mrf.mxu0
    %v2781 = vadd.f32 0.0, %v2780
    %2782 = vmatmul.f32.gmra.mxu0 %v2749
    %v2783 = vpop.f32.mrf.mxu0
    %v2784 = vadd.f32 0.0, %v2783
    %2785 = vmatmul.f32.gmra.mxu0 %v2752
    %v2786 = vpop.f32.mrf.mxu0
    %v2787 = vadd.f32 0.0, %v2786
    %2788 = vmatmul.f32.gmra.mxu0 %v2755
    %v2789 = vpop.f32.mrf.mxu0
    %v2790 = vadd.f32 0.0, %v2789
    %2791 = vmatmul.f32.gmra.mxu0 %v2758
    %v2792 = vpop.f32.mrf.mxu0
    %v2793 = vadd.f32 0.0, %v2792
    %2794 = vdwg.mxu0
    %v2795 = vadd.f32 %v2547, %v2778
    %v2796 = vadd.f32 %v2548, %v2781
    %v2797 = vadd.f32 %v2549, %v2784
    %v2798 = vadd.f32 %v2550, %v2787
    %v2799 = vadd.f32 %v2551, %v2790
    %v2800 = vadd.f32 %v2552, %v2793
    %v2801 = vadd.f32 %v1726, %v2795
    %v2802 = vadd.f32 %v1727, %v2796
    %v2803 = vadd.f32 %v1728, %v2797
    %v2804 = vadd.f32 %v1729, %v2798
    %v2805 = vadd.f32 %v1730, %v2799
    %v2806 = vadd.f32 %v1731, %v2800
    %v2807 = vperm.slane %v1733, 1
    %v2808 = vadd.f32 %v2801, %v2807
    %v2809 = vadd.f32 %v2802, %v2807
    %v2810 = vadd.f32 %v2803, %v2807
    %v2811 = vadd.f32 %v2804, %v2807
    %v2812 = vadd.f32 %v2805, %v2807
    %v2813 = vadd.f32 %v2806, %v2807
    %v2814 = vsel %vm186, %v2808, 0.0
    %2815 = vadd.xlane.f32.xlu0 %v2814
    %v2816 = vpop.xlane.xlu0 %2815
    %v2817 = vsel %vm186, %v2809, 0.0
    %2818 = vadd.xlane.f32.xlu0 %v2817
    %v2819 = vpop.xlane.xlu0 %2818
    %v2820 = vsel %vm186, %v2810, 0.0
    %2821 = vadd.xlane.f32.xlu0 %v2820
    %v2822 = vpop.xlane.xlu0 %2821
    %v2823 = vsel %vm186, %v2811, 0.0
    %2824 = vadd.xlane.f32.xlu0 %v2823
    %v2825 = vpop.xlane.xlu0 %2824
    %v2826 = vsel %vm186, %v2812, 0.0
    %2827 = vadd.xlane.f32.xlu0 %v2826
    %v2828 = vpop.xlane.xlu0 %2827
    %v2829 = vsel %vm186, %v2813, 0.0
    %2830 = vadd.xlane.f32.xlu0 %v2829
    %v2831 = vpop.xlane.xlu0 %2830
    %v2832 = vmul.f32 %v2816, %v1287
    %v2833 = vmul.f32 %v2819, %v1287
    %v2834 = vmul.f32 %v2822, %v1287
    %v2835 = vmul.f32 %v2825, %v1287
    %v2836 = vmul.f32 %v2828, %v1287
    %v2837 = vmul.f32 %v2831, %v1287
    %v2838 = vsub.f32 %v2808, %v2832
    %v2839 = vsub.f32 %v2809, %v2833
    %v2840 = vsub.f32 %v2810, %v2834
    %v2841 = vsub.f32 %v2811, %v2835
    %v2842 = vsub.f32 %v2812, %v2836
    %v2843 = vsub.f32 %v2813, %v2837
    %v2844 = vmul.f32 %v2838, %v2838
    %v2845 = vmul.f32 %v2839, %v2839
    %v2846 = vmul.f32 %v2840, %v2840
    %v2847 = vmul.f32 %v2841, %v2841
    %v2848 = vmul.f32 %v2842, %v2842
    %v2849 = vmul.f32 %v2843, %v2843
    %v2850 = vsel %vm186, %v2844, 0.0
    %2851 = vadd.xlane.f32.xlu0 %v2850
    %v2852 = vpop.xlane.xlu0 %2851
    %v2853 = vsel %vm186, %v2845, 0.0
    %2854 = vadd.xlane.f32.xlu0 %v2853
    %v2855 = vpop.xlane.xlu0 %2854
    %v2856 = vsel %vm186, %v2846, 0.0
    %2857 = vadd.xlane.f32.xlu0 %v2856
    %v2858 = vpop.xlane.xlu0 %2857
    %v2859 = vsel %vm186, %v2847, 0.0
    %2860 = vadd.xlane.f32.xlu0 %v2859
    %v2861 = vpop.xlane.xlu0 %2860
    %v2862 = vsel %vm186, %v2848, 0.0
    %2863 = vadd.xlane.f32.xlu0 %v2862
    %v2864 = vpop.xlane.xlu0 %2863
    %v2865 = vsel %vm186, %v2849, 0.0
    %2866 = vadd.xlane.f32.xlu0 %v2865
    %v2867 = vpop.xlane.xlu0 %2866
    %v2868 = vmul.f32 %v2852, %v1287
    %v2869 = vmul.f32 %v2855, %v1287
    %v2870 = vmul.f32 %v2858, %v1287
    %v2871 = vmul.f32 %v2861, %v1287
    %v2872 = vmul.f32 %v2864, %v1287
    %v2873 = vmul.f32 %v2867, %v1287
    %v2874 = vadd.f32 %v2868, 1e-05
    %v2875 = vadd.f32 %v2869, 1e-05
    %v2876 = vadd.f32 %v2870, 1e-05
    %v2877 = vadd.f32 %v2871, 1e-05
    %v2878 = vadd.f32 %v2872, 1e-05
    %v2879 = vadd.f32 %v2873, 1e-05
    %v2880 = vrsqrt.pop %v2874
    %v2881 = vmul.f32 %v2880, %v2874
    %v2882 = vmul.f32 %v2881, %v2880
    %v2883 = vmul.f32 0.5, %v2882
    %v2884 = vsub.f32 1.5, %v2883
    %v2885 = vmul.f32 %v2880, %v2884
    %vm2886 = vweird.f32 %v2874
    %vm2887 = vweird.f32 %v2880
    %vm2888 = vmor %vm2886, %vm2887
    %v2889 = vsel %vm2888, %v2880, %v2885
    %v2890 = vrsqrt.pop %v2875
    %v2891 = vmul.f32 %v2890, %v2875
    %v2892 = vmul.f32 %v2891, %v2890
    %v2893 = vmul.f32 0.5, %v2892
    %v2894 = vsub.f32 1.5, %v2893
    %v2895 = vmul.f32 %v2890, %v2894
    %vm2896 = vweird.f32 %v2875
    %vm2897 = vweird.f32 %v2890
    %vm2898 = vmor %vm2896, %vm2897
    %v2899 = vsel %vm2898, %v2890, %v2895
    %v2900 = vrsqrt.pop %v2876
    %v2901 = vmul.f32 %v2900, %v2876
    %v2902 = vmul.f32 %v2901, %v2900
    %v2903 = vmul.f32 0.5, %v2902
    %v2904 = vsub.f32 1.5, %v2903
    %v2905 = vmul.f32 %v2900, %v2904
    %vm2906 = vweird.f32 %v2876
    %vm2907 = vweird.f32 %v2900
    %vm2908 = vmor %vm2906, %vm2907
    %v2909 = vsel %vm2908, %v2900, %v2905
    %v2910 = vrsqrt.pop %v2877
    %v2911 = vmul.f32 %v2910, %v2877
    %v2912 = vmul.f32 %v2911, %v2910
    %v2913 = vmul.f32 0.5, %v2912
    %v2914 = vsub.f32 1.5, %v2913
    %v2915 = vmul.f32 %v2910, %v2914
    %vm2916 = vweird.f32 %v2877
    %vm2917 = vweird.f32 %v2910
    %vm2918 = vmor %vm2916, %vm2917
    %v2919 = vsel %vm2918, %v2910, %v2915
    %v2920 = vrsqrt.pop %v2878
    %v2921 = vmul.f32 %v2920, %v2878
    %v2922 = vmul.f32 %v2921, %v2920
    %v2923 = vmul.f32 0.5, %v2922
    %v2924 = vsub.f32 1.5, %v2923
    %v2925 = vmul.f32 %v2920, %v2924
    %vm2926 = vweird.f32 %v2878
    %vm2927 = vweird.f32 %v2920
    %vm2928 = vmor %vm2926, %vm2927
    %v2929 = vsel %vm2928, %v2920, %v2925
    %v2930 = vrsqrt.pop %v2879
    %v2931 = vmul.f32 %v2930, %v2879
    %v2932 = vmul.f32 %v2931, %v2930
    %v2933 = vmul.f32 0.5, %v2932
    %v2934 = vsub.f32 1.5, %v2933
    %v2935 = vmul.f32 %v2930, %v2934
    %vm2936 = vweird.f32 %v2879
    %vm2937 = vweird.f32 %v2930
    %vm2938 = vmor %vm2936, %vm2937
    %v2939 = vsel %vm2938, %v2930, %v2935
    %v2940 = vmul.f32 %v2838, %v2889
    %v2941 = vmul.f32 %v2839, %v2899
    %v2942 = vmul.f32 %v2840, %v2909
    %v2943 = vmul.f32 %v2841, %v2919
    %v2944 = vmul.f32 %v2842, %v2929
    %v2945 = vmul.f32 %v2843, %v2939
    %v2946 = vperm.slane %v1733, 4
    %v2947 = vmul.f32 %v2940, %v2946
    %v2948 = vmul.f32 %v2941, %v2946
    %v2949 = vmul.f32 %v2942, %v2946
    %v2950 = vmul.f32 %v2943, %v2946
    %v2951 = vmul.f32 %v2944, %v2946
    %v2952 = vmul.f32 %v2945, %v2946
    %v2953 = vperm.slane %v1733, 5
    %v2954 = vadd.f32 %v2947, %v2953
    %v2955 = vadd.f32 %v2948, %v2953
    %v2956 = vadd.f32 %v2949, %v2953
    %v2957 = vadd.f32 %v2950, %v2953
    %v2958 = vadd.f32 %v2951, %v2953
    %v2959 = vadd.f32 %v2952, %v2953
    %s2960 = scalar_lea.vmem %s3, 32
    %v2961 = vld [vmem:[%s2960] sm:$0xff]
    %v2962 = vld [vmem:[%s2960 + $0x8] sm:$0xff]
    %v2963 = vld [vmem:[%s2960 + $0x10] sm:$0xff]
    %v2964 = vld [vmem:[%s2960 + $0x18] sm:$0xff]
    %v2965 = vperm.slane %v1733, 2
    %v2967 = vsel %vm186, %v2954, 0
    %v2970 = vsel %vm186, %v2955, 0
    %v2973 = vsel %vm186, %v2956, 0
    %v2976 = vsel %vm186, %v2957, 0
    %v2979 = vsel %vm186, %v2958, 0
    %v2982 = vsel %vm186, %v2959, 0
    %2984 = vmatpush.msra.mxu0 0.0
    %2985 = vmatpush.msra.mxu0 0.0
    %2986 = vmatpush.msra.mxu0 0.0
    %2987 = vmatpush.msra.mxu0 0.0
    %2988 = vmatpush.msra.mxu0 0.0
    %2989 = vmatpush.msra.mxu0 0.0
    %2990 = vmatpush.msra.mxu0 0.0
    %2991 = vmatpush.msra.mxu0 0.0
    %2992 = vmatpush.msra.mxu0 0.0
    %2993 = vmatpush.msra.mxu0 0.0
    %2994 = vmatpush.msra.mxu0 0.0
    %2995 = vmatpush.msra.mxu0 0.0
    %2996 = vmatpush.msra.mxu0 %v2964
    %2997 = vmatpush.msra.mxu0 %v2963
    %2998 = vmatpush.msra.mxu0 %v2962
    %2999 = vmatpush.msra.mxu0 %v2961
    %3000 = vmatmul.f32.gmra.mxu0 %v2967
    %v3001 = vpop.f32.mrf.mxu0
    %v3002 = vadd.f32 %v2965, %v3001
    %3003 = vmatmul.f32.gmra.mxu0 %v2970
    %v3004 = vpop.f32.mrf.mxu0
    %v3005 = vadd.f32 %v2965, %v3004
    %3006 = vmatmul.f32.gmra.mxu0 %v2973
    %v3007 = vpop.f32.mrf.mxu0
    %v3008 = vadd.f32 %v2965, %v3007
    %3009 = vmatmul.f32.gmra.mxu0 %v2976
    %v3010 = vpop.f32.mrf.mxu0
    %v3011 = vadd.f32 %v2965, %v3010
    %3012 = vmatmul.f32.gmra.mxu0 %v2979
    %v3013 = vpop.f32.mrf.mxu0
    %v3014 = vadd.f32 %v2965, %v3013
    %3015 = vmatmul.f32.gmra.mxu0 %v2982
    %v3016 = vpop.f32.mrf.mxu0
    %v3017 = vadd.f32 %v2965, %v3016
    %3018 = vdwg.mxu0
    %v3019 = vmul.f32 %v3002, 0.5
    %v3020 = vmul.f32 %v3005, 0.5
    %v3021 = vmul.f32 %v3008, 0.5
    %v3022 = vmul.f32 %v3011, 0.5
    %v3023 = vmul.f32 %v3014, 0.5
    %v3024 = vmul.f32 %v3017, 0.5
    %v3025 = vmul.f32 %v3002, 0.044715
    %v3026 = vmul.f32 %v3005, 0.044715
    %v3027 = vmul.f32 %v3008, 0.044715
    %v3028 = vmul.f32 %v3011, 0.044715
    %v3029 = vmul.f32 %v3014, 0.044715
    %v3030 = vmul.f32 %v3017, 0.044715
    %v3031 = vmul.f32 %v3025, %v3002
    %v3032 = vmul.f32 %v3026, %v3005
    %v3033 = vmul.f32 %v3027, %v3008
    %v3034 = vmul.f32 %v3028, %v3011
    %v3035 = vmul.f32 %v3029, %v3014
    %v3036 = vmul.f32 %v3030, %v3017
    %v3037 = vmul.f32 %v3031, %v3002
    %v3038 = vmul.f32 %v3032, %v3005
    %v3039 = vmul.f32 %v3033, %v3008
    %v3040 = vmul.f32 %v3034, %v3011
    %v3041 = vmul.f32 %v3035, %v3014
    %v3042 = vmul.f32 %v3036, %v3017
    %v3043 = vadd.f32 %v3002, %v3037
    %v3044 = vadd.f32 %v3005, %v3038
    %v3045 = vadd.f32 %v3008, %v3039
    %v3046 = vadd.f32 %v3011, %v3040
    %v3047 = vadd.f32 %v3014, %v3041
    %v3048 = vadd.f32 %v3017, %v3042
    %v3049 = vmul.f32 %v3043, 0.7978846
    %v3050 = vmul.f32 %v3044, 0.7978846
    %v3051 = vmul.f32 %v3045, 0.7978846
    %v3052 = vmul.f32 %v3046, 0.7978846
    %v3053 = vmul.f32 %v3047, 0.7978846
    %v3054 = vmul.f32 %v3048, 0.7978846
    %v3055 = vtanh.pop %v3049
    %v3056 = vtanh.pop %v3050
    %v3057 = vtanh.pop %v3051
    %v3058 = vtanh.pop %v3052
    %v3059 = vtanh.pop %v3053
    %v3060 = vtanh.pop %v3054
    %v3061 = vadd.f32 %v3055, 1.0
    %v3062 = vadd.f32 %v3056, 1.0
    %v3063 = vadd.f32 %v3057, 1.0
    %v3064 = vadd.f32 %v3058, 1.0
    %v3065 = vadd.f32 %v3059, 1.0
    %v3066 = vadd.f32 %v3060, 1.0
    %v3067 = vmul.f32 %v3019, %v3061
    %v3068 = vmul.f32 %v3020, %v3062
    %v3069 = vmul.f32 %v3021, %v3063
    %v3070 = vmul.f32 %v3022, %v3064
    %v3071 = vmul.f32 %v3023, %v3065
    %v3072 = vmul.f32 %v3024, %v3066
    %s3073 = scalar_lea.vmem %s4, 128
    %v3074 = vld [vmem:[%s3073] sm:$0xff]
    %v3075 = vld [vmem:[%s3073 + $0x8] sm:$0xff]
    %v3076 = vld [vmem:[%s3073 + $0x10] sm:$0xff]
    %v3077 = vld [vmem:[%s3073 + $0x18] sm:$0xff]
    %v3078 = vld [vmem:[%s3073 + $0x20] sm:$0xff]
    %v3079 = vld [vmem:[%s3073 + $0x28] sm:$0xff]
    %v3080 = vld [vmem:[%s3073 + $0x30] sm:$0xff]
    %v3081 = vld [vmem:[%s3073 + $0x38] sm:$0xff]
    %v3082 = vld [vmem:[%s3073 + $0x40] sm:$0xff]
    %v3083 = vld [vmem:[%s3073 + $0x48] sm:$0xff]
    %v3084 = vld [vmem:[%s3073 + $0x50] sm:$0xff]
    %v3085 = vld [vmem:[%s3073 + $0x58] sm:$0xff]
    %v3086 = vld [vmem:[%s3073 + $0x60] sm:$0xff]
    %v3087 = vld [vmem:[%s3073 + $0x68] sm:$0xff]
    %v3088 = vld [vmem:[%s3073 + $0x70] sm:$0xff]
    %v3089 = vld [vmem:[%s3073 + $0x78] sm:$0xff]
    %v3090 = vperm.slane %v1733, 3
    %3091 = vmatpush.msra.mxu0 %v3089
    %3092 = vmatpush.msra.mxu0 %v3088
    %3093 = vmatpush.msra.mxu0 %v3087
    %3094 = vmatpush.msra.mxu0 %v3086
    %3095 = vmatpush.msra.mxu0 %v3085
    %3096 = vmatpush.msra.mxu0 %v3084
    %3097 = vmatpush.msra.mxu0 %v3083
    %3098 = vmatpush.msra.mxu0 %v3082
    %3099 = vmatpush.msra.mxu0 %v3081
    %3100 = vmatpush.msra.mxu0 %v3080
    %3101 = vmatpush.msra.mxu0 %v3079
    %3102 = vmatpush.msra.mxu0 %v3078
    %3103 = vmatpush.msra.mxu0 %v3077
    %3104 = vmatpush.msra.mxu0 %v3076
    %3105 = vmatpush.msra.mxu0 %v3075
    %3106 = vmatpush.msra.mxu0 %v3074
    %3107 = vmatmul.f32.gmra.mxu0 %v3067
    %v3108 = vpop.f32.mrf.mxu0
    %v3109 = vadd.f32 %v3090, %v3108
    %3110 = vmatmul.f32.gmra.mxu0 %v3068
    %v3111 = vpop.f32.mrf.mxu0
    %v3112 = vadd.f32 %v3090, %v3111
    %3113 = vmatmul.f32.gmra.mxu0 %v3069
    %v3114 = vpop.f32.mrf.mxu0
    %v3115 = vadd.f32 %v3090, %v3114
    %3116 = vmatmul.f32.gmra.mxu0 %v3070
    %v3117 = vpop.f32.mrf.mxu0
    %v3118 = vadd.f32 %v3090, %v3117
    %3119 = vmatmul.f32.gmra.mxu0 %v3071
    %v3120 = vpop.f32.mrf.mxu0
    %v3121 = vadd.f32 %v3090, %v3120
    %3122 = vmatmul.f32.gmra.mxu0 %v3072
    %v3123 = vpop.f32.mrf.mxu0
    %v3124 = vadd.f32 %v3090, %v3123
    %3125 = vdwg.mxu0
    %v3126 = vadd.f32 %v2954, %v3109
    %v3127 = vadd.f32 %v2955, %v3112
    %v3128 = vadd.f32 %v2956, %v3115
    %v3129 = vadd.f32 %v2957, %v3118
    %v3130 = vadd.f32 %v2958, %v3121
    %v3131 = vadd.f32 %v2959, %v3124
    %v3132 = vsel %vm186, %v3126, 0.0
    %3133 = vadd.xlane.f32.xlu0 %v3132
    %v3134 = vpop.xlane.xlu0 %3133
    %v3135 = vsel %vm186, %v3127, 0.0
    %3136 = vadd.xlane.f32.xlu0 %v3135
    %v3137 = vpop.xlane.xlu0 %3136
    %v3138 = vsel %vm186, %v3128, 0.0
    %3139 = vadd.xlane.f32.xlu0 %v3138
    %v3140 = vpop.xlane.xlu0 %3139
    %v3141 = vsel %vm186, %v3129, 0.0
    %3142 = vadd.xlane.f32.xlu0 %v3141
    %v3143 = vpop.xlane.xlu0 %3142
    %v3144 = vsel %vm186, %v3130, 0.0
    %3145 = vadd.xlane.f32.xlu0 %v3144
    %v3146 = vpop.xlane.xlu0 %3145
    %v3147 = vsel %vm186, %v3131, 0.0
    %3148 = vadd.xlane.f32.xlu0 %v3147
    %v3149 = vpop.xlane.xlu0 %3148
    %v3150 = vmul.f32 %v3134, %v1287
    %v3151 = vmul.f32 %v3137, %v1287
    %v3152 = vmul.f32 %v3140, %v1287
    %v3153 = vmul.f32 %v3143, %v1287
    %v3154 = vmul.f32 %v3146, %v1287
    %v3155 = vmul.f32 %v3149, %v1287
    %v3156 = vsub.f32 %v3126, %v3150
    %v3157 = vsub.f32 %v3127, %v3151
    %v3158 = vsub.f32 %v3128, %v3152
    %v3159 = vsub.f32 %v3129, %v3153
    %v3160 = vsub.f32 %v3130, %v3154
    %v3161 = vsub.f32 %v3131, %v3155
    %v3162 = vmul.f32 %v3156, %v3156
    %v3163 = vmul.f32 %v3157, %v3157
    %v3164 = vmul.f32 %v3158, %v3158
    %v3165 = vmul.f32 %v3159, %v3159
    %v3166 = vmul.f32 %v3160, %v3160
    %v3167 = vmul.f32 %v3161, %v3161
    %v3168 = vsel %vm186, %v3162, 0.0
    %3169 = vadd.xlane.f32.xlu0 %v3168
    %v3170 = vpop.xlane.xlu0 %3169
    %v3171 = vsel %vm186, %v3163, 0.0
    %3172 = vadd.xlane.f32.xlu0 %v3171
    %v3173 = vpop.xlane.xlu0 %3172
    %v3174 = vsel %vm186, %v3164, 0.0
    %3175 = vadd.xlane.f32.xlu0 %v3174
    %v3176 = vpop.xlane.xlu0 %3175
    %v3177 = vsel %vm186, %v3165, 0.0
    %3178 = vadd.xlane.f32.xlu0 %v3177
    %v3179 = vpop.xlane.xlu0 %3178
    %v3180 = vsel %vm186, %v3166, 0.0
    %3181 = vadd.xlane.f32.xlu0 %v3180
    %v3182 = vpop.xlane.xlu0 %3181
    %v3183 = vsel %vm186, %v3167, 0.0
    %3184 = vadd.xlane.f32.xlu0 %v3183
    %v3185 = vpop.xlane.xlu0 %3184
    %v3186 = vmul.f32 %v3170, %v1287
    %v3187 = vmul.f32 %v3173, %v1287
    %v3188 = vmul.f32 %v3176, %v1287
    %v3189 = vmul.f32 %v3179, %v1287
    %v3190 = vmul.f32 %v3182, %v1287
    %v3191 = vmul.f32 %v3185, %v1287
    %v3192 = vadd.f32 %v3186, 1e-05
    %v3193 = vadd.f32 %v3187, 1e-05
    %v3194 = vadd.f32 %v3188, 1e-05
    %v3195 = vadd.f32 %v3189, 1e-05
    %v3196 = vadd.f32 %v3190, 1e-05
    %v3197 = vadd.f32 %v3191, 1e-05
    %v3198 = vrsqrt.pop %v3192
    %v3199 = vmul.f32 %v3198, %v3192
    %v3200 = vmul.f32 %v3199, %v3198
    %v3201 = vmul.f32 0.5, %v3200
    %v3202 = vsub.f32 1.5, %v3201
    %v3203 = vmul.f32 %v3198, %v3202
    %vm3204 = vweird.f32 %v3192
    %vm3205 = vweird.f32 %v3198
    %vm3206 = vmor %vm3204, %vm3205
    %v3207 = vsel %vm3206, %v3198, %v3203
    %v3208 = vrsqrt.pop %v3193
    %v3209 = vmul.f32 %v3208, %v3193
    %v3210 = vmul.f32 %v3209, %v3208
    %v3211 = vmul.f32 0.5, %v3210
    %v3212 = vsub.f32 1.5, %v3211
    %v3213 = vmul.f32 %v3208, %v3212
    %vm3214 = vweird.f32 %v3193
    %vm3215 = vweird.f32 %v3208
    %vm3216 = vmor %vm3214, %vm3215
    %v3217 = vsel %vm3216, %v3208, %v3213
    %v3218 = vrsqrt.pop %v3194
    %v3219 = vmul.f32 %v3218, %v3194
    %v3220 = vmul.f32 %v3219, %v3218
    %v3221 = vmul.f32 0.5, %v3220
    %v3222 = vsub.f32 1.5, %v3221
    %v3223 = vmul.f32 %v3218, %v3222
    %vm3224 = vweird.f32 %v3194
    %vm3225 = vweird.f32 %v3218
    %vm3226 = vmor %vm3224, %vm3225
    %v3227 = vsel %vm3226, %v3218, %v3223
    %v3228 = vrsqrt.pop %v3195
    %v3229 = vmul.f32 %v3228, %v3195
    %v3230 = vmul.f32 %v3229, %v3228
    %v3231 = vmul.f32 0.5, %v3230
    %v3232 = vsub.f32 1.5, %v3231
    %v3233 = vmul.f32 %v3228, %v3232
    %vm3234 = vweird.f32 %v3195
    %vm3235 = vweird.f32 %v3228
    %vm3236 = vmor %vm3234, %vm3235
    %v3237 = vsel %vm3236, %v3228, %v3233
    %v3238 = vrsqrt.pop %v3196
    %v3239 = vmul.f32 %v3238, %v3196
    %v3240 = vmul.f32 %v3239, %v3238
    %v3241 = vmul.f32 0.5, %v3240
    %v3242 = vsub.f32 1.5, %v3241
    %v3243 = vmul.f32 %v3238, %v3242
    %vm3244 = vweird.f32 %v3196
    %vm3245 = vweird.f32 %v3238
    %vm3246 = vmor %vm3244, %vm3245
    %v3247 = vsel %vm3246, %v3238, %v3243
    %v3248 = vrsqrt.pop %v3197
    %v3249 = vmul.f32 %v3248, %v3197
    %v3250 = vmul.f32 %v3249, %v3248
    %v3251 = vmul.f32 0.5, %v3250
    %v3252 = vsub.f32 1.5, %v3251
    %v3253 = vmul.f32 %v3248, %v3252
    %vm3254 = vweird.f32 %v3197
    %vm3255 = vweird.f32 %v3248
    %vm3256 = vmor %vm3254, %vm3255
    %v3257 = vsel %vm3256, %v3248, %v3253
    %v3258 = vmul.f32 %v3156, %v3207
    %v3259 = vmul.f32 %v3157, %v3217
    %v3260 = vmul.f32 %v3158, %v3227
    %v3261 = vmul.f32 %v3159, %v3237
    %v3262 = vmul.f32 %v3160, %v3247
    %v3263 = vmul.f32 %v3161, %v3257
    %v3264 = vperm.slane %v1733, 6
    %v3265 = vmul.f32 %v3258, %v3264
    %v3266 = vmul.f32 %v3259, %v3264
    %v3267 = vmul.f32 %v3260, %v3264
    %v3268 = vmul.f32 %v3261, %v3264
    %v3269 = vmul.f32 %v3262, %v3264
    %v3270 = vmul.f32 %v3263, %v3264
    %v3271 = vperm.slane %v1733, 7
    %v3272 = vadd.f32 %v3265, %v3271
    %v3273 = vadd.f32 %v3266, %v3271
    %v3274 = vadd.f32 %v3267, %v3271
    %v3275 = vadd.f32 %v3268, %v3271
    %v3276 = vadd.f32 %v3269, %v3271
    %v3277 = vadd.f32 %v3270, %v3271
    %v3278 = vmul.u32 %v96, 24
    %v3279 = vadd.s32 %v3278, 16
    %vm3280 = vcmp.eq.s32.totalorder %v103, %v3279
    %v3281 = vsel %vm3280, 1, 0
    %v3282 = vcvt.s32.f32 %v3281
    %v3284 = vsel %vm392, %v3282, 0
    %3286 = vmatpush.msra.mxu0 0.0
    %3287 = vmatpush.msra.mxu0 0.0
    %3288 = vmatpush.msra.mxu0 0.0
    %3289 = vmatpush.msra.mxu0 0.0
    %3290 = vmatpush.msra.mxu0 0.0
    %3291 = vmatpush.msra.mxu0 0.0
    %3292 = vmatpush.msra.mxu0 0.0
    %3293 = vmatpush.msra.mxu0 0.0
    %3294 = vmatpush.msra.mxu0 0.0
    %3295 = vmatpush.msra.mxu0 0.0
    %3296 = vmatpush.msra.mxu0 %v3277
    %3297 = vmatpush.msra.mxu0 %v3276
    %3298 = vmatpush.msra.mxu0 %v3275
    %3299 = vmatpush.msra.mxu0 %v3274
    %3300 = vmatpush.msra.mxu0 %v3273
    %3301 = vmatpush.msra.mxu0 %v3272
    %3302 = vmatmul.f32.gmra.mxu0 %v3284
    %v3303 = vpop.f32.mrf.mxu0
    %v3304 = vadd.f32 0.0, %v3303
    %3305 = vdwg.mxu0
    %v3306 = vld [vmem:[%s6] sm:$0xff]
    %v3307 = vld [vmem:[%s6 + $0x8] sm:$0xff]
    %v3308 = vld [vmem:[%s6 + $0x10] sm:$0xff]
    %v3309 = vld [vmem:[%s6 + $0x18] sm:$0xff]
    %v3310 = vld [vmem:[%s6 + $0x20] sm:$0xff]
    %v3311 = vperm.slane %v3310, 0
    %v3313 = vsel %vm186, %v3304, 0
    %3315 = vmatpush.msra.mxu0 0.0
    %3316 = vmatpush.msra.mxu0 0.0
    %3317 = vmatpush.msra.mxu0 0.0
    %3318 = vmatpush.msra.mxu0 0.0
    %3319 = vmatpush.msra.mxu0 0.0
    %3320 = vmatpush.msra.mxu0 0.0
    %3321 = vmatpush.msra.mxu0 0.0
    %3322 = vmatpush.msra.mxu0 0.0
    %3323 = vmatpush.msra.mxu0 0.0
    %3324 = vmatpush.msra.mxu0 0.0
    %3325 = vmatpush.msra.mxu0 0.0
    %3326 = vmatpush.msra.mxu0 0.0
    %3327 = vmatpush.msra.mxu0 %v3309
    %3328 = vmatpush.msra.mxu0 %v3308
    %3329 = vmatpush.msra.mxu0 %v3307
    %3330 = vmatpush.msra.mxu0 %v3306
    %3331 = vmatmul.f32.gmra.mxu0 %v3313
    %v3332 = vpop.f32.mrf.mxu0
    %v3333 = vadd.f32 %v3311, %v3332
    %3334 = vdwg.mxu0
    %vm3335 = vcmask 25600
    %3336 = vst.msk [vmem:[#allocation2] sm:$0x3] %vm3335, %v3333
    // Predicated region
    $region30: #{ti_mae_forward.1} parent=1 // pred_check
      _
    $region31: #{ti_mae_forward.1} parent=1 // pred_check_branch
      %3338 = sbr.rel (0) target = $region33
    $region32: #{ti_mae_forward.1} parent=1 // pred_region
      %3340 = vsyncadd [#allocation3], 0
      %s3342 = sshll.u32 [#allocation2], 4
      %s3343 = int_to_ptr.vmem [resolvable:$true] %s3342
      %s3344 = sshll.u32 %s7, 4
      %s3345 = int_to_ptr.hbm [resolvable:$true] %s3344
      %3347 = dma.vmem_to_hbm [thread:$0]  %s3343, 32, %s3345, [#allocation3]
    $region33: #{ti_mae_forward.1} parent=1 // pred_fallthru
      _
    // Predicated region
    $region34: #{ti_mae_forward.1} parent=1 // pred_check
      _
    $region35: #{ti_mae_forward.1} parent=1 // pred_check_branch
      %3349 = sbr.rel (0) target = $region37
    $region36: #{ti_mae_forward.1} parent=1 // pred_region
      %3351 = dma.done [#allocation3], 32
    $region37: #{ti_mae_forward.1} parent=1 // pred_fallthru
      _
    %3352 = vsyncpa [#allocation3], 1

</llo_original>
